<compile_context>
chip_gen: v6e
topology: v6e:2x2x1
jax: 0.10.0
libtpu: 0.0.40
codegen_flags: <defaults>
</compile_context>

<pallas_src>
import functools

import jax
import jax.numpy as jnp
from jax import lax
from jax.experimental import pallas as pl
from jax.experimental.pallas import tpu as pltpu


def _round_up(x, m):
    return (x + m - 1) // m * m


# ----------------------------------------------------------------------------
# LSTM recurrence kernel.
#   gx = x @ W_ih + b is precomputed OUTSIDE (one big matmul); the kernel only
#   does the serial part: h @ W_hh per step. Grid iterates over time chunks,
#   h/c persist in VMEM scratch across grid steps. Gate order (i, f, g, o)
#   matches nn.LSTM.
# ----------------------------------------------------------------------------
def lstm_kernel(gx_ref, whh_ref, out_ref, h_scr, c_scr):
    @pl.when(pl.program_id(0) == 0)
    def _():
        h_scr[...] = jnp.zeros_like(h_scr)
        c_scr[...] = jnp.zeros_like(c_scr)

    H = h_scr.shape[-1]
    t_chunk = gx_ref.shape[0]

    def step(s, carry):
        h, c = carry
        gates = gx_ref[s] + jnp.dot(h.astype(jnp.bfloat16), whh_ref[...],
                                    preferred_element_type=jnp.float32)
        # f32 gate math (v5e VPU/EUP have no bf16); H multiple of 128 keeps
        # these slices lane-aligned (no XLU relayout).
        i_g = jax.nn.sigmoid(gates[:, 0 * H:1 * H])
        f_g = jax.nn.sigmoid(gates[:, 1 * H:2 * H])
        g_g = jnp.tanh(gates[:, 2 * H:3 * H])
        o_g = jax.nn.sigmoid(gates[:, 3 * H:4 * H])
        c = f_g * c + i_g * g_g
        h = o_g * jnp.tanh(c)
        out_ref[s] = h.astype(out_ref.dtype)
        return h, c

    h, c = lax.fori_loop(0, t_chunk, step, (h_scr[...], c_scr[...]),
                         unroll=True)
    h_scr[...] = h
    c_scr[...] = c


def lstm_forward(gx, w_hh, *, t_chunk=8):
    """gx: (T, B, 4H) f32 precomputed input gates; w_hh: (H, 4H) bf16."""
    T, B, G = gx.shape
    H = w_hh.shape[0]
    Bp = _round_up(B, 8)
    Tp = _round_up(T, t_chunk)
    if Bp != B or Tp != T:
        gx = jnp.pad(gx, ((0, Tp - T), (0, Bp - B), (0, 0)))

    out = pl.pallas_call(
        lstm_kernel,
        out_shape=jax.ShapeDtypeStruct((Tp, Bp, H), jnp.bfloat16),
        grid_spec=pltpu.PrefetchScalarGridSpec(
            num_scalar_prefetch=0,
            grid=(Tp // t_chunk,),
            in_specs=[
                pl.BlockSpec((t_chunk, Bp, G), lambda t: (t, 0, 0)),
                pl.BlockSpec((H, G), lambda t: (0, 0)),
            ],
            out_specs=pl.BlockSpec((t_chunk, Bp, H), lambda t: (t, 0, 0)),
            scratch_shapes=[pltpu.VMEM((Bp, H), jnp.float32),
                            pltpu.VMEM((Bp, H), jnp.float32)],
        ),
        compiler_params=pltpu.CompilerParams(
            dimension_semantics=("arbitrary",)),
    )(gx, w_hh)
    return out[:T, :B]


# ----------------------------------------------------------------------------
# Head kernel: projection + ReLU + softmax cross-entropy, tiled over (N, V)
# with an online softmax over the V axis.
#   v == 0      : compute proj = relu(x @ Wp + bp) into VMEM scratch, init stats
#   every v     : logits tile = proj @ Ws[:, vTV:(v+1)TV] + bs tile
#                 online update of running max m, running sum-exp l, and the
#                 accumulated target logit (per-tile masked select)
#   v == last   : nll_i = (m_i + log l_i) - target_logit_i
# ----------------------------------------------------------------------------
def head_kernel(x_ref, wp_ref, bp_ref, ws_ref, bs_ref, tgt_ref, nll_ref,
                proj_scr, m_scr, l_scr, t_scr):
    v = pl.program_id(1)

    @pl.when(v == 0)
    def _():
        p = (jnp.dot(x_ref[...], wp_ref[...],
                     preferred_element_type=jnp.float32) + bp_ref[...])
        p = jnp.maximum(p, 0.0)                 # add_relu=True
        # dropout(p=droprate) is identity in eval mode
        proj_scr[...] = p.astype(proj_scr.dtype)
        m_scr[...] = jnp.full_like(m_scr, -jnp.inf)
        l_scr[...] = jnp.zeros_like(l_scr)
        t_scr[...] = jnp.zeros_like(t_scr)

    logits = (jnp.dot(proj_scr[...], ws_ref[...],
                      preferred_element_type=jnp.float32) + bs_ref[...])

    m_prev = m_scr[...]
    m_new = jnp.maximum(m_prev, jnp.max(logits, axis=-1, keepdims=True))
    alpha = jnp.exp(m_prev - m_new)             # rescale running sum-exp
    l_scr[...] = alpha * l_scr[...] + jnp.sum(jnp.exp(logits - m_new),
                                              axis=-1, keepdims=True)
    m_scr[...] = m_new

    # target logit: only the tile containing target[i] contributes
    tv = logits.shape[1]
    col = jax.lax.broadcasted_iota(jnp.int32, logits.shape, 1) + v * tv
    hit = col == tgt_ref[...]
    t_scr[...] = t_scr[...] + jnp.sum(jnp.where(hit, logits, 0.0),
                                      axis=-1, keepdims=True)

    @pl.when(v == pl.num_programs(1) - 1)
    def _():
        lse = m_scr[...] + jnp.log(l_scr[...])
        nll_ref[...] = lse - t_scr[...]


def head_forward(x, w_proj, b_proj, w_sm, b_sm, target, *, tn=256, tv=4096):
    """x: (N, H) bf16; returns per-row NLL (N, 1) f32."""
    N, H = x.shape
    L = w_proj.shape[1]
    V = w_sm.shape[1]
    tn = min(tn, _round_up(N, 16))
    tv = min(tv, _round_up(V, 128))
    Np = _round_up(N, tn)
    Vp = _round_up(V, tv)
    if Np != N:
        x = jnp.pad(x, ((0, Np - N), (0, 0)))
        target = jnp.pad(target, ((0, Np - N), (0, 0)))
    if Vp != V:
        # padded vocab columns get a huge negative bias so they never affect
        # the max / sum-exp; targets never index them.
        w_sm = jnp.pad(w_sm, ((0, 0), (0, Vp - V)))
        b_sm = jnp.pad(b_sm, ((0, 0), (0, Vp - V)), constant_values=-1e30)

    nll = pl.pallas_call(
        head_kernel,
        out_shape=jax.ShapeDtypeStruct((Np, 1), jnp.float32),
        grid_spec=pltpu.PrefetchScalarGridSpec(
            num_scalar_prefetch=0,
            grid=(Np // tn, Vp // tv),
            in_specs=[
                pl.BlockSpec((tn, H), lambda n, v: (n, 0)),
                pl.BlockSpec((H, L), lambda n, v: (0, 0)),
                pl.BlockSpec((1, L), lambda n, v: (0, 0)),
                pl.BlockSpec((L, tv), lambda n, v: (0, v)),
                pl.BlockSpec((1, tv), lambda n, v: (0, v)),
                pl.BlockSpec((tn, 1), lambda n, v: (n, 0)),
            ],
            out_specs=pl.BlockSpec((tn, 1), lambda n, v: (n, 0)),
            scratch_shapes=[
                pltpu.VMEM((tn, L), jnp.bfloat16),   # proj (reused across V)
                pltpu.VMEM((tn, 1), jnp.float32),    # running max
                pltpu.VMEM((tn, 1), jnp.float32),    # running sum-exp
                pltpu.VMEM((tn, 1), jnp.float32),    # target logit
            ],
        ),
        compiler_params=pltpu.CompilerParams(
            # N tiles are independent -> megacore-parallel on v7x;
            # V is the softmax reduction axis (last, "arbitrary").
            dimension_semantics=("parallel", "arbitrary")),
    )(x, w_proj, b_proj, w_sm, b_sm, target)
    return nll[:N]


# ----------------------------------------------------------------------------
# LM forward (matches LM.forward): embed -> drop -> rnn -> view(-1, H)
#                                  -> drop(relu(project(.))) -> soft_max(., target)
# ----------------------------------------------------------------------------
def lm_forward(params, w_in, target, *, t_chunk=8, head_tn=256, head_tv=4096):
    T, B = w_in.shape
    # embedding gather (glue, plain JAX); self.drop(w_emb) is identity in eval
    w_emb = jnp.take(params["embed"], w_in, axis=0)            # (T, B, D) bf16
    D = w_emb.shape[-1]
    H = params["w_hh"].shape[0]

    # Hoisted input projection: one large MXU matmul over all T*B rows.
    gx = (jnp.dot(w_emb.reshape(T * B, D), params["w_ih"],
                  preferred_element_type=jnp.float32)
          + params["b_lstm"]).reshape(T, B, 4 * H)             # (T, B, 4H) f32

    rnn_out = lstm_forward(gx, params["w_hh"], t_chunk=t_chunk)  # (T, B, H) bf16
    out = rnn_out.reshape(T * B, H)                    # .view(-1, rnn_output)
    tgt = target.reshape(T * B, 1).astype(jnp.int32)

    nll = head_forward(out, params["w_proj"], params["b_proj"],
                       params["w_sm"], params["b_sm"], tgt,
                       tn=head_tn, tv=head_tv)                 # (T*B, 1)
    return jnp.mean(nll[:, 0])


def init_params(key, w_num, w_dim, hidden, label_dim):
    ks = jax.random.split(key, 8)
    s = 0.1
    f32, bf16 = jnp.float32, jnp.bfloat16
    return {
        "embed":  (s * jax.random.normal(ks[0], (w_num, w_dim), f32)).astype(bf16),
        "w_ih":   (s * jax.random.normal(ks[1], (w_dim, 4 * hidden), f32)).astype(bf16),
        "w_hh":   (s * jax.random.normal(ks[2], (hidden, 4 * hidden), f32)).astype(bf16),
        # TODO(synk): nn.LSTM has separate b_ih + b_hh; when porting weights,
        # this merged bias must equal their sum.
        "b_lstm": s * jax.random.normal(ks[3], (1, 4 * hidden), f32),
        "w_proj": (s * jax.random.normal(ks[4], (hidden, label_dim), f32)).astype(bf16),
        "b_proj": s * jax.random.normal(ks[5], (1, label_dim), f32),
        "w_sm":   (s * jax.random.normal(ks[6], (label_dim, w_num), f32)).astype(bf16),
        "b_sm":   s * jax.random.normal(ks[7], (1, w_num), f32),
    }


if __name__ == "__main__":
    # Small but lane-aligned shapes (H, D, L multiples of 128; B multiple of 8).
    W_NUM, W_DIM, HIDDEN, LABEL_DIM = 2048, 128, 128, 128
    T, B = 16, 8

    key = jax.random.PRNGKey(0)
    kp, kw, kt = jax.random.split(key, 3)
    params = init_params(kp, W_NUM, W_DIM, HIDDEN, LABEL_DIM)

    w_in = jax.random.randint(kw, (T, B), 0, W_NUM, dtype=jnp.int32)
    target = jax.random.randint(kt, (T, B), 0, W_NUM, dtype=jnp.int32)

    # Small tiles here so the (N, V)-tiled online-softmax path is exercised;
    # on real vocabularies use the generation-specific sizes noted up top.
    loss_fn = jax.jit(functools.partial(
        lm_forward, t_chunk=8, head_tn=64, head_tv=512))

    loss = loss_fn(params, w_in, target)
    jax.block_until_ready(loss)
    assert loss.shape == () and jnp.isfinite(loss)
    print("KERNEL_OK")
</pallas_src>

<mosaic_0001>
module attributes {stable_mosaic.version = 11 : i64} {
  func.func @lstm_kernel(%arg0: i32, %arg1: memref<8x8x512xf32, #tpu.memory_space<vmem>>, %arg2: memref<128x512xbf16, #tpu.memory_space<vmem>>, %arg3: memref<8x8x128xbf16, #tpu.memory_space<vmem>>, %arg4: memref<8x128xf32, #tpu.memory_space<vmem>>, %arg5: memref<8x128xf32, #tpu.memory_space<vmem>>) attributes {dimension_semantics = [#tpu.dimension_semantics<arbitrary>], iteration_bounds = array<i64: 2>, scalar_prefetch = 0 : i64, scratch_operands = 2 : i64, tpu.core_type = #tpu.core_type<tc>, window_params = [{transform_indices = @transform_0, window_bounds = array<i64: 8, 8, 512>}, {pipeline_mode = #tpu.pipeline_mode<synchronous>, transform_indices = @transform_1, window_bounds = array<i64: 128, 512>}, {transform_indices = @transform_2, window_bounds = array<i64: 8, 8, 128>}]} {
    %c0_i32 = arith.constant 0 : i32
    %0 = arith.cmpi eq, %arg0, %c0_i32 : i32
    %1 = arith.extui %0 : i1 to i32
    %c0_i32_0 = arith.constant 0 : i32
    %2 = arith.cmpi ne, %1, %c0_i32_0 : i32
    scf.if %2 {
      %cst_88 = arith.constant 0.000000e+00 : f32
      %303 = vector.broadcast %cst_88 : f32 to vector<8x128xf32>
      %c0_89 = arith.constant 0 : index
      %c0_90 = arith.constant 0 : index
      %304 = vector.load %arg4[%c0_89, %c0_90] : memref<8x128xf32, #tpu.memory_space<vmem>>, vector<8x128xf32>
      tpu.vector_store %arg4[%c0_89, %c0_90], %303 {strides = array<i32>} : memref<8x128xf32, #tpu.memory_space<vmem>>, vector<8x128xf32>,
      %cst_91 = arith.constant 0.000000e+00 : f32
      %305 = vector.broadcast %cst_91 : f32 to vector<8x128xf32>
      %c0_92 = arith.constant 0 : index
      %c0_93 = arith.constant 0 : index
      %306 = vector.load %arg5[%c0_92, %c0_93] : memref<8x128xf32, #tpu.memory_space<vmem>>, vector<8x128xf32>
      tpu.vector_store %arg5[%c0_92, %c0_93], %305 {strides = array<i32>} : memref<8x128xf32, #tpu.memory_space<vmem>>, vector<8x128xf32>,
    } else {
    }
    %c0 = arith.constant 0 : index
    %c0_1 = arith.constant 0 : index
    %3 = vector.load %arg4[%c0, %c0_1] : memref<8x128xf32, #tpu.memory_space<vmem>>, vector<8x128xf32>
    %c0_2 = arith.constant 0 : index
    %c0_3 = arith.constant 0 : index
    %4 = vector.load %arg5[%c0_2, %c0_3] : memref<8x128xf32, #tpu.memory_space<vmem>>, vector<8x128xf32>
    %c0_i32_4 = arith.constant 0 : i32
    %5 = arith.index_cast %c0_i32_4 : i32 to index
    %c0_5 = arith.constant 0 : index
    %c0_6 = arith.constant 0 : index
    %6 = vector.load %arg1[%5, %c0_5, %c0_6] : memref<8x8x512xf32, #tpu.memory_space<vmem>>, vector<1x8x512xf32>
    %7 = vector.shape_cast %6 : vector<1x8x512xf32> to vector<8x512xf32>
    %8 = arith.truncf %3 : vector<8x128xf32> to vector<8x128xbf16>
    %c0_7 = arith.constant 0 : index
    %c0_8 = arith.constant 0 : index
    %9 = vector.load %arg2[%c0_7, %c0_8] : memref<128x512xbf16, #tpu.memory_space<vmem>>, vector<128x512xbf16>
    %cst = arith.constant dense<0.000000e+00> : vector<8x512xf32>
    %10 = tpu.matmul %8, %9, %cst {dimension_numbers = #tpu.dot_dimension_numbers<[1], [0], [0], [1], [0, 0, 1, 1], [], []>} : vector<8x128xbf16>, vector<128x512xbf16>, vector<8x512xf32> -> vector<8x512xf32>
    %11 = arith.addf %7, %10 : vector<8x512xf32>
    %12 = vector.extract_strided_slice %11 {offsets = [0, 0], sizes = [8, 128], strides = [1, 1]} : vector<8x512xf32> to vector<8x128xf32>
    %13 = arith.negf %12 : vector<8x128xf32>
    %14 = math.exp %13 : vector<8x128xf32>
    %cst_9 = arith.constant 1.000000e+00 : f32
    %15 = vector.broadcast %cst_9 : f32 to vector<8x128xf32>
    %16 = arith.addf %15, %14 : vector<8x128xf32>
    %17 = arith.divf %15, %16 : vector<8x128xf32>
    %18 = vector.extract_strided_slice %11 {offsets = [0, 128], sizes = [8, 128], strides = [1, 1]} : vector<8x512xf32> to vector<8x128xf32>
    %19 = arith.negf %18 : vector<8x128xf32>
    %20 = math.exp %19 : vector<8x128xf32>
    %cst_10 = arith.constant 1.000000e+00 : f32
    %21 = vector.broadcast %cst_10 : f32 to vector<8x128xf32>
    %22 = arith.addf %21, %20 : vector<8x128xf32>
    %23 = arith.divf %21, %22 : vector<8x128xf32>
    %24 = vector.extract_strided_slice %11 {offsets = [0, 256], sizes = [8, 128], strides = [1, 1]} : vector<8x512xf32> to vector<8x128xf32>
    %25 = math.tanh %24 : vector<8x128xf32>
    %26 = vector.extract_strided_slice %11 {offsets = [0, 384], sizes = [8, 128], strides = [1, 1]} : vector<8x512xf32> to vector<8x128xf32>
    %27 = arith.negf %26 : vector<8x128xf32>
    %28 = math.exp %27 : vector<8x128xf32>
    %cst_11 = arith.constant 1.000000e+00 : f32
    %29 = vector.broadcast %cst_11 : f32 to vector<8x128xf32>
    %30 = arith.addf %29, %28 : vector<8x128xf32>
    %31 = arith.divf %29, %30 : vector<8x128xf32>
    %32 = arith.mulf %23, %4 : vector<8x128xf32>
    %33 = arith.mulf %17, %25 : vector<8x128xf32>
    %34 = arith.addf %32, %33 : vector<8x128xf32>
    %35 = math.tanh %34 : vector<8x128xf32>
    %36 = arith.mulf %31, %35 : vector<8x128xf32>
    %37 = arith.truncf %36 : vector<8x128xf32> to vector<8x128xbf16>
    %38 = arith.index_cast %c0_i32_4 : i32 to index
    %c0_12 = arith.constant 0 : index
    %c0_13 = arith.constant 0 : index
    %39 = vector.load %arg3[%38, %c0_12, %c0_13] : memref<8x8x128xbf16, #tpu.memory_space<vmem>>, vector<1x8x128xbf16>
    %40 = vector.shape_cast %39 : vector<1x8x128xbf16> to vector<8x128xbf16>
    %41 = vector.shape_cast %37 : vector<8x128xbf16> to vector<1x8x128xbf16>
    tpu.vector_store %arg3[%38, %c0_12, %c0_13], %41 {strides = array<i32>} : memref<8x8x128xbf16, #tpu.memory_space<vmem>>, vector<1x8x128xbf16>,
    %c1_i32 = arith.constant 1 : i32
    %42 = arith.index_cast %c1_i32 : i32 to index
    %c0_14 = arith.constant 0 : index
    %c0_15 = arith.constant 0 : index
    %43 = vector.load %arg1[%42, %c0_14, %c0_15] : memref<8x8x512xf32, #tpu.memory_space<vmem>>, vector<1x8x512xf32>
    %44 = vector.shape_cast %43 : vector<1x8x512xf32> to vector<8x512xf32>
    %45 = arith.truncf %36 : vector<8x128xf32> to vector<8x128xbf16>
    %c0_16 = arith.constant 0 : index
    %c0_17 = arith.constant 0 : index
    %46 = vector.load %arg2[%c0_16, %c0_17] : memref<128x512xbf16, #tpu.memory_space<vmem>>, vector<128x512xbf16>
    %cst_18 = arith.constant dense<0.000000e+00> : vector<8x512xf32>
    %47 = tpu.matmul %45, %46, %cst_18 {dimension_numbers = #tpu.dot_dimension_numbers<[1], [0], [0], [1], [0, 0, 1, 1], [], []>} : vector<8x128xbf16>, vector<128x512xbf16>, vector<8x512xf32> -> vector<8x512xf32>
    %48 = arith.addf %44, %47 : vector<8x512xf32>
    %49 = vector.extract_strided_slice %48 {offsets = [0, 0], sizes = [8, 128], strides = [1, 1]} : vector<8x512xf32> to vector<8x128xf32>
    %50 = arith.negf %49 : vector<8x128xf32>
    %51 = math.exp %50 : vector<8x128xf32>
    %cst_19 = arith.constant 1.000000e+00 : f32
    %52 = vector.broadcast %cst_19 : f32 to vector<8x128xf32>
    %53 = arith.addf %52, %51 : vector<8x128xf32>
    %54 = arith.divf %52, %53 : vector<8x128xf32>
    %55 = vector.extract_strided_slice %48 {offsets = [0, 128], sizes = [8, 128], strides = [1, 1]} : vector<8x512xf32> to vector<8x128xf32>
    %56 = arith.negf %55 : vector<8x128xf32>
    %57 = math.exp %56 : vector<8x128xf32>
    %cst_20 = arith.constant 1.000000e+00 : f32
    %58 = vector.broadcast %cst_20 : f32 to vector<8x128xf32>
    %59 = arith.addf %58, %57 : vector<8x128xf32>
    %60 = arith.divf %58, %59 : vector<8x128xf32>
    %61 = vector.extract_strided_slice %48 {offsets = [0, 256], sizes = [8, 128], strides = [1, 1]} : vector<8x512xf32> to vector<8x128xf32>
    %62 = math.tanh %61 : vector<8x128xf32>
    %63 = vector.extract_strided_slice %48 {offsets = [0, 384], sizes = [8, 128], strides = [1, 1]} : vector<8x512xf32> to vector<8x128xf32>
    %64 = arith.negf %63 : vector<8x128xf32>
    %65 = math.exp %64 : vector<8x128xf32>
    %cst_21 = arith.constant 1.000000e+00 : f32
    %66 = vector.broadcast %cst_21 : f32 to vector<8x128xf32>
    %67 = arith.addf %66, %65 : vector<8x128xf32>
    %68 = arith.divf %66, %67 : vector<8x128xf32>
    %69 = arith.mulf %60, %34 : vector<8x128xf32>
    %70 = arith.mulf %54, %62 : vector<8x128xf32>
    %71 = arith.addf %69, %70 : vector<8x128xf32>
    %72 = math.tanh %71 : vector<8x128xf32>
    %73 = arith.mulf %68, %72 : vector<8x128xf32>
    %74 = arith.truncf %73 : vector<8x128xf32> to vector<8x128xbf16>
    %75 = arith.index_cast %c1_i32 : i32 to index
    %c0_22 = arith.constant 0 : index
    %c0_23 = arith.constant 0 : index
    %76 = vector.load %arg3[%75, %c0_22, %c0_23] : memref<8x8x128xbf16, #tpu.memory_space<vmem>>, vector<1x8x128xbf16>
    %77 = vector.shape_cast %76 : vector<1x8x128xbf16> to vector<8x128xbf16>
    %78 = vector.shape_cast %74 : vector<8x128xbf16> to vector<1x8x128xbf16>
    tpu.vector_store %arg3[%75, %c0_22, %c0_23], %78 {strides = array<i32>} : memref<8x8x128xbf16, #tpu.memory_space<vmem>>, vector<1x8x128xbf16>,
    %c2_i32 = arith.constant 2 : i32
    %79 = arith.index_cast %c2_i32 : i32 to index
    %c0_24 = arith.constant 0 : index
    %c0_25 = arith.constant 0 : index
    %80 = vector.load %arg1[%79, %c0_24, %c0_25] : memref<8x8x512xf32, #tpu.memory_space<vmem>>, vector<1x8x512xf32>
    %81 = vector.shape_cast %80 : vector<1x8x512xf32> to vector<8x512xf32>
    %82 = arith.truncf %73 : vector<8x128xf32> to vector<8x128xbf16>
    %c0_26 = arith.constant 0 : index
    %c0_27 = arith.constant 0 : index
    %83 = vector.load %arg2[%c0_26, %c0_27] : memref<128x512xbf16, #tpu.memory_space<vmem>>, vector<128x512xbf16>
    %cst_28 = arith.constant dense<0.000000e+00> : vector<8x512xf32>
    %84 = tpu.matmul %82, %83, %cst_28 {dimension_numbers = #tpu.dot_dimension_numbers<[1], [0], [0], [1], [0, 0, 1, 1], [], []>} : vector<8x128xbf16>, vector<128x512xbf16>, vector<8x512xf32> -> vector<8x512xf32>
    %85 = arith.addf %81, %84 : vector<8x512xf32>
    %86 = vector.extract_strided_slice %85 {offsets = [0, 0], sizes = [8, 128], strides = [1, 1]} : vector<8x512xf32> to vector<8x128xf32>
    %87 = arith.negf %86 : vector<8x128xf32>
    %88 = math.exp %87 : vector<8x128xf32>
    %cst_29 = arith.constant 1.000000e+00 : f32
    %89 = vector.broadcast %cst_29 : f32 to vector<8x128xf32>
    %90 = arith.addf %89, %88 : vector<8x128xf32>
    %91 = arith.divf %89, %90 : vector<8x128xf32>
    %92 = vector.extract_strided_slice %85 {offsets = [0, 128], sizes = [8, 128], strides = [1, 1]} : vector<8x512xf32> to vector<8x128xf32>
    %93 = arith.negf %92 : vector<8x128xf32>
    %94 = math.exp %93 : vector<8x128xf32>
    %cst_30 = arith.constant 1.000000e+00 : f32
    %95 = vector.broadcast %cst_30 : f32 to vector<8x128xf32>
    %96 = arith.addf %95, %94 : vector<8x128xf32>
    %97 = arith.divf %95, %96 : vector<8x128xf32>
    %98 = vector.extract_strided_slice %85 {offsets = [0, 256], sizes = [8, 128], strides = [1, 1]} : vector<8x512xf32> to vector<8x128xf32>
    %99 = math.tanh %98 : vector<8x128xf32>
    %100 = vector.extract_strided_slice %85 {offsets = [0, 384], sizes = [8, 128], strides = [1, 1]} : vector<8x512xf32> to vector<8x128xf32>
    %101 = arith.negf %100 : vector<8x128xf32>
    %102 = math.exp %101 : vector<8x128xf32>
    %cst_31 = arith.constant 1.000000e+00 : f32
    %103 = vector.broadcast %cst_31 : f32 to vector<8x128xf32>
    %104 = arith.addf %103, %102 : vector<8x128xf32>
    %105 = arith.divf %103, %104 : vector<8x128xf32>
    %106 = arith.mulf %97, %71 : vector<8x128xf32>
    %107 = arith.mulf %91, %99 : vector<8x128xf32>
    %108 = arith.addf %106, %107 : vector<8x128xf32>
    %109 = math.tanh %108 : vector<8x128xf32>
    %110 = arith.mulf %105, %109 : vector<8x128xf32>
    %111 = arith.truncf %110 : vector<8x128xf32> to vector<8x128xbf16>
    %112 = arith.index_cast %c2_i32 : i32 to index
    %c0_32 = arith.constant 0 : index
    %c0_33 = arith.constant 0 : index
    %113 = vector.load %arg3[%112, %c0_32, %c0_33] : memref<8x8x128xbf16, #tpu.memory_space<vmem>>, vector<1x8x128xbf16>
    %114 = vector.shape_cast %113 : vector<1x8x128xbf16> to vector<8x128xbf16>
    %115 = vector.shape_cast %111 : vector<8x128xbf16> to vector<1x8x128xbf16>
    tpu.vector_store %arg3[%112, %c0_32, %c0_33], %115 {strides = array<i32>} : memref<8x8x128xbf16, #tpu.memory_space<vmem>>, vector<1x8x128xbf16>,
    %c3_i32 = arith.constant 3 : i32
    %116 = arith.index_cast %c3_i32 : i32 to index
    %c0_34 = arith.constant 0 : index
    %c0_35 = arith.constant 0 : index
    %117 = vector.load %arg1[%116, %c0_34, %c0_35] : memref<8x8x512xf32, #tpu.memory_space<vmem>>, vector<1x8x512xf32>
    %118 = vector.shape_cast %117 : vector<1x8x512xf32> to vector<8x512xf32>
    %119 = arith.truncf %110 : vector<8x128xf32> to vector<8x128xbf16>
    %c0_36 = arith.constant 0 : index
    %c0_37 = arith.constant 0 : index
    %120 = vector.load %arg2[%c0_36, %c0_37] : memref<128x512xbf16, #tpu.memory_space<vmem>>, vector<128x512xbf16>
    %cst_38 = arith.constant dense<0.000000e+00> : vector<8x512xf32>
    %121 = tpu.matmul %119, %120, %cst_38 {dimension_numbers = #tpu.dot_dimension_numbers<[1], [0], [0], [1], [0, 0, 1, 1], [], []>} : vector<8x128xbf16>, vector<128x512xbf16>, vector<8x512xf32> -> vector<8x512xf32>
    %122 = arith.addf %118, %121 : vector<8x512xf32>
    %123 = vector.extract_strided_slice %122 {offsets = [0, 0], sizes = [8, 128], strides = [1, 1]} : vector<8x512xf32> to vector<8x128xf32>
    %124 = arith.negf %123 : vector<8x128xf32>
    %125 = math.exp %124 : vector<8x128xf32>
    %cst_39 = arith.constant 1.000000e+00 : f32
    %126 = vector.broadcast %cst_39 : f32 to vector<8x128xf32>
    %127 = arith.addf %126, %125 : vector<8x128xf32>
    %128 = arith.divf %126, %127 : vector<8x128xf32>
    %129 = vector.extract_strided_slice %122 {offsets = [0, 128], sizes = [8, 128], strides = [1, 1]} : vector<8x512xf32> to vector<8x128xf32>
    %130 = arith.negf %129 : vector<8x128xf32>
    %131 = math.exp %130 : vector<8x128xf32>
    %cst_40 = arith.constant 1.000000e+00 : f32
    %132 = vector.broadcast %cst_40 : f32 to vector<8x128xf32>
    %133 = arith.addf %132, %131 : vector<8x128xf32>
    %134 = arith.divf %132, %133 : vector<8x128xf32>
    %135 = vector.extract_strided_slice %122 {offsets = [0, 256], sizes = [8, 128], strides = [1, 1]} : vector<8x512xf32> to vector<8x128xf32>
    %136 = math.tanh %135 : vector<8x128xf32>
    %137 = vector.extract_strided_slice %122 {offsets = [0, 384], sizes = [8, 128], strides = [1, 1]} : vector<8x512xf32> to vector<8x128xf32>
    %138 = arith.negf %137 : vector<8x128xf32>
    %139 = math.exp %138 : vector<8x128xf32>
    %cst_41 = arith.constant 1.000000e+00 : f32
    %140 = vector.broadcast %cst_41 : f32 to vector<8x128xf32>
    %141 = arith.addf %140, %139 : vector<8x128xf32>
    %142 = arith.divf %140, %141 : vector<8x128xf32>
    %143 = arith.mulf %134, %108 : vector<8x128xf32>
    %144 = arith.mulf %128, %136 : vector<8x128xf32>
    %145 = arith.addf %143, %144 : vector<8x128xf32>
    %146 = math.tanh %145 : vector<8x128xf32>
    %147 = arith.mulf %142, %146 : vector<8x128xf32>
    %148 = arith.truncf %147 : vector<8x128xf32> to vector<8x128xbf16>
    %149 = arith.index_cast %c3_i32 : i32 to index
    %c0_42 = arith.constant 0 : index
    %c0_43 = arith.constant 0 : index
    %150 = vector.load %arg3[%149, %c0_42, %c0_43] : memref<8x8x128xbf16, #tpu.memory_space<vmem>>, vector<1x8x128xbf16>
    %151 = vector.shape_cast %150 : vector<1x8x128xbf16> to vector<8x128xbf16>
    %152 = vector.shape_cast %148 : vector<8x128xbf16> to vector<1x8x128xbf16>
    tpu.vector_store %arg3[%149, %c0_42, %c0_43], %152 {strides = array<i32>} : memref<8x8x128xbf16, #tpu.memory_space<vmem>>, vector<1x8x128xbf16>,
    %c4_i32 = arith.constant 4 : i32
    %153 = arith.index_cast %c4_i32 : i32 to index
    %c0_44 = arith.constant 0 : index
    %c0_45 = arith.constant 0 : index
    %154 = vector.load %arg1[%153, %c0_44, %c0_45] : memref<8x8x512xf32, #tpu.memory_space<vmem>>, vector<1x8x512xf32>
    %155 = vector.shape_cast %154 : vector<1x8x512xf32> to vector<8x512xf32>
    %156 = arith.truncf %147 : vector<8x128xf32> to vector<8x128xbf16>
    %c0_46 = arith.constant 0 : index
    %c0_47 = arith.constant 0 : index
    %157 = vector.load %arg2[%c0_46, %c0_47] : memref<128x512xbf16, #tpu.memory_space<vmem>>, vector<128x512xbf16>
    %cst_48 = arith.constant dense<0.000000e+00> : vector<8x512xf32>
    %158 = tpu.matmul %156, %157, %cst_48 {dimension_numbers = #tpu.dot_dimension_numbers<[1], [0], [0], [1], [0, 0, 1, 1], [], []>} : vector<8x128xbf16>, vector<128x512xbf16>, vector<8x512xf32> -> vector<8x512xf32>
    %159 = arith.addf %155, %158 : vector<8x512xf32>
    %160 = vector.extract_strided_slice %159 {offsets = [0, 0], sizes = [8, 128], strides = [1, 1]} : vector<8x512xf32> to vector<8x128xf32>
    %161 = arith.negf %160 : vector<8x128xf32>
    %162 = math.exp %161 : vector<8x128xf32>
    %cst_49 = arith.constant 1.000000e+00 : f32
    %163 = vector.broadcast %cst_49 : f32 to vector<8x128xf32>
    %164 = arith.addf %163, %162 : vector<8x128xf32>
    %165 = arith.divf %163, %164 : vector<8x128xf32>
    %166 = vector.extract_strided_slice %159 {offsets = [0, 128], sizes = [8, 128], strides = [1, 1]} : vector<8x512xf32> to vector<8x128xf32>
    %167 = arith.negf %166 : vector<8x128xf32>
    %168 = math.exp %167 : vector<8x128xf32>
    %cst_50 = arith.constant 1.000000e+00 : f32
    %169 = vector.broadcast %cst_50 : f32 to vector<8x128xf32>
    %170 = arith.addf %169, %168 : vector<8x128xf32>
    %171 = arith.divf %169, %170 : vector<8x128xf32>
    %172 = vector.extract_strided_slice %159 {offsets = [0, 256], sizes = [8, 128], strides = [1, 1]} : vector<8x512xf32> to vector<8x128xf32>
    %173 = math.tanh %172 : vector<8x128xf32>
    %174 = vector.extract_strided_slice %159 {offsets = [0, 384], sizes = [8, 128], strides = [1, 1]} : vector<8x512xf32> to vector<8x128xf32>
    %175 = arith.negf %174 : vector<8x128xf32>
    %176 = math.exp %175 : vector<8x128xf32>
    %cst_51 = arith.constant 1.000000e+00 : f32
    %177 = vector.broadcast %cst_51 : f32 to vector<8x128xf32>
    %178 = arith.addf %177, %176 : vector<8x128xf32>
    %179 = arith.divf %177, %178 : vector<8x128xf32>
    %180 = arith.mulf %171, %145 : vector<8x128xf32>
    %181 = arith.mulf %165, %173 : vector<8x128xf32>
    %182 = arith.addf %180, %181 : vector<8x128xf32>
    %183 = math.tanh %182 : vector<8x128xf32>
    %184 = arith.mulf %179, %183 : vector<8x128xf32>
    %185 = arith.truncf %184 : vector<8x128xf32> to vector<8x128xbf16>
    %186 = arith.index_cast %c4_i32 : i32 to index
    %c0_52 = arith.constant 0 : index
    %c0_53 = arith.constant 0 : index
    %187 = vector.load %arg3[%186, %c0_52, %c0_53] : memref<8x8x128xbf16, #tpu.memory_space<vmem>>, vector<1x8x128xbf16>
    %188 = vector.shape_cast %187 : vector<1x8x128xbf16> to vector<8x128xbf16>
    %189 = vector.shape_cast %185 : vector<8x128xbf16> to vector<1x8x128xbf16>
    tpu.vector_store %arg3[%186, %c0_52, %c0_53], %189 {strides = array<i32>} : memref<8x8x128xbf16, #tpu.memory_space<vmem>>, vector<1x8x128xbf16>,
    %c5_i32 = arith.constant 5 : i32
    %190 = arith.index_cast %c5_i32 : i32 to index
    %c0_54 = arith.constant 0 : index
    %c0_55 = arith.constant 0 : index
    %191 = vector.load %arg1[%190, %c0_54, %c0_55] : memref<8x8x512xf32, #tpu.memory_space<vmem>>, vector<1x8x512xf32>
    %192 = vector.shape_cast %191 : vector<1x8x512xf32> to vector<8x512xf32>
    %193 = arith.truncf %184 : vector<8x128xf32> to vector<8x128xbf16>
    %c0_56 = arith.constant 0 : index
    %c0_57 = arith.constant 0 : index
    %194 = vector.load %arg2[%c0_56, %c0_57] : memref<128x512xbf16, #tpu.memory_space<vmem>>, vector<128x512xbf16>
    %cst_58 = arith.constant dense<0.000000e+00> : vector<8x512xf32>
    %195 = tpu.matmul %193, %194, %cst_58 {dimension_numbers = #tpu.dot_dimension_numbers<[1], [0], [0], [1], [0, 0, 1, 1], [], []>} : vector<8x128xbf16>, vector<128x512xbf16>, vector<8x512xf32> -> vector<8x512xf32>
    %196 = arith.addf %192, %195 : vector<8x512xf32>
    %197 = vector.extract_strided_slice %196 {offsets = [0, 0], sizes = [8, 128], strides = [1, 1]} : vector<8x512xf32> to vector<8x128xf32>
    %198 = arith.negf %197 : vector<8x128xf32>
    %199 = math.exp %198 : vector<8x128xf32>
    %cst_59 = arith.constant 1.000000e+00 : f32
    %200 = vector.broadcast %cst_59 : f32 to vector<8x128xf32>
    %201 = arith.addf %200, %199 : vector<8x128xf32>
    %202 = arith.divf %200, %201 : vector<8x128xf32>
    %203 = vector.extract_strided_slice %196 {offsets = [0, 128], sizes = [8, 128], strides = [1, 1]} : vector<8x512xf32> to vector<8x128xf32>
    %204 = arith.negf %203 : vector<8x128xf32>
    %205 = math.exp %204 : vector<8x128xf32>
    %cst_60 = arith.constant 1.000000e+00 : f32
    %206 = vector.broadcast %cst_60 : f32 to vector<8x128xf32>
    %207 = arith.addf %206, %205 : vector<8x128xf32>
    %208 = arith.divf %206, %207 : vector<8x128xf32>
    %209 = vector.extract_strided_slice %196 {offsets = [0, 256], sizes = [8, 128], strides = [1, 1]} : vector<8x512xf32> to vector<8x128xf32>
    %210 = math.tanh %209 : vector<8x128xf32>
    %211 = vector.extract_strided_slice %196 {offsets = [0, 384], sizes = [8, 128], strides = [1, 1]} : vector<8x512xf32> to vector<8x128xf32>
    %212 = arith.negf %211 : vector<8x128xf32>
    %213 = math.exp %212 : vector<8x128xf32>
    %cst_61 = arith.constant 1.000000e+00 : f32
    %214 = vector.broadcast %cst_61 : f32 to vector<8x128xf32>
    %215 = arith.addf %214, %213 : vector<8x128xf32>
    %216 = arith.divf %214, %215 : vector<8x128xf32>
    %217 = arith.mulf %208, %182 : vector<8x128xf32>
    %218 = arith.mulf %202, %210 : vector<8x128xf32>
    %219 = arith.addf %217, %218 : vector<8x128xf32>
    %220 = math.tanh %219 : vector<8x128xf32>
    %221 = arith.mulf %216, %220 : vector<8x128xf32>
    %222 = arith.truncf %221 : vector<8x128xf32> to vector<8x128xbf16>
    %223 = arith.index_cast %c5_i32 : i32 to index
    %c0_62 = arith.constant 0 : index
    %c0_63 = arith.constant 0 : index
    %224 = vector.load %arg3[%223, %c0_62, %c0_63] : memref<8x8x128xbf16, #tpu.memory_space<vmem>>, vector<1x8x128xbf16>
    %225 = vector.shape_cast %224 : vector<1x8x128xbf16> to vector<8x128xbf16>
    %226 = vector.shape_cast %222 : vector<8x128xbf16> to vector<1x8x128xbf16>
    tpu.vector_store %arg3[%223, %c0_62, %c0_63], %226 {strides = array<i32>} : memref<8x8x128xbf16, #tpu.memory_space<vmem>>, vector<1x8x128xbf16>,
    %c6_i32 = arith.constant 6 : i32
    %227 = arith.index_cast %c6_i32 : i32 to index
    %c0_64 = arith.constant 0 : index
    %c0_65 = arith.constant 0 : index
    %228 = vector.load %arg1[%227, %c0_64, %c0_65] : memref<8x8x512xf32, #tpu.memory_space<vmem>>, vector<1x8x512xf32>
    %229 = vector.shape_cast %228 : vector<1x8x512xf32> to vector<8x512xf32>
    %230 = arith.truncf %221 : vector<8x128xf32> to vector<8x128xbf16>
    %c0_66 = arith.constant 0 : index
    %c0_67 = arith.constant 0 : index
    %231 = vector.load %arg2[%c0_66, %c0_67] : memref<128x512xbf16, #tpu.memory_space<vmem>>, vector<128x512xbf16>
    %cst_68 = arith.constant dense<0.000000e+00> : vector<8x512xf32>
    %232 = tpu.matmul %230, %231, %cst_68 {dimension_numbers = #tpu.dot_dimension_numbers<[1], [0], [0], [1], [0, 0, 1, 1], [], []>} : vector<8x128xbf16>, vector<128x512xbf16>, vector<8x512xf32> -> vector<8x512xf32>
    %233 = arith.addf %229, %232 : vector<8x512xf32>
    %234 = vector.extract_strided_slice %233 {offsets = [0, 0], sizes = [8, 128], strides = [1, 1]} : vector<8x512xf32> to vector<8x128xf32>
    %235 = arith.negf %234 : vector<8x128xf32>
    %236 = math.exp %235 : vector<8x128xf32>
    %cst_69 = arith.constant 1.000000e+00 : f32
    %237 = vector.broadcast %cst_69 : f32 to vector<8x128xf32>
    %238 = arith.addf %237, %236 : vector<8x128xf32>
    %239 = arith.divf %237, %238 : vector<8x128xf32>
    %240 = vector.extract_strided_slice %233 {offsets = [0, 128], sizes = [8, 128], strides = [1, 1]} : vector<8x512xf32> to vector<8x128xf32>
    %241 = arith.negf %240 : vector<8x128xf32>
    %242 = math.exp %241 : vector<8x128xf32>
    %cst_70 = arith.constant 1.000000e+00 : f32
    %243 = vector.broadcast %cst_70 : f32 to vector<8x128xf32>
    %244 = arith.addf %243, %242 : vector<8x128xf32>
    %245 = arith.divf %243, %244 : vector<8x128xf32>
    %246 = vector.extract_strided_slice %233 {offsets = [0, 256], sizes = [8, 128], strides = [1, 1]} : vector<8x512xf32> to vector<8x128xf32>
    %247 = math.tanh %246 : vector<8x128xf32>
    %248 = vector.extract_strided_slice %233 {offsets = [0, 384], sizes = [8, 128], strides = [1, 1]} : vector<8x512xf32> to vector<8x128xf32>
    %249 = arith.negf %248 : vector<8x128xf32>
    %250 = math.exp %249 : vector<8x128xf32>
    %cst_71 = arith.constant 1.000000e+00 : f32
    %251 = vector.broadcast %cst_71 : f32 to vector<8x128xf32>
    %252 = arith.addf %251, %250 : vector<8x128xf32>
    %253 = arith.divf %251, %252 : vector<8x128xf32>
    %254 = arith.mulf %245, %219 : vector<8x128xf32>
    %255 = arith.mulf %239, %247 : vector<8x128xf32>
    %256 = arith.addf %254, %255 : vector<8x128xf32>
    %257 = math.tanh %256 : vector<8x128xf32>
    %258 = arith.mulf %253, %257 : vector<8x128xf32>
    %259 = arith.truncf %258 : vector<8x128xf32> to vector<8x128xbf16>
    %260 = arith.index_cast %c6_i32 : i32 to index
    %c0_72 = arith.constant 0 : index
    %c0_73 = arith.constant 0 : index
    %261 = vector.load %arg3[%260, %c0_72, %c0_73] : memref<8x8x128xbf16, #tpu.memory_space<vmem>>, vector<1x8x128xbf16>
    %262 = vector.shape_cast %261 : vector<1x8x128xbf16> to vector<8x128xbf16>
    %263 = vector.shape_cast %259 : vector<8x128xbf16> to vector<1x8x128xbf16>
    tpu.vector_store %arg3[%260, %c0_72, %c0_73], %263 {strides = array<i32>} : memref<8x8x128xbf16, #tpu.memory_space<vmem>>, vector<1x8x128xbf16>,
    %c7_i32 = arith.constant 7 : i32
    %264 = arith.index_cast %c7_i32 : i32 to index
    %c0_74 = arith.constant 0 : index
    %c0_75 = arith.constant 0 : index
    %265 = vector.load %arg1[%264, %c0_74, %c0_75] : memref<8x8x512xf32, #tpu.memory_space<vmem>>, vector<1x8x512xf32>
    %266 = vector.shape_cast %265 : vector<1x8x512xf32> to vector<8x512xf32>
    %267 = arith.truncf %258 : vector<8x128xf32> to vector<8x128xbf16>
    %c0_76 = arith.constant 0 : index
    %c0_77 = arith.constant 0 : index
    %268 = vector.load %arg2[%c0_76, %c0_77] : memref<128x512xbf16, #tpu.memory_space<vmem>>, vector<128x512xbf16>
    %cst_78 = arith.constant dense<0.000000e+00> : vector<8x512xf32>
    %269 = tpu.matmul %267, %268, %cst_78 {dimension_numbers = #tpu.dot_dimension_numbers<[1], [0], [0], [1], [0, 0, 1, 1], [], []>} : vector<8x128xbf16>, vector<128x512xbf16>, vector<8x512xf32> -> vector<8x512xf32>
    %270 = arith.addf %266, %269 : vector<8x512xf32>
    %271 = vector.extract_strided_slice %270 {offsets = [0, 0], sizes = [8, 128], strides = [1, 1]} : vector<8x512xf32> to vector<8x128xf32>
    %272 = arith.negf %271 : vector<8x128xf32>
    %273 = math.exp %272 : vector<8x128xf32>
    %cst_79 = arith.constant 1.000000e+00 : f32
    %274 = vector.broadcast %cst_79 : f32 to vector<8x128xf32>
    %275 = arith.addf %274, %273 : vector<8x128xf32>
    %276 = arith.divf %274, %275 : vector<8x128xf32>
    %277 = vector.extract_strided_slice %270 {offsets = [0, 128], sizes = [8, 128], strides = [1, 1]} : vector<8x512xf32> to vector<8x128xf32>
    %278 = arith.negf %277 : vector<8x128xf32>
    %279 = math.exp %278 : vector<8x128xf32>
    %cst_80 = arith.constant 1.000000e+00 : f32
    %280 = vector.broadcast %cst_80 : f32 to vector<8x128xf32>
    %281 = arith.addf %280, %279 : vector<8x128xf32>
    %282 = arith.divf %280, %281 : vector<8x128xf32>
    %283 = vector.extract_strided_slice %270 {offsets = [0, 256], sizes = [8, 128], strides = [1, 1]} : vector<8x512xf32> to vector<8x128xf32>
    %284 = math.tanh %283 : vector<8x128xf32>
    %285 = vector.extract_strided_slice %270 {offsets = [0, 384], sizes = [8, 128], strides = [1, 1]} : vector<8x512xf32> to vector<8x128xf32>
    %286 = arith.negf %285 : vector<8x128xf32>
    %287 = math.exp %286 : vector<8x128xf32>
    %cst_81 = arith.constant 1.000000e+00 : f32
    %288 = vector.broadcast %cst_81 : f32 to vector<8x128xf32>
    %289 = arith.addf %288, %287 : vector<8x128xf32>
    %290 = arith.divf %288, %289 : vector<8x128xf32>
    %291 = arith.mulf %282, %256 : vector<8x128xf32>
    %292 = arith.mulf %276, %284 : vector<8x128xf32>
    %293 = arith.addf %291, %292 : vector<8x128xf32>
    %294 = math.tanh %293 : vector<8x128xf32>
    %295 = arith.mulf %290, %294 : vector<8x128xf32>
    %296 = arith.truncf %295 : vector<8x128xf32> to vector<8x128xbf16>
    %297 = arith.index_cast %c7_i32 : i32 to index
    %c0_82 = arith.constant 0 : index
    %c0_83 = arith.constant 0 : index
    %298 = vector.load %arg3[%297, %c0_82, %c0_83] : memref<8x8x128xbf16, #tpu.memory_space<vmem>>, vector<1x8x128xbf16>
    %299 = vector.shape_cast %298 : vector<1x8x128xbf16> to vector<8x128xbf16>
    %300 = vector.shape_cast %296 : vector<8x128xbf16> to vector<1x8x128xbf16>
    tpu.vector_store %arg3[%297, %c0_82, %c0_83], %300 {strides = array<i32>} : memref<8x8x128xbf16, #tpu.memory_space<vmem>>, vector<1x8x128xbf16>,
    %c8_i32 = arith.constant 8 : i32
    %c0_84 = arith.constant 0 : index
    %c0_85 = arith.constant 0 : index
    %301 = vector.load %arg4[%c0_84, %c0_85] : memref<8x128xf32, #tpu.memory_space<vmem>>, vector<8x128xf32>
    tpu.vector_store %arg4[%c0_84, %c0_85], %295 {strides = array<i32>} : memref<8x128xf32, #tpu.memory_space<vmem>>, vector<8x128xf32>,
    %c0_86 = arith.constant 0 : index
    %c0_87 = arith.constant 0 : index
    %302 = vector.load %arg5[%c0_86, %c0_87] : memref<8x128xf32, #tpu.memory_space<vmem>>, vector<8x128xf32>
    tpu.vector_store %arg5[%c0_86, %c0_87], %293 {strides = array<i32>} : memref<8x128xf32, #tpu.memory_space<vmem>>, vector<8x128xf32>,
    return
  }
  func.func @transform_0(%arg0: i32) -> (i32, i32, i32) {
    %c0_i32 = arith.constant 0 : i32
    %c0_i32_0 = arith.constant 0 : i32
    %c0_i32_1 = arith.constant 0 : i32
    return %arg0, %c0_i32, %c0_i32_0 : i32, i32, i32
  }
  func.func @transform_1(%arg0: i32) -> (i32, i32) {
    %c0_i32 = arith.constant 0 : i32
    %c0_i32_0 = arith.constant 0 : i32
    %c0_i32_1 = arith.constant 0 : i32
    return %c0_i32, %c0_i32_0 : i32, i32
  }
  func.func @transform_2(%arg0: i32) -> (i32, i32, i32) {
    %c0_i32 = arith.constant 0 : i32
    %c0_i32_0 = arith.constant 0 : i32
    %c0_i32_1 = arith.constant 0 : i32
    return %arg0, %c0_i32, %c0_i32_0 : i32, i32, i32
  }
}

module attributes {stable_mosaic.version = 11 : i64} {
  func.func @head_kernel(%arg0: i32, %arg1: i32, %arg2: memref<64x128xbf16, #tpu.memory_space<vmem>>, %arg3: memref<128x128xbf16, #tpu.memory_space<vmem>>, %arg4: memref<1x128xf32, #tpu.memory_space<vmem>>, %arg5: memref<128x512xbf16, #tpu.memory_space<vmem>>, %arg6: memref<1x512xf32, #tpu.memory_space<vmem>>, %arg7: memref<64x1xi32, #tpu.memory_space<vmem>>, %arg8: memref<64x1xf32, #tpu.memory_space<vmem>>, %arg9: memref<64x128xbf16, #tpu.memory_space<vmem>>, %arg10: memref<64x1xf32, #tpu.memory_space<vmem>>, %arg11: memref<64x1xf32, #tpu.memory_space<vmem>>, %arg12: memref<64x1xf32, #tpu.memory_space<vmem>>) attributes {dimension_semantics = [#tpu.dimension_semantics<parallel>, #tpu.dimension_semantics<arbitrary>], iteration_bounds = array<i64: 2, 4>, scalar_prefetch = 0 : i64, scratch_operands = 4 : i64, tpu.core_type = #tpu.core_type<tc>, window_params = [{transform_indices = @transform_0, window_bounds = array<i64: 64, 128>}, {pipeline_mode = #tpu.pipeline_mode<synchronous>, transform_indices = @transform_1, window_bounds = array<i64: 128, 128>}, {pipeline_mode = #tpu.pipeline_mode<synchronous>, transform_indices = @transform_2, window_bounds = array<i64: 1, 128>}, {transform_indices = @transform_3, window_bounds = array<i64: 128, 512>}, {transform_indices = @transform_4, window_bounds = array<i64: 1, 512>}, {transform_indices = @transform_5, window_bounds = array<i64: 64, 1>}, {transform_indices = @transform_6, window_bounds = array<i64: 64, 1>}]} {
    %c0_i32 = arith.constant 0 : i32
    %0 = arith.cmpi eq, %arg1, %c0_i32 : i32
    %1 = arith.extui %0 : i1 to i32
    %c0_i32_0 = arith.constant 0 : i32
    %2 = arith.cmpi ne, %1, %c0_i32_0 : i32
    scf.if %2 {
      %c0_25 = arith.constant 0 : index
      %c0_26 = arith.constant 0 : index
      %42 = vector.load %arg2[%c0_25, %c0_26] : memref<64x128xbf16, #tpu.memory_space<vmem>>, vector<64x128xbf16>
      %c0_27 = arith.constant 0 : index
      %c0_28 = arith.constant 0 : index
      %43 = vector.load %arg3[%c0_27, %c0_28] : memref<128x128xbf16, #tpu.memory_space<vmem>>, vector<128x128xbf16>
      %cst_29 = arith.constant dense<0.000000e+00> : vector<64x128xf32>
      %44 = tpu.matmul %42, %43, %cst_29 {dimension_numbers = #tpu.dot_dimension_numbers<[1], [0], [0], [1], [0, 0, 1, 1], [], []>} : vector<64x128xbf16>, vector<128x128xbf16>, vector<64x128xf32> -> vector<64x128xf32>
      %c0_30 = arith.constant 0 : index
      %c0_31 = arith.constant 0 : index
      %45 = vector.load %arg4[%c0_30, %c0_31] : memref<1x128xf32, #tpu.memory_space<vmem>>, vector<1x128xf32>
      %46 = vector.broadcast %45 : vector<1x128xf32> to vector<64x128xf32>
      %47 = arith.addf %44, %46 : vector<64x128xf32>
      %cst_32 = arith.constant 0.000000e+00 : f32
      %48 = vector.broadcast %cst_32 : f32 to vector<64x128xf32>
      %49 = arith.maximumf %47, %48 : vector<64x128xf32>
      %50 = arith.truncf %49 : vector<64x128xf32> to vector<64x128xbf16>
      %c0_33 = arith.constant 0 : index
      %c0_34 = arith.constant 0 : index
      %51 = vector.load %arg9[%c0_33, %c0_34] : memref<64x128xbf16, #tpu.memory_space<vmem>>, vector<64x128xbf16>
      tpu.vector_store %arg9[%c0_33, %c0_34], %50 {strides = array<i32>} : memref<64x128xbf16, #tpu.memory_space<vmem>>, vector<64x128xbf16>,
      %cst_35 = arith.constant 0xFF800000 : f32
      %52 = vector.broadcast %cst_35 : f32 to vector<64x1xf32>
      %c0_36 = arith.constant 0 : index
      %c0_37 = arith.constant 0 : index
      %53 = vector.load %arg10[%c0_36, %c0_37] : memref<64x1xf32, #tpu.memory_space<vmem>>, vector<64x1xf32>
      tpu.vector_store %arg10[%c0_36, %c0_37], %52 {strides = array<i32>} : memref<64x1xf32, #tpu.memory_space<vmem>>, vector<64x1xf32>,
      %cst_38 = arith.constant 0.000000e+00 : f32
      %54 = vector.broadcast %cst_38 : f32 to vector<64x1xf32>
      %c0_39 = arith.constant 0 : index
      %c0_40 = arith.constant 0 : index
      %55 = vector.load %arg11[%c0_39, %c0_40] : memref<64x1xf32, #tpu.memory_space<vmem>>, vector<64x1xf32>
      tpu.vector_store %arg11[%c0_39, %c0_40], %54 {strides = array<i32>} : memref<64x1xf32, #tpu.memory_space<vmem>>, vector<64x1xf32>,
      %cst_41 = arith.constant 0.000000e+00 : f32
      %56 = vector.broadcast %cst_41 : f32 to vector<64x1xf32>
      %c0_42 = arith.constant 0 : index
      %c0_43 = arith.constant 0 : index
      %57 = vector.load %arg12[%c0_42, %c0_43] : memref<64x1xf32, #tpu.memory_space<vmem>>, vector<64x1xf32>
      tpu.vector_store %arg12[%c0_42, %c0_43], %56 {strides = array<i32>} : memref<64x1xf32, #tpu.memory_space<vmem>>, vector<64x1xf32>,
    } else {
    }
    %c0 = arith.constant 0 : index
    %c0_1 = arith.constant 0 : index
    %3 = vector.load %arg9[%c0, %c0_1] : memref<64x128xbf16, #tpu.memory_space<vmem>>, vector<64x128xbf16>
    %c0_2 = arith.constant 0 : index
    %c0_3 = arith.constant 0 : index
    %4 = vector.load %arg5[%c0_2, %c0_3] : memref<128x512xbf16, #tpu.memory_space<vmem>>, vector<128x512xbf16>
    %cst = arith.constant dense<0.000000e+00> : vector<64x512xf32>
    %5 = tpu.matmul %3, %4, %cst {dimension_numbers = #tpu.dot_dimension_numbers<[1], [0], [0], [1], [0, 0, 1, 1], [], []>} : vector<64x128xbf16>, vector<128x512xbf16>, vector<64x512xf32> -> vector<64x512xf32>
    %c0_4 = arith.constant 0 : index
    %c0_5 = arith.constant 0 : index
    %6 = vector.load %arg6[%c0_4, %c0_5] : memref<1x512xf32, #tpu.memory_space<vmem>>, vector<1x512xf32>
    %7 = vector.broadcast %6 : vector<1x512xf32> to vector<64x512xf32>
    %8 = arith.addf %5, %7 : vector<64x512xf32>
    %c0_6 = arith.constant 0 : index
    %c0_7 = arith.constant 0 : index
    %9 = vector.load %arg10[%c0_6, %c0_7] : memref<64x1xf32, #tpu.memory_space<vmem>>, vector<64x1xf32>
    %cst_8 = arith.constant dense<0xFF800000> : vector<64xf32>
    %10 = vector.multi_reduction <maximumf>, %8, %cst_8 [1] : vector<64x512xf32> to vector<64xf32>
    %11 = vector.shape_cast %10 : vector<64xf32> to vector<64x1xf32>
    %12 = arith.maximumf %9, %11 : vector<64x1xf32>
    %13 = arith.subf %9, %12 : vector<64x1xf32>
    %14 = math.exp %13 : vector<64x1xf32>
    %c0_9 = arith.constant 0 : index
    %c0_10 = arith.constant 0 : index
    %15 = vector.load %arg11[%c0_9, %c0_10] : memref<64x1xf32, #tpu.memory_space<vmem>>, vector<64x1xf32>
    %16 = arith.mulf %14, %15 : vector<64x1xf32>
    %17 = vector.broadcast %12 : vector<64x1xf32> to vector<64x512xf32>
    %18 = arith.subf %8, %17 : vector<64x512xf32>
    %19 = math.exp %18 : vector<64x512xf32>
    %cst_11 = arith.constant dense<0.000000e+00> : vector<64xf32>
    %20 = vector.multi_reduction <add>, %19, %cst_11 [1] : vector<64x512xf32> to vector<64xf32>
    %21 = vector.shape_cast %20 : vector<64xf32> to vector<64x1xf32>
    %22 = arith.addf %16, %21 : vector<64x1xf32>
    %c0_12 = arith.constant 0 : index
    %c0_13 = arith.constant 0 : index
    %23 = vector.load %arg11[%c0_12, %c0_13] : memref<64x1xf32, #tpu.memory_space<vmem>>, vector<64x1xf32>
    tpu.vector_store %arg11[%c0_12, %c0_13], %22 {strides = array<i32>} : memref<64x1xf32, #tpu.memory_space<vmem>>, vector<64x1xf32>,
    %c0_14 = arith.constant 0 : index
    %c0_15 = arith.constant 0 : index
    %24 = vector.load %arg10[%c0_14, %c0_15] : memref<64x1xf32, #tpu.memory_space<vmem>>, vector<64x1xf32>
    tpu.vector_store %arg10[%c0_14, %c0_15], %12 {strides = array<i32>} : memref<64x1xf32, #tpu.memory_space<vmem>>, vector<64x1xf32>,
    %25 = tpu.iota {dimensions = array<i32: 1>} : vector<64x512xi32>
    %c512_i32 = arith.constant 512 : i32
    %26 = arith.muli %arg1, %c512_i32 : i32
    %27 = vector.broadcast %26 : i32 to vector<64x512xi32>
    %28 = arith.addi %25, %27 : vector<64x512xi32>
    %c0_16 = arith.constant 0 : index
    %c0_17 = arith.constant 0 : index
    %29 = vector.load %arg7[%c0_16, %c0_17] : memref<64x1xi32, #tpu.memory_space<vmem>>, vector<64x1xi32>
    %30 = vector.broadcast %29 : vector<64x1xi32> to vector<64x512xi32>
    %31 = arith.cmpi eq, %28, %30 : vector<64x512xi32>
    %c0_18 = arith.constant 0 : index
    %c0_19 = arith.constant 0 : index
    %32 = vector.load %arg12[%c0_18, %c0_19] : memref<64x1xf32, #tpu.memory_space<vmem>>, vector<64x1xf32>
    %cst_20 = arith.constant 0.000000e+00 : f32
    %33 = vector.broadcast %cst_20 : f32 to vector<64x512xf32>
    %34 = arith.select %31, %8, %33 : vector<64x512xi1>, vector<64x512xf32>
    %cst_21 = arith.constant dense<0.000000e+00> : vector<64xf32>
    %35 = vector.multi_reduction <add>, %34, %cst_21 [1] : vector<64x512xf32> to vector<64xf32>
    %36 = vector.shape_cast %35 : vector<64xf32> to vector<64x1xf32>
    %37 = arith.addf %32, %36 : vector<64x1xf32>
    %c0_22 = arith.constant 0 : index
    %c0_23 = arith.constant 0 : index
    %38 = vector.load %arg12[%c0_22, %c0_23] : memref<64x1xf32, #tpu.memory_space<vmem>>, vector<64x1xf32>
    tpu.vector_store %arg12[%c0_22, %c0_23], %37 {strides = array<i32>} : memref<64x1xf32, #tpu.memory_space<vmem>>, vector<64x1xf32>,
    %c3_i32 = arith.constant 3 : i32
    %39 = arith.cmpi eq, %arg1, %c3_i32 : i32
    %40 = arith.extui %39 : i1 to i32
    %c0_i32_24 = arith.constant 0 : i32
    %41 = arith.cmpi ne, %40, %c0_i32_24 : i32
    scf.if %41 {
      %c0_25 = arith.constant 0 : index
      %c0_26 = arith.constant 0 : index
      %42 = vector.load %arg10[%c0_25, %c0_26] : memref<64x1xf32, #tpu.memory_space<vmem>>, vector<64x1xf32>
      %c0_27 = arith.constant 0 : index
      %c0_28 = arith.constant 0 : index
      %43 = vector.load %arg11[%c0_27, %c0_28] : memref<64x1xf32, #tpu.memory_space<vmem>>, vector<64x1xf32>
      %44 = math.log %43 : vector<64x1xf32>
      %45 = arith.addf %42, %44 : vector<64x1xf32>
      %c0_29 = arith.constant 0 : index
      %c0_30 = arith.constant 0 : index
      %46 = vector.load %arg12[%c0_29, %c0_30] : memref<64x1xf32, #tpu.memory_space<vmem>>, vector<64x1xf32>
      %47 = arith.subf %45, %46 : vector<64x1xf32>
      %c0_31 = arith.constant 0 : index
      %c0_32 = arith.constant 0 : index
      %48 = vector.load %arg8[%c0_31, %c0_32] : memref<64x1xf32, #tpu.memory_space<vmem>>, vector<64x1xf32>
      tpu.vector_store %arg8[%c0_31, %c0_32], %47 {strides = array<i32>} : memref<64x1xf32, #tpu.memory_space<vmem>>, vector<64x1xf32>,
    } else {
    }
    return
  }
  func.func @transform_0(%arg0: i32, %arg1: i32) -> (i32, i32) {
    %c0_i32 = arith.constant 0 : i32
    %c0_i32_0 = arith.constant 0 : i32
    return %arg0, %c0_i32 : i32, i32
  }
  func.func @transform_1(%arg0: i32, %arg1: i32) -> (i32, i32) {
    %c0_i32 = arith.constant 0 : i32
    %c0_i32_0 = arith.constant 0 : i32
    %c0_i32_1 = arith.constant 0 : i32
    return %c0_i32, %c0_i32_0 : i32, i32
  }
  func.func @transform_2(%arg0: i32, %arg1: i32) -> (i32, i32) {
    %c0_i32 = arith.constant 0 : i32
    %c0_i32_0 = arith.constant 0 : i32
    %c0_i32_1 = arith.constant 0 : i32
    return %c0_i32, %c0_i32_0 : i32, i32
  }
  func.func @transform_3(%arg0: i32, %arg1: i32) -> (i32, i32) {
    %c0_i32 = arith.constant 0 : i32
    %c0_i32_0 = arith.constant 0 : i32
    return %c0_i32, %arg1 : i32, i32
  }
  func.func @transform_4(%arg0: i32, %arg1: i32) -> (i32, i32) {
    %c0_i32 = arith.constant 0 : i32
    %c0_i32_0 = arith.constant 0 : i32
    return %c0_i32, %arg1 : i32, i32
  }
  func.func @transform_5(%arg0: i32, %arg1: i32) -> (i32, i32) {
    %c0_i32 = arith.constant 0 : i32
    %c0_i32_0 = arith.constant 0 : i32
    return %arg0, %c0_i32 : i32, i32
  }
  func.func @transform_6(%arg0: i32, %arg1: i32) -> (i32, i32) {
    %c0_i32 = arith.constant 0 : i32
    %c0_i32_0 = arith.constant 0 : i32
    return %arg0, %c0_i32 : i32, i32
  }
}

</mosaic_0001>

<llo_original>
// kernel: lm_forward.3
$region0: #{lm_forward.3}
  #allocation0 [shape = 'u32[]', space=smem, size = 0x4, offset = 0x4, fixed_abs, tag = 'smem constant byte address 0x4 - core index']
  #allocation1 [shape = 'u32[144,128]{1,0:T(1,128)}', space=vmem, size = 0x12000, scoped, tag = 'internal scratch']
  #allocation2 [shape = 'bf16[64,128]{1,0:T(8,128)(2,1)}', space=vmem, size = 0x4000, scoped, tag = 'scratch operand']
  #allocation3 [shape = 'f32[64,1]{1,0:T(8,128)}', space=vmem, size = 0x8000, scoped, tag = 'scratch operand']
  #allocation4 [shape = 'f32[64,1]{1,0:T(8,128)}', space=vmem, size = 0x8000, scoped, tag = 'scratch operand']
  #allocation5 [shape = 'f32[64,1]{1,0:T(8,128)}', space=vmem, size = 0x8000, scoped, tag = 'scratch operand']
  %s0 = inlined_call_operand.vmem [shape: bf16[128,128], index: 0, kind: input, shape index: {}]
  %s1 = inlined_call_operand.vmem [shape: bf16[128,128], index: 1, kind: input, shape index: {}]
  %s2 = inlined_call_operand.vmem [shape: f32[1,128], index: 2, kind: input, shape index: {}]
  %s3 = inlined_call_operand.vmem [shape: bf16[128,2048], index: 3, kind: input, shape index: {}]
  %s4 = inlined_call_operand.vmem [shape: f32[1,2048], index: 4, kind: input, shape index: {}]
  %s5 = inlined_call_operand.vmem [shape: s32[128,1], index: 5, kind: input, shape index: {}]
  %s6 = inlined_call_operand.vmem [shape: f32[128,1], index: 6, kind: output, shape index: {}]
  %s7 = sld [smem:[#allocation0]]
  $region88: #{lm_forward.3} parent=0
    _
  %s9 = ssub.s32 1, %s7
  %s10 = scalar_select 0, %s9, %s7
  $region1: #{lm_forward.3} parent=0
    #allocation6 [shape = 'u8[262144]{0}', space=vmem, size = 0x40000, scoped, tag = 'input window, operand 3']
    loop: start=0, step=1, limit=10
    $region2: #{lm_forward.3} parent=1 // loop_pre_header
      _
    $region3: #{lm_forward.3} parent=1 // loop_header
      %s12 = sphi 0, %s16
      %p13 = scmp.ge.s32.totalorder %s12, 10
      %s19 = sphi 0, %s31
      %s20 = sphi 0, %s27
      %s21 = sphi 0, %s19
      %s22 = sphi 0, %s20
      %s23 = sphi 0, %s21
      %s24 = sphi 0, %s22
      %s34 = sphi 0, %s36
      %s37 = sphi 0, %s34
      %s38 = sphi 0, %s37
      %s54 = sphi 0, %s38
      %s58 = sphi 0, %s58
      %s60 = sphi 0, %s58
      %s61 = sphi 0, %s60
      %s75 = sphi 0, %s61
      %s79 = sphi 0, %s79
      %s81 = sphi 0, %s79
      %s82 = sphi 0, %s81
      %s96 = sphi 0, %s82
      %s102 = sphi 0, %s104
      %s105 = sphi 0, %s102
      %s106 = sphi 0, %s105
      %s122 = sphi 0, %s106
      %s128 = sphi 0, %s130
      %s131 = sphi 0, %s128
      %s132 = sphi 0, %s131
      %s148 = sphi 0, %s132
      %s154 = sphi 0, %s156
      %s157 = sphi 0, %s154
      %s158 = sphi 0, %s157
      %s174 = sphi 0, %s158
      %s180 = sphi 0, %s182
      %s183 = sphi 0, %s180
      %s184 = sphi 0, %s183
      %s200 = sphi 0, %s184
    $region4: #{lm_forward.3} parent=1 // loop_header_branch
      %15 = sbr.rel (%p13) target = $region8
    $region5: #{lm_forward.3} parent=1 // loop_body
      %s17 = ssub.s32 %s12, 1
      %s18 = ssub.s32 %s12, 2
      %s25 = sadd.s32 1, %s20
      %p26 = scmp.ge.s32.totalorder %s25, 4
      %s27 = scalar_select %p26, 0, %s25
      %s28 = sadd.s32 1, %s19
      %s29 = scalar_select %p26, %s28, %s19
      %p30 = scmp.ge.s32.totalorder %s29, 2
      %s31 = scalar_select %p30, 0, %s29
      %s32 = ssub.s32 %s19, %s31
      %p33 = scmp.eq.s32.totalorder %s32, 0
      %s35 = sadd.s32 %s34, 1
      %s36 = scalar_select %p33, %s34, %s35
      %p39 = pneg %p33
      %p40 = scmp.eq.s32.totalorder %s12, 7
      %p41 = por %p39, %p40
      %p42 = scmp.ne.s32.totalorder %s34, %s37
      %p43 = scmp.eq.s32.totalorder %s12, 0
      %p44 = por %p42, %p43
      %p45 = scmp.ne.s32.totalorder %s34, %s37
      %p46 = scmp.eq.s32.totalorder %s17, 7
      %p47 = por %p45, %p46
      %p48 = scmp.ne.s32.totalorder %s37, %s38
      %p49 = scmp.eq.s32.totalorder %s17, 0
      %p50 = por %p48, %p49
      %p51 = scmp.ne.s32.totalorder %s37, %s38
      %p52 = scmp.eq.s32.totalorder %s18, 7
      %p53 = por %p51, %p52
      %p55 = scmp.ne.s32.totalorder %s38, %s54
      %p56 = scmp.eq.s32.totalorder %s18, 0
      %p57 = por %p55, %p56
      %s59 = sadd.s32 %s58, 1
      %p62 = scmp.eq.s32.totalorder %s12, 7
      %p63 = scmp.ne.s32.totalorder %s58, %s60
      %p64 = scmp.eq.s32.totalorder %s12, 0
      %p65 = por %p63, %p64
      %p66 = scmp.ne.s32.totalorder %s58, %s60
      %p67 = scmp.eq.s32.totalorder %s17, 7
      %p68 = por %p66, %p67
      %p69 = scmp.ne.s32.totalorder %s60, %s61
      %p70 = scmp.eq.s32.totalorder %s17, 0
      %p71 = por %p69, %p70
      %p72 = scmp.ne.s32.totalorder %s60, %s61
      %p73 = scmp.eq.s32.totalorder %s18, 7
      %p74 = por %p72, %p73
      %p76 = scmp.ne.s32.totalorder %s61, %s75
      %p77 = scmp.eq.s32.totalorder %s18, 0
      %p78 = por %p76, %p77
      %s80 = sadd.s32 %s79, 1
      %p83 = scmp.eq.s32.totalorder %s12, 7
      %p84 = scmp.ne.s32.totalorder %s79, %s81
      %p85 = scmp.eq.s32.totalorder %s12, 0
      %p86 = por %p84, %p85
      %p87 = scmp.ne.s32.totalorder %s79, %s81
      %p88 = scmp.eq.s32.totalorder %s17, 7
      %p89 = por %p87, %p88
      %p90 = scmp.ne.s32.totalorder %s81, %s82
      %p91 = scmp.eq.s32.totalorder %s17, 0
      %p92 = por %p90, %p91
      %p93 = scmp.ne.s32.totalorder %s81, %s82
      %p94 = scmp.eq.s32.totalorder %s18, 7
      %p95 = por %p93, %p94
      %p97 = scmp.ne.s32.totalorder %s82, %s96
      %p98 = scmp.eq.s32.totalorder %s18, 0
      %p99 = por %p97, %p98
      %s100 = ssub.s32 %s20, %s27
      %p101 = scmp.eq.s32.totalorder %s100, 0
      %s103 = sadd.s32 %s102, 1
      %s104 = scalar_select %p101, %s102, %s103
      %p107 = pneg %p101
      %p108 = scmp.eq.s32.totalorder %s12, 7
      %p109 = por %p107, %p108
      %p110 = scmp.ne.s32.totalorder %s102, %s105
      %p111 = scmp.eq.s32.totalorder %s12, 0
      %p112 = por %p110, %p111
      %p113 = scmp.ne.s32.totalorder %s102, %s105
      %p114 = scmp.eq.s32.totalorder %s17, 7
      %p115 = por %p113, %p114
      %p116 = scmp.ne.s32.totalorder %s105, %s106
      %p117 = scmp.eq.s32.totalorder %s17, 0
      %p118 = por %p116, %p117
      %p119 = scmp.ne.s32.totalorder %s105, %s106
      %p120 = scmp.eq.s32.totalorder %s18, 7
      %p121 = por %p119, %p120
      %p123 = scmp.ne.s32.totalorder %s106, %s122
      %p124 = scmp.eq.s32.totalorder %s18, 0
      %p125 = por %p123, %p124
      %s126 = ssub.s32 %s20, %s27
      %p127 = scmp.eq.s32.totalorder %s126, 0
      %s129 = sadd.s32 %s128, 1
      %s130 = scalar_select %p127, %s128, %s129
      %p133 = pneg %p127
      %p134 = scmp.eq.s32.totalorder %s12, 7
      %p135 = por %p133, %p134
      %p136 = scmp.ne.s32.totalorder %s128, %s131
      %p137 = scmp.eq.s32.totalorder %s12, 0
      %p138 = por %p136, %p137
      %p139 = scmp.ne.s32.totalorder %s128, %s131
      %p140 = scmp.eq.s32.totalorder %s17, 7
      %p141 = por %p139, %p140
      %p142 = scmp.ne.s32.totalorder %s131, %s132
      %p143 = scmp.eq.s32.totalorder %s17, 0
      %p144 = por %p142, %p143
      %p145 = scmp.ne.s32.totalorder %s131, %s132
      %p146 = scmp.eq.s32.totalorder %s18, 7
      %p147 = por %p145, %p146
      %p149 = scmp.ne.s32.totalorder %s132, %s148
      %p150 = scmp.eq.s32.totalorder %s18, 0
      %p151 = por %p149, %p150
      %s152 = ssub.s32 %s19, %s31
      %p153 = scmp.eq.s32.totalorder %s152, 0
      %s155 = sadd.s32 %s154, 1
      %s156 = scalar_select %p153, %s154, %s155
      %p159 = pneg %p153
      %p160 = scmp.eq.s32.totalorder %s12, 7
      %p161 = por %p159, %p160
      %p162 = scmp.ne.s32.totalorder %s154, %s157
      %p163 = scmp.eq.s32.totalorder %s12, 0
      %p164 = por %p162, %p163
      %p165 = scmp.ne.s32.totalorder %s154, %s157
      %p166 = scmp.eq.s32.totalorder %s17, 7
      %p167 = por %p165, %p166
      %p168 = scmp.ne.s32.totalorder %s157, %s158
      %p169 = scmp.eq.s32.totalorder %s17, 0
      %p170 = por %p168, %p169
      %p171 = scmp.ne.s32.totalorder %s157, %s158
      %p172 = scmp.eq.s32.totalorder %s18, 7
      %p173 = por %p171, %p172
      %p175 = scmp.ne.s32.totalorder %s158, %s174
      %p176 = scmp.eq.s32.totalorder %s18, 0
      %p177 = por %p175, %p176
      %s178 = ssub.s32 %s19, %s31
      %p179 = scmp.eq.s32.totalorder %s178, 0
      %s181 = sadd.s32 %s180, 1
      %s182 = scalar_select %p179, %s180, %s181
      %p185 = pneg %p179
      %p186 = scmp.eq.s32.totalorder %s12, 7
      %p187 = por %p185, %p186
      %p188 = scmp.ne.s32.totalorder %s180, %s183
      %p189 = scmp.eq.s32.totalorder %s12, 0
      %p190 = por %p188, %p189
      %p191 = scmp.ne.s32.totalorder %s180, %s183
      %p192 = scmp.eq.s32.totalorder %s17, 7
      %p193 = por %p191, %p192
      %p194 = scmp.ne.s32.totalorder %s183, %s184
      %p195 = scmp.eq.s32.totalorder %s17, 0
      %p196 = por %p194, %p195
      %p197 = scmp.ne.s32.totalorder %s183, %s184
      %p198 = scmp.eq.s32.totalorder %s18, 7
      %p199 = por %p197, %p198
      %p201 = scmp.ne.s32.totalorder %s184, %s200
      %p202 = scmp.eq.s32.totalorder %s18, 0
      %p203 = por %p201, %p202
      %p204 = scmp.le.s32.totalorder 1, %s12
      %p205 = scmp.lt.s32.totalorder %s12, 9
      %p206 = pnand %p204, %p205
      %p207 = pneg %p206
      // Predicated region
      $region9: #{lm_forward.3} parent=5 // pred_check
        _
      $region10: #{lm_forward.3} parent=5 // pred_check_branch
        %209 = sbr.rel (%p206) target = $region12
      $region11: #{lm_forward.3} parent=5 // pred_region
        %s210 = ssub.s32 %s12, 1
        // Predicated region
        $region13: #{lm_forward.3} parent=11 // pred_check
          %p211 = pneg %p71
        $region14: #{lm_forward.3} parent=11 // pred_check_branch
          %213 = sbr.rel (%p211) target = $region16
        $region15: #{lm_forward.3} parent=11 // pred_region
          _
        $region16: #{lm_forward.3} parent=11 // pred_fallthru
          _
        // Predicated region
        $region17: #{lm_forward.3} parent=11 // pred_check
          %p214 = pneg %p92
        $region18: #{lm_forward.3} parent=11 // pred_check_branch
          %216 = sbr.rel (%p214) target = $region20
        $region19: #{lm_forward.3} parent=11 // pred_region
          _
        $region20: #{lm_forward.3} parent=11 // pred_fallthru
          _
      $region12: #{lm_forward.3} parent=5 // pred_fallthru
        _
      %p217 = scmp.lt.s32.totalorder %s12, 8
      // Predicated region
      $region21: #{lm_forward.3} parent=5 // pred_check
        %p218 = pneg %p217
      $region22: #{lm_forward.3} parent=5 // pred_check_branch
        %220 = sbr.rel (%p218) target = $region24
      $region23: #{lm_forward.3} parent=5 // pred_region
        // Predicated region
        $region25: #{lm_forward.3} parent=23 // pred_check
          %p221 = pneg %p44
        $region26: #{lm_forward.3} parent=23 // pred_check_branch
          %223 = sbr.rel (%p221) target = $region28
        $region27: #{lm_forward.3} parent=23 // pred_region
          %s224 = smul.u32 8, %s19
          %p225 = scmp.lt.s32.totalorder %s224, 15
          %s226 = scalar_select %p225, %s224, 15
          %s227 = smul.addr %s226, 4
          %s228 = scalar_lea.vmem %s0, %s227
          %s229 = smul.u32 8, %s19
        $region28: #{lm_forward.3} parent=23 // pred_fallthru
          _
        // Predicated region
        $region29: #{lm_forward.3} parent=23 // pred_check
          %p230 = pneg %p112
        $region30: #{lm_forward.3} parent=23 // pred_check_branch
          %232 = sbr.rel (%p230) target = $region32
        $region31: #{lm_forward.3} parent=23 // pred_region
          %s233 = sand.u32 %s102, 1
          %s234 = sand.u32 %s102, 1
          %s235 = smul.addr %s234, 256
          %s236 = scalar_lea.vmem [#allocation6], %s235
          %s237 = smul.u32 4, %s20
          %s238 = smul.addr %s237, 4
          %s239 = scalar_lea.vmem %s3, %s238
          // Predicated region
          $region33: #{lm_forward.3} parent=31 // pred_check
            _
          $region34: #{lm_forward.3} parent=31 // pred_check_branch
            %241 = sbr.rel (0) target = $region36
          $region35: #{lm_forward.3} parent=31 // pred_region
            // Predicated region
            $region37: #{lm_forward.3} parent=35 // pred_check
              _
            $region38: #{lm_forward.3} parent=35 // pred_check_branch
              %243 = sbr.rel (0) target = $region40
            $region39: #{lm_forward.3} parent=35 // pred_region
              loop: start=0, step=1, limit=1
              $region41: #{lm_forward.3} parent=39 // loop_pre_header
                _
              $region42: #{lm_forward.3} parent=39 // loop_header
                %s245 = sphi 0, %s249
                %p246 = scmp.ge.s32.totalorder %s245, 1
                %s250 = sphi %s239, %s239
                %s251 = sphi %s236, %s236
              $region43: #{lm_forward.3} parent=39 // loop_header_branch
                %248 = sbr.rel (%p246) target = $region47
              $region44: #{lm_forward.3} parent=39 // loop_body
                %v252 = vld [vmem:[%s250] sm:$0xff]
                %253 = vst [vmem:[%s251] sm:$0xff] %v252
                %v254 = vld [vmem:[%s250 + $0x8] sm:$0xff]
                %255 = vst [vmem:[%s251 + $0x8] sm:$0xff] %v254
                %v256 = vld [vmem:[%s250 + $0x40] sm:$0xff]
                %257 = vst [vmem:[%s251 + $0x10] sm:$0xff] %v256
                %v258 = vld [vmem:[%s250 + $0x48] sm:$0xff]
                %259 = vst [vmem:[%s251 + $0x18] sm:$0xff] %v258
                %v260 = vld [vmem:[%s250 + $0x80] sm:$0xff]
                %261 = vst [vmem:[%s251 + $0x20] sm:$0xff] %v260
                %v262 = vld [vmem:[%s250 + $0x88] sm:$0xff]
                %263 = vst [vmem:[%s251 + $0x28] sm:$0xff] %v262
                %v264 = vld [vmem:[%s250 + $0xc0] sm:$0xff]
                %265 = vst [vmem:[%s251 + $0x30] sm:$0xff] %v264
                %v266 = vld [vmem:[%s250 + $0xc8] sm:$0xff]
                %267 = vst [vmem:[%s251 + $0x38] sm:$0xff] %v266
                %v268 = vld [vmem:[%s250 + $0x100] sm:$0xff]
                %269 = vst [vmem:[%s251 + $0x40] sm:$0xff] %v268
                %v270 = vld [vmem:[%s250 + $0x108] sm:$0xff]
                %271 = vst [vmem:[%s251 + $0x48] sm:$0xff] %v270
                %v272 = vld [vmem:[%s250 + $0x140] sm:$0xff]
                %273 = vst [vmem:[%s251 + $0x50] sm:$0xff] %v272
                %v274 = vld [vmem:[%s250 + $0x148] sm:$0xff]
                %275 = vst [vmem:[%s251 + $0x58] sm:$0xff] %v274
                %v276 = vld [vmem:[%s250 + $0x180] sm:$0xff]
                %277 = vst [vmem:[%s251 + $0x60] sm:$0xff] %v276
                %v278 = vld [vmem:[%s250 + $0x188] sm:$0xff]
                %279 = vst [vmem:[%s251 + $0x68] sm:$0xff] %v278
                %v280 = vld [vmem:[%s250 + $0x1c0] sm:$0xff]
                %281 = vst [vmem:[%s251 + $0x70] sm:$0xff] %v280
                %v282 = vld [vmem:[%s250 + $0x1c8] sm:$0xff]
                %283 = vst [vmem:[%s251 + $0x78] sm:$0xff] %v282
                %v284 = vld [vmem:[%s250 + $0x200] sm:$0xff]
                %285 = vst [vmem:[%s251 + $0x80] sm:$0xff] %v284
                %v286 = vld [vmem:[%s250 + $0x208] sm:$0xff]
                %287 = vst [vmem:[%s251 + $0x88] sm:$0xff] %v286
                %v288 = vld [vmem:[%s250 + $0x240] sm:$0xff]
                %289 = vst [vmem:[%s251 + $0x90] sm:$0xff] %v288
                %v290 = vld [vmem:[%s250 + $0x248] sm:$0xff]
                %291 = vst [vmem:[%s251 + $0x98] sm:$0xff] %v290
                %v292 = vld [vmem:[%s250 + $0x280] sm:$0xff]
                %293 = vst [vmem:[%s251 + $0xa0] sm:$0xff] %v292
                %v294 = vld [vmem:[%s250 + $0x288] sm:$0xff]
                %295 = vst [vmem:[%s251 + $0xa8] sm:$0xff] %v294
                %v296 = vld [vmem:[%s250 + $0x2c0] sm:$0xff]
                %297 = vst [vmem:[%s251 + $0xb0] sm:$0xff] %v296
                %v298 = vld [vmem:[%s250 + $0x2c8] sm:$0xff]
                %299 = vst [vmem:[%s251 + $0xb8] sm:$0xff] %v298
                %v300 = vld [vmem:[%s250 + $0x300] sm:$0xff]
                %301 = vst [vmem:[%s251 + $0xc0] sm:$0xff] %v300
                %v302 = vld [vmem:[%s250 + $0x308] sm:$0xff]
                %303 = vst [vmem:[%s251 + $0xc8] sm:$0xff] %v302
                %v304 = vld [vmem:[%s250 + $0x340] sm:$0xff]
                %305 = vst [vmem:[%s251 + $0xd0] sm:$0xff] %v304
                %v306 = vld [vmem:[%s250 + $0x348] sm:$0xff]
                %307 = vst [vmem:[%s251 + $0xd8] sm:$0xff] %v306
                %v308 = vld [vmem:[%s250 + $0x380] sm:$0xff]
                %309 = vst [vmem:[%s251 + $0xe0] sm:$0xff] %v308
                %v310 = vld [vmem:[%s250 + $0x388] sm:$0xff]
                %311 = vst [vmem:[%s251 + $0xe8] sm:$0xff] %v310
                %v312 = vld [vmem:[%s250 + $0x3c0] sm:$0xff]
                %313 = vst [vmem:[%s251 + $0xf0] sm:$0xff] %v312
                %v314 = vld [vmem:[%s250 + $0x3c8] sm:$0xff]
                %315 = vst [vmem:[%s251 + $0xf8] sm:$0xff] %v314
              $region45: #{lm_forward.3} parent=39 // loop_footer
                %s249 = sadd.s32 1, %s245
              $region46: #{lm_forward.3} parent=39 // loop_footer_branch
                %244 = sbr.rel target = $region42
              $region47: #{lm_forward.3} parent=39 // loop_exit
                _
            $region40: #{lm_forward.3} parent=35 // pred_fallthru
              _
            // Predicated region
            $region48: #{lm_forward.3} parent=35 // pred_check
              _
            $region49: #{lm_forward.3} parent=35 // pred_check_branch
              %317 = sbr.rel target = $region51
            $region50: #{lm_forward.3} parent=35 // pred_region
              _
            $region51: #{lm_forward.3} parent=35 // pred_fallthru
              _
          $region36: #{lm_forward.3} parent=31 // pred_fallthru
            _
          %318 = vnop
        $region32: #{lm_forward.3} parent=23 // pred_fallthru
          _
        // Predicated region
        $region52: #{lm_forward.3} parent=23 // pred_check
          %p319 = pneg %p138
        $region53: #{lm_forward.3} parent=23 // pred_check_branch
          %321 = sbr.rel (%p319) target = $region55
        $region54: #{lm_forward.3} parent=23 // pred_region
          %s322 = smul.u32 4, %s20
          %p323 = scmp.lt.s32.totalorder %s322, 15
          %s324 = scalar_select %p323, %s322, 15
          %s325 = scalar_lea.vmem %s4, %s324
          %s326 = smul.u32 4, %s20
        $region55: #{lm_forward.3} parent=23 // pred_fallthru
          _
        // Predicated region
        $region56: #{lm_forward.3} parent=23 // pred_check
          %p327 = pneg %p164
        $region57: #{lm_forward.3} parent=23 // pred_check_branch
          %329 = sbr.rel (%p327) target = $region59
        $region58: #{lm_forward.3} parent=23 // pred_region
          %s330 = smul.u32 8, %s19
          %p331 = scmp.lt.s32.totalorder %s330, 15
          %s332 = scalar_select %p331, %s330, 15
          %s333 = smul.addr %s332, 8
          %s334 = scalar_lea.vmem %s5, %s333
          %s335 = smul.u32 8, %s19
        $region59: #{lm_forward.3} parent=23 // pred_fallthru
          _
      $region24: #{lm_forward.3} parent=5 // pred_fallthru
        _
      %p336 = scmp.le.s32.totalorder 1, %s12
      %p337 = scmp.lt.s32.totalorder %s12, 9
      %p338 = pnand %p336, %p337
      %p339 = pneg %p338
      // Predicated region
      $region60: #{lm_forward.3} parent=5 // pred_check
        _
      $region61: #{lm_forward.3} parent=5 // pred_check_branch
        %341 = sbr.rel (%p338) target = $region63
      $region62: #{lm_forward.3} parent=5 // pred_region
        %s342 = ssub.s32 %s12, 1
        %s343 = sand.u32 %s105, 1
        %s344 = sand.u32 %s105, 1
        %s345 = smul.addr %s344, 256
        %s346 = scalar_lea.vmem [#allocation6], %s345
        // Predicated region
        $region64: #{lm_forward.3} parent=62 // pred_check
          %p347 = pneg %p118
        $region65: #{lm_forward.3} parent=62 // pred_check_branch
          %349 = sbr.rel (%p347) target = $region67
        $region66: #{lm_forward.3} parent=62 // pred_region
          _
        $region67: #{lm_forward.3} parent=62 // pred_fallthru
          _
        %s350 = smul.u32 8, %s21
        %p351 = scmp.lt.s32.totalorder %s350, 15
        %s352 = scalar_select %p351, %s350, 15
        %s353 = smul.addr %s352, 4
        %s354 = scalar_lea.vmem %s0, %s353
        %p355 = pneg %p50
        %p356 = pneg %p47
        %p357 = pneg %p71
        %p358 = pneg %p68
        %p359 = pneg %p92
        %p360 = pneg %p89
        %s361 = sand.u32 %s105, 1
        %s362 = sand.u32 %s105, 1
        %s363 = smul.addr %s362, 256
        %s364 = scalar_lea.vmem [#allocation6], %s363
        %p365 = pneg %p118
        %p366 = pneg %p115
        %s367 = smul.u32 4, %s22
        %p368 = scmp.lt.s32.totalorder %s367, 15
        %s369 = scalar_select %p368, %s367, 15
        %s370 = scalar_lea.vmem %s4, %s369
        %p371 = pneg %p144
        %p372 = pneg %p141
        %s373 = smul.u32 8, %s21
        %p374 = scmp.lt.s32.totalorder %s373, 15
        %s375 = scalar_select %p374, %s373, 15
        %s376 = smul.addr %s375, 8
        %s377 = scalar_lea.vmem %s5, %s376
        %p378 = pneg %p170
        %p379 = pneg %p167
        %p380 = pneg %p196
        %p381 = pneg %p193
        %s382 = smul.u32 8, %s21
        %p383 = scmp.lt.s32.totalorder %s382, 15
        %s384 = scalar_select %p383, %s382, 15
        %s385 = smul.addr %s384, 8
        %s386 = scalar_lea.vmem %s6, %s385
        %s387 = smul.u32 8, %s21
        %p388 = scmp.lt.s32.totalorder %s387, 15
        %s389 = scalar_select %p388, %s387, 15
        %s390 = smul.addr %s389, 4
        %s391 = scalar_lea.vmem %s0, %s390
        %s392 = smul.u32 8, %s21
        %s393 = smul.u32 4, %s22
        %s394 = smul.u32 4, %s22
        %p395 = scmp.lt.s32.totalorder %s394, 15
        %s396 = scalar_select %p395, %s394, 15
        %s397 = scalar_lea.vmem %s4, %s396
        %s398 = smul.u32 4, %s22
        %s399 = smul.u32 8, %s21
        %p400 = scmp.lt.s32.totalorder %s399, 15
        %s401 = scalar_select %p400, %s399, 15
        %s402 = smul.addr %s401, 8
        %s403 = scalar_lea.vmem %s5, %s402
        %s404 = smul.u32 8, %s21
        %s405 = smul.u32 8, %s21
        %p406 = scmp.lt.s32.totalorder %s405, 15
        %s407 = scalar_select %p406, %s405, 15
        %s408 = smul.addr %s407, 8
        %s409 = scalar_lea.vmem %s6, %s408
        %s410 = smul.u32 8, %s21
        %p412 = scmp.eq.s32.totalorder %s22, 0
        // Predicated region
        $region68: #{lm_forward.3} parent=62 // pred_check
          %p413 = pneg %p412
        $region69: #{lm_forward.3} parent=62 // pred_check_branch
          %415 = sbr.rel (%p413) target = $region71
        $region70: #{lm_forward.3} parent=62 // pred_region
          %v416 = vld [vmem:[%s391] sm:$0xf]
          %v417 = vld [vmem:[%s391 + $0x4] sm:$0xf]
          %v418 = vld [vmem:[%s391 + $0x8] sm:$0xf]
          %v419 = vld [vmem:[%s391 + $0xc] sm:$0xf]
          %v420 = vld [vmem:[%s391 + $0x10] sm:$0xf]
          %v421 = vld [vmem:[%s391 + $0x14] sm:$0xf]
          %v422 = vld [vmem:[%s391 + $0x18] sm:$0xf]
          %v423 = vld [vmem:[%s391 + $0x1c] sm:$0xf]
          %v424 = vld [vmem:[%s1] sm:$0xf]
          %v425 = vld [vmem:[%s1 + $0x4] sm:$0xf]
          %v426 = vld [vmem:[%s1 + $0x8] sm:$0xf]
          %v427 = vld [vmem:[%s1 + $0xc] sm:$0xf]
          %v428 = vld [vmem:[%s1 + $0x10] sm:$0xf]
          %v429 = vld [vmem:[%s1 + $0x14] sm:$0xf]
          %v430 = vld [vmem:[%s1 + $0x18] sm:$0xf]
          %v431 = vld [vmem:[%s1 + $0x1c] sm:$0xf]
          %v432 = vld [vmem:[%s1 + $0x20] sm:$0xf]
          %v433 = vld [vmem:[%s1 + $0x24] sm:$0xf]
          %v434 = vld [vmem:[%s1 + $0x28] sm:$0xf]
          %v435 = vld [vmem:[%s1 + $0x2c] sm:$0xf]
          %v436 = vld [vmem:[%s1 + $0x30] sm:$0xf]
          %v437 = vld [vmem:[%s1 + $0x34] sm:$0xf]
          %v438 = vld [vmem:[%s1 + $0x38] sm:$0xf]
          %v439 = vld [vmem:[%s1 + $0x3c] sm:$0xf]
          %v440 = vld [vmem:[%s2] sm:$0x1]
          %v442 = vlaneseq
          %v443 = vshrl.u32 %v442, 7
          %v444 = vsub.s32 0, %v443
          %v445 = vrot.slane %v440, %v444
          %v455 = vunpack.c.l.b16 %v416
          %v456 = vunpack.c.l.b16 %v417
          %v457 = vunpack.c.l.b16 %v418
          %v458 = vunpack.c.l.b16 %v419
          %v459 = vunpack.c.l.b16 %v420
          %v460 = vunpack.c.l.b16 %v421
          %v461 = vunpack.c.l.b16 %v422
          %v462 = vunpack.c.l.b16 %v423
          %v463 = vpack.c.b16 %v456, %v455
          %v464 = vpack.c.b16 %v458, %v457
          %v465 = vpack.c.b16 %v460, %v459
          %v466 = vpack.c.b16 %v462, %v461
          %v487 = vunpack.c.l.b16 %v424
          %v488 = vunpack.c.l.b16 %v425
          %v489 = vunpack.c.l.b16 %v426
          %v490 = vunpack.c.l.b16 %v427
          %v491 = vunpack.c.l.b16 %v428
          %v492 = vunpack.c.l.b16 %v429
          %v493 = vunpack.c.l.b16 %v430
          %v494 = vunpack.c.l.b16 %v431
          %v495 = vunpack.c.l.b16 %v432
          %v496 = vunpack.c.l.b16 %v433
          %v497 = vunpack.c.l.b16 %v434
          %v498 = vunpack.c.l.b16 %v435
          %v499 = vunpack.c.l.b16 %v436
          %v500 = vunpack.c.l.b16 %v437
          %v501 = vunpack.c.l.b16 %v438
          %v502 = vunpack.c.l.b16 %v439
          %v503 = vpack.c.b16 %v488, %v487
          %v504 = vpack.c.b16 %v490, %v489
          %v505 = vpack.c.b16 %v492, %v491
          %v506 = vpack.c.b16 %v494, %v493
          %v507 = vpack.c.b16 %v496, %v495
          %v508 = vpack.c.b16 %v498, %v497
          %v509 = vpack.c.b16 %v500, %v499
          %v510 = vpack.c.b16 %v502, %v501
          %519 = vmatprep.subr.bf16.mxu0 0
          %520 = vmatpush1.bf16.msra.mxu0 %v510
          %521 = vmatprep.subr.bf16.mxu0 0
          %522 = vmatpush1.bf16.msra.mxu0 %v509
          %523 = vmatprep.subr.bf16.mxu0 0
          %524 = vmatpush1.bf16.msra.mxu0 %v508
          %525 = vmatprep.subr.bf16.mxu0 0
          %526 = vmatpush1.bf16.msra.mxu0 %v507
          %527 = vmatprep.subr.bf16.mxu0 0
          %528 = vmatpush1.bf16.msra.mxu0 %v506
          %529 = vmatprep.subr.bf16.mxu0 0
          %530 = vmatpush1.bf16.msra.mxu0 %v505
          %531 = vmatprep.subr.bf16.mxu0 0
          %532 = vmatpush1.bf16.msra.mxu0 %v504
          %533 = vmatprep.subr.bf16.mxu0 0
          %534 = vmatpush1.bf16.msra.mxu0 %v503
          %535 = vmatprep.subr.bf16.mxu0 0
          %536 = vmatpush2.bf16.msra.mxu0 0
          %537 = vmatprep.subr.bf16.mxu0 0
          %538 = vmatpush2.bf16.msra.mxu0 0
          %539 = vmatprep.subr.bf16.mxu0 0
          %540 = vmatpush2.bf16.msra.mxu0 0
          %541 = vmatprep.subr.bf16.mxu0 0
          %542 = vmatpush2.bf16.msra.mxu0 0
          %543 = vmatprep.subr.bf16.mxu0 0
          %544 = vmatpush2.bf16.msra.mxu0 0
          %545 = vmatprep.subr.bf16.mxu0 0
          %546 = vmatpush2.bf16.msra.mxu0 0
          %547 = vmatprep.subr.bf16.mxu0 0
          %548 = vmatpush2.bf16.msra.mxu0 0
          %549 = vmatprep.subr.bf16.mxu0 0
          %550 = vmatpush2.bf16.msra.mxu0 0
          %551 = vmatprep.mubr.bf16.mxu0 0
          %552 = vmatmul.mubr.bf16.gmra.mxu0 %v463
          %v553 = vpop.f32.mrf.mxu0
          %v554 = vadd.f32 %v445, %v553
          %v555 = vpop.f32.mrf.mxu0
          %v556 = vpop.f32.mrf.mxu0
          %v557 = vadd.f32 %v445, %v556
          %v558 = vpop.f32.mrf.mxu0
          %559 = vmatprep.mubr.bf16.mxu0 0
          %560 = vmatmul.mubr.bf16.gmra.mxu0 %v464
          %v561 = vpop.f32.mrf.mxu0
          %v562 = vadd.f32 %v445, %v561
          %v563 = vpop.f32.mrf.mxu0
          %v564 = vpop.f32.mrf.mxu0
          %v565 = vadd.f32 %v445, %v564
          %v566 = vpop.f32.mrf.mxu0
          %567 = vmatprep.mubr.bf16.mxu0 0
          %568 = vmatmul.mubr.bf16.gmra.mxu0 %v465
          %v569 = vpop.f32.mrf.mxu0
          %v570 = vadd.f32 %v445, %v569
          %v571 = vpop.f32.mrf.mxu0
          %v572 = vpop.f32.mrf.mxu0
          %v573 = vadd.f32 %v445, %v572
          %v574 = vpop.f32.mrf.mxu0
          %575 = vmatprep.mubr.bf16.mxu0 0
          %576 = vmatmul.mubr.bf16.gmra.mxu0 %v466
          %v577 = vpop.f32.mrf.mxu0
          %v578 = vadd.f32 %v445, %v577
          %v579 = vpop.f32.mrf.mxu0
          %v580 = vpop.f32.mrf.mxu0
          %v581 = vadd.f32 %v445, %v580
          %v582 = vpop.f32.mrf.mxu0
          %583 = vdwg.mxu0
          %v584 = vmax.f32 %v554, 0.0
          %v585 = vmax.f32 %v557, 0.0
          %v586 = vmax.f32 %v562, 0.0
          %v587 = vmax.f32 %v565, 0.0
          %v588 = vmax.f32 %v570, 0.0
          %v589 = vmax.f32 %v573, 0.0
          %v590 = vmax.f32 %v578, 0.0
          %v591 = vmax.f32 %v581, 0.0
          %v592 = vpack.c.bf16 %v585, %v584
          %v593 = vpack.c.bf16 %v587, %v586
          %v594 = vpack.c.bf16 %v589, %v588
          %v595 = vpack.c.bf16 %v591, %v590
          %v600 = vunpack.c.l.b16 %v592
          %v601 = vunpack.c.h.b16 %v592
          %v602 = vunpack.c.l.b16 %v593
          %v603 = vunpack.c.h.b16 %v593
          %v604 = vunpack.c.l.b16 %v594
          %v605 = vunpack.c.h.b16 %v594
          %v606 = vunpack.c.l.b16 %v595
          %v607 = vunpack.c.h.b16 %v595
          %v608 = vpack.c.b16 %v600, %v600
          %v609 = vpack.c.b16 %v601, %v601
          %v610 = vpack.c.b16 %v602, %v602
          %v611 = vpack.c.b16 %v603, %v603
          %v612 = vpack.c.b16 %v604, %v604
          %v613 = vpack.c.b16 %v605, %v605
          %v614 = vpack.c.b16 %v606, %v606
          %v615 = vpack.c.b16 %v607, %v607
          %624 = vst [vmem:[#allocation2] sm:$0xf] %v608
          %625 = vst [vmem:[#allocation2 + $0x4] sm:$0xf] %v609
          %626 = vst [vmem:[#allocation2 + $0x8] sm:$0xf] %v610
          %627 = vst [vmem:[#allocation2 + $0xc] sm:$0xf] %v611
          %628 = vst [vmem:[#allocation2 + $0x10] sm:$0xf] %v612
          %629 = vst [vmem:[#allocation2 + $0x14] sm:$0xf] %v613
          %630 = vst [vmem:[#allocation2 + $0x18] sm:$0xf] %v614
          %631 = vst [vmem:[#allocation2 + $0x1c] sm:$0xf] %v615
          %vm632 = vcmask 7168
          %633 = vst.msk [vmem:[#allocation3] sm:$0xff] %vm632, -inf
          %634 = vst.msk [vmem:[#allocation3 + $0x8] sm:$0xff] %vm632, -inf
          %635 = vst.msk [vmem:[#allocation3 + $0x10] sm:$0xff] %vm632, -inf
          %636 = vst.msk [vmem:[#allocation3 + $0x18] sm:$0xff] %vm632, -inf
          %637 = vst.msk [vmem:[#allocation3 + $0x20] sm:$0xff] %vm632, -inf
          %638 = vst.msk [vmem:[#allocation3 + $0x28] sm:$0xff] %vm632, -inf
          %639 = vst.msk [vmem:[#allocation3 + $0x30] sm:$0xff] %vm632, -inf
          %640 = vst.msk [vmem:[#allocation3 + $0x38] sm:$0xff] %vm632, -inf
          %641 = vst.msk [vmem:[#allocation4] sm:$0xff] %vm632, 0.0
          %642 = vst.msk [vmem:[#allocation4 + $0x8] sm:$0xff] %vm632, 0.0
          %643 = vst.msk [vmem:[#allocation4 + $0x10] sm:$0xff] %vm632, 0.0
          %644 = vst.msk [vmem:[#allocation4 + $0x18] sm:$0xff] %vm632, 0.0
          %645 = vst.msk [vmem:[#allocation4 + $0x20] sm:$0xff] %vm632, 0.0
          %646 = vst.msk [vmem:[#allocation4 + $0x28] sm:$0xff] %vm632, 0.0
          %647 = vst.msk [vmem:[#allocation4 + $0x30] sm:$0xff] %vm632, 0.0
          %648 = vst.msk [vmem:[#allocation4 + $0x38] sm:$0xff] %vm632, 0.0
          %649 = vst.msk [vmem:[#allocation5] sm:$0xff] %vm632, 0.0
          %650 = vst.msk [vmem:[#allocation5 + $0x8] sm:$0xff] %vm632, 0.0
          %651 = vst.msk [vmem:[#allocation5 + $0x10] sm:$0xff] %vm632, 0.0
          %652 = vst.msk [vmem:[#allocation5 + $0x18] sm:$0xff] %vm632, 0.0
          %653 = vst.msk [vmem:[#allocation5 + $0x20] sm:$0xff] %vm632, 0.0
          %654 = vst.msk [vmem:[#allocation5 + $0x28] sm:$0xff] %vm632, 0.0
          %655 = vst.msk [vmem:[#allocation5 + $0x30] sm:$0xff] %vm632, 0.0
          %656 = vst.msk [vmem:[#allocation5 + $0x38] sm:$0xff] %vm632, 0.0
        $region71: #{lm_forward.3} parent=62 // pred_fallthru
          _
        %v657 = vld [vmem:[#allocation2] sm:$0xf]
        %v658 = vld [vmem:[#allocation2 + $0x4] sm:$0xf]
        %v659 = vld [vmem:[#allocation2 + $0x8] sm:$0xf]
        %v660 = vld [vmem:[#allocation2 + $0xc] sm:$0xf]
        %v661 = vld [vmem:[#allocation2 + $0x10] sm:$0xf]
        %v662 = vld [vmem:[#allocation2 + $0x14] sm:$0xf]
        %v663 = vld [vmem:[#allocation2 + $0x18] sm:$0xf]
        %v664 = vld [vmem:[#allocation2 + $0x1c] sm:$0xf]
        %v665 = vld [vmem:[%s346] sm:$0xff]
        %v666 = vld [vmem:[%s346 + $0x8] sm:$0xff]
        %v667 = vld [vmem:[%s346 + $0x10] sm:$0xff]
        %v668 = vld [vmem:[%s346 + $0x18] sm:$0xff]
        %v669 = vld [vmem:[%s346 + $0x20] sm:$0xff]
        %v670 = vld [vmem:[%s346 + $0x28] sm:$0xff]
        %v671 = vld [vmem:[%s346 + $0x30] sm:$0xff]
        %v672 = vld [vmem:[%s346 + $0x38] sm:$0xff]
        %v673 = vld [vmem:[%s346 + $0x40] sm:$0xff]
        %v674 = vld [vmem:[%s346 + $0x48] sm:$0xff]
        %v675 = vld [vmem:[%s346 + $0x50] sm:$0xff]
        %v676 = vld [vmem:[%s346 + $0x58] sm:$0xff]
        %v677 = vld [vmem:[%s346 + $0x60] sm:$0xff]
        %v678 = vld [vmem:[%s346 + $0x68] sm:$0xff]
        %v679 = vld [vmem:[%s346 + $0x70] sm:$0xff]
        %v680 = vld [vmem:[%s346 + $0x78] sm:$0xff]
        %v681 = vld [vmem:[%s346 + $0x80] sm:$0xff]
        %v682 = vld [vmem:[%s346 + $0x88] sm:$0xff]
        %v683 = vld [vmem:[%s346 + $0x90] sm:$0xff]
        %v684 = vld [vmem:[%s346 + $0x98] sm:$0xff]
        %v685 = vld [vmem:[%s346 + $0xa0] sm:$0xff]
        %v686 = vld [vmem:[%s346 + $0xa8] sm:$0xff]
        %v687 = vld [vmem:[%s346 + $0xb0] sm:$0xff]
        %v688 = vld [vmem:[%s346 + $0xb8] sm:$0xff]
        %v689 = vld [vmem:[%s346 + $0xc0] sm:$0xff]
        %v690 = vld [vmem:[%s346 + $0xc8] sm:$0xff]
        %v691 = vld [vmem:[%s346 + $0xd0] sm:$0xff]
        %v692 = vld [vmem:[%s346 + $0xd8] sm:$0xff]
        %v693 = vld [vmem:[%s346 + $0xe0] sm:$0xff]
        %v694 = vld [vmem:[%s346 + $0xe8] sm:$0xff]
        %v695 = vld [vmem:[%s346 + $0xf0] sm:$0xff]
        %v696 = vld [vmem:[%s346 + $0xf8] sm:$0xff]
        %v697 = vld [vmem:[%s397] sm:$0xf]
        %v699 = vlaneseq
        %v700 = vshrl.u32 %v699, 7
        %v701 = vsub.s32 0, %v700
        %v702 = vrot.slane %v697, %v701
        %v703 = vlaneseq
        %v704 = vshrl.u32 %v703, 7
        %v705 = vsub.s32 1, %v704
        %v706 = vrot.slane %v697, %v705
        %v707 = vlaneseq
        %v708 = vshrl.u32 %v707, 7
        %v709 = vsub.s32 2, %v708
        %v710 = vrot.slane %v697, %v709
        %v711 = vlaneseq
        %v712 = vshrl.u32 %v711, 7
        %v713 = vsub.s32 3, %v712
        %v714 = vrot.slane %v697, %v713
        %v727 = vunpack.c.l.b16 %v657
        %v728 = vunpack.c.l.b16 %v658
        %v729 = vunpack.c.l.b16 %v659
        %v730 = vunpack.c.l.b16 %v660
        %v731 = vunpack.c.l.b16 %v661
        %v732 = vunpack.c.l.b16 %v662
        %v733 = vunpack.c.l.b16 %v663
        %v734 = vunpack.c.l.b16 %v664
        %v735 = vpack.c.b16 %v728, %v727
        %v736 = vpack.c.b16 %v730, %v729
        %v737 = vpack.c.b16 %v732, %v731
        %v738 = vpack.c.b16 %v734, %v733
        %v775 = vunpack.c.l.b16 %v665
        %v776 = vunpack.c.h.b16 %v665
        %v777 = vunpack.c.l.b16 %v666
        %v778 = vunpack.c.h.b16 %v666
        %v779 = vunpack.c.l.b16 %v667
        %v780 = vunpack.c.h.b16 %v667
        %v781 = vunpack.c.l.b16 %v668
        %v782 = vunpack.c.h.b16 %v668
        %v783 = vunpack.c.l.b16 %v669
        %v784 = vunpack.c.h.b16 %v669
        %v785 = vunpack.c.l.b16 %v670
        %v786 = vunpack.c.h.b16 %v670
        %v787 = vunpack.c.l.b16 %v671
        %v788 = vunpack.c.h.b16 %v671
        %v789 = vunpack.c.l.b16 %v672
        %v790 = vunpack.c.h.b16 %v672
        %v791 = vunpack.c.l.b16 %v673
        %v792 = vunpack.c.h.b16 %v673
        %v793 = vunpack.c.l.b16 %v674
        %v794 = vunpack.c.h.b16 %v674
        %v795 = vunpack.c.l.b16 %v675
        %v796 = vunpack.c.h.b16 %v675
        %v797 = vunpack.c.l.b16 %v676
        %v798 = vunpack.c.h.b16 %v676
        %v799 = vunpack.c.l.b16 %v677
        %v800 = vunpack.c.h.b16 %v677
        %v801 = vunpack.c.l.b16 %v678
        %v802 = vunpack.c.h.b16 %v678
        %v803 = vunpack.c.l.b16 %v679
        %v804 = vunpack.c.h.b16 %v679
        %v805 = vunpack.c.l.b16 %v680
        %v806 = vunpack.c.h.b16 %v680
        %v807 = vunpack.c.l.b16 %v681
        %v808 = vunpack.c.h.b16 %v681
        %v809 = vunpack.c.l.b16 %v682
        %v810 = vunpack.c.h.b16 %v682
        %v811 = vunpack.c.l.b16 %v683
        %v812 = vunpack.c.h.b16 %v683
        %v813 = vunpack.c.l.b16 %v684
        %v814 = vunpack.c.h.b16 %v684
        %v815 = vunpack.c.l.b16 %v685
        %v816 = vunpack.c.h.b16 %v685
        %v817 = vunpack.c.l.b16 %v686
        %v818 = vunpack.c.h.b16 %v686
        %v819 = vunpack.c.l.b16 %v687
        %v820 = vunpack.c.h.b16 %v687
        %v821 = vunpack.c.l.b16 %v688
        %v822 = vunpack.c.h.b16 %v688
        %v823 = vunpack.c.l.b16 %v689
        %v824 = vunpack.c.h.b16 %v689
        %v825 = vunpack.c.l.b16 %v690
        %v826 = vunpack.c.h.b16 %v690
        %v827 = vunpack.c.l.b16 %v691
        %v828 = vunpack.c.h.b16 %v691
        %v829 = vunpack.c.l.b16 %v692
        %v830 = vunpack.c.h.b16 %v692
        %v831 = vunpack.c.l.b16 %v693
        %v832 = vunpack.c.h.b16 %v693
        %v833 = vunpack.c.l.b16 %v694
        %v834 = vunpack.c.h.b16 %v694
        %v835 = vunpack.c.l.b16 %v695
        %v836 = vunpack.c.h.b16 %v695
        %v837 = vunpack.c.l.b16 %v696
        %v838 = vunpack.c.h.b16 %v696
        %v839 = vpack.c.b16 %v779, %v775
        %v840 = vpack.c.b16 %v780, %v776
        %v841 = vpack.c.b16 %v781, %v777
        %v842 = vpack.c.b16 %v782, %v778
        %v843 = vpack.c.b16 %v787, %v783
        %v844 = vpack.c.b16 %v788, %v784
        %v845 = vpack.c.b16 %v789, %v785
        %v846 = vpack.c.b16 %v790, %v786
        %v847 = vpack.c.b16 %v795, %v791
        %v848 = vpack.c.b16 %v796, %v792
        %v849 = vpack.c.b16 %v797, %v793
        %v850 = vpack.c.b16 %v798, %v794
        %v851 = vpack.c.b16 %v803, %v799
        %v852 = vpack.c.b16 %v804, %v800
        %v853 = vpack.c.b16 %v805, %v801
        %v854 = vpack.c.b16 %v806, %v802
        %v855 = vpack.c.b16 %v811, %v807
        %v856 = vpack.c.b16 %v812, %v808
        %v857 = vpack.c.b16 %v813, %v809
        %v858 = vpack.c.b16 %v814, %v810
        %v859 = vpack.c.b16 %v819, %v815
        %v860 = vpack.c.b16 %v820, %v816
        %v861 = vpack.c.b16 %v821, %v817
        %v862 = vpack.c.b16 %v822, %v818
        %v863 = vpack.c.b16 %v827, %v823
        %v864 = vpack.c.b16 %v828, %v824
        %v865 = vpack.c.b16 %v829, %v825
        %v866 = vpack.c.b16 %v830, %v826
        %v867 = vpack.c.b16 %v835, %v831
        %v868 = vpack.c.b16 %v836, %v832
        %v869 = vpack.c.b16 %v837, %v833
        %v870 = vpack.c.b16 %v838, %v834
        %903 = vmatprep.subr.bf16.mxu0 %v868
        %904 = vmatpush1.bf16.msra.mxu0 %v867
        %905 = vmatprep.subr.bf16.mxu0 %v864
        %906 = vmatpush1.bf16.msra.mxu0 %v863
        %907 = vmatprep.subr.bf16.mxu0 %v860
        %908 = vmatpush1.bf16.msra.mxu0 %v859
        %909 = vmatprep.subr.bf16.mxu0 %v856
        %910 = vmatpush1.bf16.msra.mxu0 %v855
        %911 = vmatprep.subr.bf16.mxu0 %v852
        %912 = vmatpush1.bf16.msra.mxu0 %v851
        %913 = vmatprep.subr.bf16.mxu0 %v848
        %914 = vmatpush1.bf16.msra.mxu0 %v847
        %915 = vmatprep.subr.bf16.mxu0 %v844
        %916 = vmatpush1.bf16.msra.mxu0 %v843
        %917 = vmatprep.subr.bf16.mxu0 %v840
        %918 = vmatpush1.bf16.msra.mxu0 %v839
        %919 = vmatprep.subr.bf16.mxu0 0
        %920 = vmatpush2.bf16.msra.mxu0 0
        %921 = vmatprep.subr.bf16.mxu0 0
        %922 = vmatpush2.bf16.msra.mxu0 0
        %923 = vmatprep.subr.bf16.mxu0 0
        %924 = vmatpush2.bf16.msra.mxu0 0
        %925 = vmatprep.subr.bf16.mxu0 0
        %926 = vmatpush2.bf16.msra.mxu0 0
        %927 = vmatprep.subr.bf16.mxu0 0
        %928 = vmatpush2.bf16.msra.mxu0 0
        %929 = vmatprep.subr.bf16.mxu0 0
        %930 = vmatpush2.bf16.msra.mxu0 0
        %931 = vmatprep.subr.bf16.mxu0 0
        %932 = vmatpush2.bf16.msra.mxu0 0
        %933 = vmatprep.subr.bf16.mxu0 0
        %934 = vmatpush2.bf16.msra.mxu0 0
        %935 = vmatprep.mubr.bf16.mxu0 0
        %936 = vmatmul.mubr.bf16.gmra.mxu0 %v735
        %v937 = vpop.f32.mrf.mxu0
        %v938 = vadd.f32 %v702, %v937
        %v939 = vpop.f32.mrf.mxu0
        %v940 = vadd.f32 %v706, %v939
        %v941 = vpop.f32.mrf.mxu0
        %v942 = vadd.f32 %v702, %v941
        %v943 = vpop.f32.mrf.mxu0
        %v944 = vadd.f32 %v706, %v943
        %945 = vmatprep.mubr.bf16.mxu0 0
        %946 = vmatmul.mubr.bf16.gmra.mxu0 %v736
        %v947 = vpop.f32.mrf.mxu0
        %v948 = vadd.f32 %v702, %v947
        %v949 = vpop.f32.mrf.mxu0
        %v950 = vadd.f32 %v706, %v949
        %v951 = vpop.f32.mrf.mxu0
        %v952 = vadd.f32 %v702, %v951
        %v953 = vpop.f32.mrf.mxu0
        %v954 = vadd.f32 %v706, %v953
        %955 = vmatprep.mubr.bf16.mxu0 0
        %956 = vmatmul.mubr.bf16.gmra.mxu0 %v737
        %v957 = vpop.f32.mrf.mxu0
        %v958 = vadd.f32 %v702, %v957
        %v959 = vpop.f32.mrf.mxu0
        %v960 = vadd.f32 %v706, %v959
        %v961 = vpop.f32.mrf.mxu0
        %v962 = vadd.f32 %v702, %v961
        %v963 = vpop.f32.mrf.mxu0
        %v964 = vadd.f32 %v706, %v963
        %965 = vmatprep.mubr.bf16.mxu0 0
        %966 = vmatmul.mubr.bf16.gmra.mxu0 %v738
        %v967 = vpop.f32.mrf.mxu0
        %v968 = vadd.f32 %v702, %v967
        %v969 = vpop.f32.mrf.mxu0
        %v970 = vadd.f32 %v706, %v969
        %v971 = vpop.f32.mrf.mxu0
        %v972 = vadd.f32 %v702, %v971
        %v973 = vpop.f32.mrf.mxu0
        %v974 = vadd.f32 %v706, %v973
        %975 = vdwg.mxu0
        %976 = vmatprep.subr.bf16.mxu0 %v870
        %977 = vmatpush1.bf16.msra.mxu0 %v869
        %978 = vmatprep.subr.bf16.mxu0 %v866
        %979 = vmatpush1.bf16.msra.mxu0 %v865
        %980 = vmatprep.subr.bf16.mxu0 %v862
        %981 = vmatpush1.bf16.msra.mxu0 %v861
        %982 = vmatprep.subr.bf16.mxu0 %v858
        %983 = vmatpush1.bf16.msra.mxu0 %v857
        %984 = vmatprep.subr.bf16.mxu0 %v854
        %985 = vmatpush1.bf16.msra.mxu0 %v853
        %986 = vmatprep.subr.bf16.mxu0 %v850
        %987 = vmatpush1.bf16.msra.mxu0 %v849
        %988 = vmatprep.subr.bf16.mxu0 %v846
        %989 = vmatpush1.bf16.msra.mxu0 %v845
        %990 = vmatprep.subr.bf16.mxu0 %v842
        %991 = vmatpush1.bf16.msra.mxu0 %v841
        %992 = vmatprep.subr.bf16.mxu0 0
        %993 = vmatpush2.bf16.msra.mxu0 0
        %994 = vmatprep.subr.bf16.mxu0 0
        %995 = vmatpush2.bf16.msra.mxu0 0
        %996 = vmatprep.subr.bf16.mxu0 0
        %997 = vmatpush2.bf16.msra.mxu0 0
        %998 = vmatprep.subr.bf16.mxu0 0
        %999 = vmatpush2.bf16.msra.mxu0 0
        %1000 = vmatprep.subr.bf16.mxu0 0
        %1001 = vmatpush2.bf16.msra.mxu0 0
        %1002 = vmatprep.subr.bf16.mxu0 0
        %1003 = vmatpush2.bf16.msra.mxu0 0
        %1004 = vmatprep.subr.bf16.mxu0 0
        %1005 = vmatpush2.bf16.msra.mxu0 0
        %1006 = vmatprep.subr.bf16.mxu0 0
        %1007 = vmatpush2.bf16.msra.mxu0 0
        %1008 = vmatprep.mubr.bf16.mxu0 0
        %1009 = vmatmul.mubr.bf16.gmra.mxu0 %v735
        %v1010 = vpop.f32.mrf.mxu0
        %v1011 = vadd.f32 %v710, %v1010
        %v1012 = vpop.f32.mrf.mxu0
        %v1013 = vadd.f32 %v714, %v1012
        %v1014 = vpop.f32.mrf.mxu0
        %v1015 = vadd.f32 %v710, %v1014
        %v1016 = vpop.f32.mrf.mxu0
        %v1017 = vadd.f32 %v714, %v1016
        %1018 = vmatprep.mubr.bf16.mxu0 0
        %1019 = vmatmul.mubr.bf16.gmra.mxu0 %v736
        %v1020 = vpop.f32.mrf.mxu0
        %v1021 = vadd.f32 %v710, %v1020
        %v1022 = vpop.f32.mrf.mxu0
        %v1023 = vadd.f32 %v714, %v1022
        %v1024 = vpop.f32.mrf.mxu0
        %v1025 = vadd.f32 %v710, %v1024
        %v1026 = vpop.f32.mrf.mxu0
        %v1027 = vadd.f32 %v714, %v1026
        %1028 = vmatprep.mubr.bf16.mxu0 0
        %1029 = vmatmul.mubr.bf16.gmra.mxu0 %v737
        %v1030 = vpop.f32.mrf.mxu0
        %v1031 = vadd.f32 %v710, %v1030
        %v1032 = vpop.f32.mrf.mxu0
        %v1033 = vadd.f32 %v714, %v1032
        %v1034 = vpop.f32.mrf.mxu0
        %v1035 = vadd.f32 %v710, %v1034
        %v1036 = vpop.f32.mrf.mxu0
        %v1037 = vadd.f32 %v714, %v1036
        %1038 = vmatprep.mubr.bf16.mxu0 0
        %1039 = vmatmul.mubr.bf16.gmra.mxu0 %v738
        %v1040 = vpop.f32.mrf.mxu0
        %v1041 = vadd.f32 %v710, %v1040
        %v1042 = vpop.f32.mrf.mxu0
        %v1043 = vadd.f32 %v714, %v1042
        %v1044 = vpop.f32.mrf.mxu0
        %v1045 = vadd.f32 %v710, %v1044
        %v1046 = vpop.f32.mrf.mxu0
        %v1047 = vadd.f32 %v714, %v1046
        %1048 = vdwg.mxu0
        %v1049 = vld [vmem:[#allocation3] sm:$0xff]
        %v1050 = vld [vmem:[#allocation3 + $0x8] sm:$0xff]
        %v1051 = vld [vmem:[#allocation3 + $0x10] sm:$0xff]
        %v1052 = vld [vmem:[#allocation3 + $0x18] sm:$0xff]
        %v1053 = vld [vmem:[#allocation3 + $0x20] sm:$0xff]
        %v1054 = vld [vmem:[#allocation3 + $0x28] sm:$0xff]
        %v1055 = vld [vmem:[#allocation3 + $0x30] sm:$0xff]
        %v1056 = vld [vmem:[#allocation3 + $0x38] sm:$0xff]
        %v1057 = vmax.f32 %v938, %v940
        %v1058 = vmax.f32 %v1057, %v1011
        %v1059 = vmax.f32 %v1058, %v1013
        %1060 = vmax.xlane.f32.xlu0 %v1059
        %v1061 = vpop.xlane.xlu0 %1060
        %v1062 = vmax.f32 %v942, %v944
        %v1063 = vmax.f32 %v1062, %v1015
        %v1064 = vmax.f32 %v1063, %v1017
        %1065 = vmax.xlane.f32.xlu0 %v1064
        %v1066 = vpop.xlane.xlu0 %1065
        %v1067 = vmax.f32 %v948, %v950
        %v1068 = vmax.f32 %v1067, %v1021
        %v1069 = vmax.f32 %v1068, %v1023
        %1070 = vmax.xlane.f32.xlu0 %v1069
        %v1071 = vpop.xlane.xlu0 %1070
        %v1072 = vmax.f32 %v952, %v954
        %v1073 = vmax.f32 %v1072, %v1025
        %v1074 = vmax.f32 %v1073, %v1027
        %1075 = vmax.xlane.f32.xlu0 %v1074
        %v1076 = vpop.xlane.xlu0 %1075
        %v1077 = vmax.f32 %v958, %v960
        %v1078 = vmax.f32 %v1077, %v1031
        %v1079 = vmax.f32 %v1078, %v1033
        %1080 = vmax.xlane.f32.xlu0 %v1079
        %v1081 = vpop.xlane.xlu0 %1080
        %v1082 = vmax.f32 %v962, %v964
        %v1083 = vmax.f32 %v1082, %v1035
        %v1084 = vmax.f32 %v1083, %v1037
        %1085 = vmax.xlane.f32.xlu0 %v1084
        %v1086 = vpop.xlane.xlu0 %1085
        %v1087 = vmax.f32 %v968, %v970
        %v1088 = vmax.f32 %v1087, %v1041
        %v1089 = vmax.f32 %v1088, %v1043
        %1090 = vmax.xlane.f32.xlu0 %v1089
        %v1091 = vpop.xlane.xlu0 %1090
        %v1092 = vmax.f32 %v972, %v974
        %v1093 = vmax.f32 %v1092, %v1045
        %v1094 = vmax.f32 %v1093, %v1047
        %1095 = vmax.xlane.f32.xlu0 %v1094
        %v1096 = vpop.xlane.xlu0 %1095
        %v1097 = vmax.f32 %v1049, %v1061
        %v1098 = vmax.f32 %v1050, %v1066
        %v1099 = vmax.f32 %v1051, %v1071
        %v1100 = vmax.f32 %v1052, %v1076
        %v1101 = vmax.f32 %v1053, %v1081
        %v1102 = vmax.f32 %v1054, %v1086
        %v1103 = vmax.f32 %v1055, %v1091
        %v1104 = vmax.f32 %v1056, %v1096
        %v1105 = vsub.f32 %v1049, %v1097
        %v1106 = vsub.f32 %v1050, %v1098
        %v1107 = vsub.f32 %v1051, %v1099
        %v1108 = vsub.f32 %v1052, %v1100
        %v1109 = vsub.f32 %v1053, %v1101
        %v1110 = vsub.f32 %v1054, %v1102
        %v1111 = vsub.f32 %v1055, %v1103
        %v1112 = vsub.f32 %v1056, %v1104
        %v1113 = vmul.f32 %v1105, 1.442695
        %v1114 = vpow.pop %v1113
        %v1115 = vmul.f32 %v1106, 1.442695
        %v1116 = vpow.pop %v1115
        %v1117 = vmul.f32 %v1107, 1.442695
        %v1118 = vpow.pop %v1117
        %v1119 = vmul.f32 %v1108, 1.442695
        %v1120 = vpow.pop %v1119
        %v1121 = vmul.f32 %v1109, 1.442695
        %v1122 = vpow.pop %v1121
        %v1123 = vmul.f32 %v1110, 1.442695
        %v1124 = vpow.pop %v1123
        %v1125 = vmul.f32 %v1111, 1.442695
        %v1126 = vpow.pop %v1125
        %v1127 = vmul.f32 %v1112, 1.442695
        %v1128 = vpow.pop %v1127
        %v1129 = vld [vmem:[#allocation4] sm:$0xff]
        %v1130 = vld [vmem:[#allocation4 + $0x8] sm:$0xff]
        %v1131 = vld [vmem:[#allocation4 + $0x10] sm:$0xff]
        %v1132 = vld [vmem:[#allocation4 + $0x18] sm:$0xff]
        %v1133 = vld [vmem:[#allocation4 + $0x20] sm:$0xff]
        %v1134 = vld [vmem:[#allocation4 + $0x28] sm:$0xff]
        %v1135 = vld [vmem:[#allocation4 + $0x30] sm:$0xff]
        %v1136 = vld [vmem:[#allocation4 + $0x38] sm:$0xff]
        %v1137 = vmul.f32 %v1114, %v1129
        %v1138 = vmul.f32 %v1116, %v1130
        %v1139 = vmul.f32 %v1118, %v1131
        %v1140 = vmul.f32 %v1120, %v1132
        %v1141 = vmul.f32 %v1122, %v1133
        %v1142 = vmul.f32 %v1124, %v1134
        %v1143 = vmul.f32 %v1126, %v1135
        %v1144 = vmul.f32 %v1128, %v1136
        %1146 = vset.pattern.permute.xlu0 0
        %1147 = vperm.xlu0 %1146, %v1097
        %v1148 = vpop.permute.xlu0 %1147
        %1151 = vset.pattern.permute.xlu0 0
        %1152 = vperm.xlu0 %1151, %v1098
        %v1153 = vpop.permute.xlu0 %1152
        %1156 = vset.pattern.permute.xlu0 0
        %1157 = vperm.xlu0 %1156, %v1099
        %v1158 = vpop.permute.xlu0 %1157
        %1161 = vset.pattern.permute.xlu0 0
        %1162 = vperm.xlu0 %1161, %v1100
        %v1163 = vpop.permute.xlu0 %1162
        %1166 = vset.pattern.permute.xlu0 0
        %1167 = vperm.xlu0 %1166, %v1101
        %v1168 = vpop.permute.xlu0 %1167
        %1171 = vset.pattern.permute.xlu0 0
        %1172 = vperm.xlu0 %1171, %v1102
        %v1173 = vpop.permute.xlu0 %1172
        %1176 = vset.pattern.permute.xlu0 0
        %1177 = vperm.xlu0 %1176, %v1103
        %v1178 = vpop.permute.xlu0 %1177
        %1181 = vset.pattern.permute.xlu0 0
        %1182 = vperm.xlu0 %1181, %v1104
        %v1183 = vpop.permute.xlu0 %1182
        %v1185 = vsub.f32 %v938, %v1148
        %v1186 = vsub.f32 %v940, %v1148
        %v1187 = vsub.f32 %v1011, %v1148
        %v1188 = vsub.f32 %v1013, %v1148
        %v1189 = vsub.f32 %v942, %v1153
        %v1190 = vsub.f32 %v944, %v1153
        %v1191 = vsub.f32 %v1015, %v1153
        %v1192 = vsub.f32 %v1017, %v1153
        %v1193 = vsub.f32 %v948, %v1158
        %v1194 = vsub.f32 %v950, %v1158
        %v1195 = vsub.f32 %v1021, %v1158
        %v1196 = vsub.f32 %v1023, %v1158
        %v1197 = vsub.f32 %v952, %v1163
        %v1198 = vsub.f32 %v954, %v1163
        %v1199 = vsub.f32 %v1025, %v1163
        %v1200 = vsub.f32 %v1027, %v1163
        %v1201 = vsub.f32 %v958, %v1168
        %v1202 = vsub.f32 %v960, %v1168
        %v1203 = vsub.f32 %v1031, %v1168
        %v1204 = vsub.f32 %v1033, %v1168
        %v1205 = vsub.f32 %v962, %v1173
        %v1206 = vsub.f32 %v964, %v1173
        %v1207 = vsub.f32 %v1035, %v1173
        %v1208 = vsub.f32 %v1037, %v1173
        %v1209 = vsub.f32 %v968, %v1178
        %v1210 = vsub.f32 %v970, %v1178
        %v1211 = vsub.f32 %v1041, %v1178
        %v1212 = vsub.f32 %v1043, %v1178
        %v1213 = vsub.f32 %v972, %v1183
        %v1214 = vsub.f32 %v974, %v1183
        %v1215 = vsub.f32 %v1045, %v1183
        %v1216 = vsub.f32 %v1047, %v1183
        %v1217 = vmul.f32 %v1185, 1.442695
        %v1218 = vpow.pop %v1217
        %v1219 = vmul.f32 %v1186, 1.442695
        %v1220 = vpow.pop %v1219
        %v1221 = vmul.f32 %v1187, 1.442695
        %v1222 = vpow.pop %v1221
        %v1223 = vmul.f32 %v1188, 1.442695
        %v1224 = vpow.pop %v1223
        %v1225 = vmul.f32 %v1189, 1.442695
        %v1226 = vpow.pop %v1225
        %v1227 = vmul.f32 %v1190, 1.442695
        %v1228 = vpow.pop %v1227
        %v1229 = vmul.f32 %v1191, 1.442695
        %v1230 = vpow.pop %v1229
        %v1231 = vmul.f32 %v1192, 1.442695
        %v1232 = vpow.pop %v1231
        %v1233 = vmul.f32 %v1193, 1.442695
        %v1234 = vpow.pop %v1233
        %v1235 = vmul.f32 %v1194, 1.442695
        %v1236 = vpow.pop %v1235
        %v1237 = vmul.f32 %v1195, 1.442695
        %v1238 = vpow.pop %v1237
        %v1239 = vmul.f32 %v1196, 1.442695
        %v1240 = vpow.pop %v1239
        %v1241 = vmul.f32 %v1197, 1.442695
        %v1242 = vpow.pop %v1241
        %v1243 = vmul.f32 %v1198, 1.442695
        %v1244 = vpow.pop %v1243
        %v1245 = vmul.f32 %v1199, 1.442695
        %v1246 = vpow.pop %v1245
        %v1247 = vmul.f32 %v1200, 1.442695
        %v1248 = vpow.pop %v1247
        %v1249 = vmul.f32 %v1201, 1.442695
        %v1250 = vpow.pop %v1249
        %v1251 = vmul.f32 %v1202, 1.442695
        %v1252 = vpow.pop %v1251
        %v1253 = vmul.f32 %v1203, 1.442695
        %v1254 = vpow.pop %v1253
        %v1255 = vmul.f32 %v1204, 1.442695
        %v1256 = vpow.pop %v1255
        %v1257 = vmul.f32 %v1205, 1.442695
        %v1258 = vpow.pop %v1257
        %v1259 = vmul.f32 %v1206, 1.442695
        %v1260 = vpow.pop %v1259
        %v1261 = vmul.f32 %v1207, 1.442695
        %v1262 = vpow.pop %v1261
        %v1263 = vmul.f32 %v1208, 1.442695
        %v1264 = vpow.pop %v1263
        %v1265 = vmul.f32 %v1209, 1.442695
        %v1266 = vpow.pop %v1265
        %v1267 = vmul.f32 %v1210, 1.442695
        %v1268 = vpow.pop %v1267
        %v1269 = vmul.f32 %v1211, 1.442695
        %v1270 = vpow.pop %v1269
        %v1271 = vmul.f32 %v1212, 1.442695
        %v1272 = vpow.pop %v1271
        %v1273 = vmul.f32 %v1213, 1.442695
        %v1274 = vpow.pop %v1273
        %v1275 = vmul.f32 %v1214, 1.442695
        %v1276 = vpow.pop %v1275
        %v1277 = vmul.f32 %v1215, 1.442695
        %v1278 = vpow.pop %v1277
        %v1279 = vmul.f32 %v1216, 1.442695
        %v1280 = vpow.pop %v1279
        %v1281 = vadd.f32 %v1218, %v1220
        %v1282 = vadd.f32 %v1281, %v1222
        %v1283 = vadd.f32 %v1282, %v1224
        %1284 = vadd.xlane.f32.xlu0 %v1283
        %v1285 = vpop.xlane.xlu0 %1284
        %v1286 = vadd.f32 %v1226, %v1228
        %v1287 = vadd.f32 %v1286, %v1230
        %v1288 = vadd.f32 %v1287, %v1232
        %1289 = vadd.xlane.f32.xlu0 %v1288
        %v1290 = vpop.xlane.xlu0 %1289
        %v1291 = vadd.f32 %v1234, %v1236
        %v1292 = vadd.f32 %v1291, %v1238
        %v1293 = vadd.f32 %v1292, %v1240
        %1294 = vadd.xlane.f32.xlu0 %v1293
        %v1295 = vpop.xlane.xlu0 %1294
        %v1296 = vadd.f32 %v1242, %v1244
        %v1297 = vadd.f32 %v1296, %v1246
        %v1298 = vadd.f32 %v1297, %v1248
        %1299 = vadd.xlane.f32.xlu0 %v1298
        %v1300 = vpop.xlane.xlu0 %1299
        %v1301 = vadd.f32 %v1250, %v1252
        %v1302 = vadd.f32 %v1301, %v1254
        %v1303 = vadd.f32 %v1302, %v1256
        %1304 = vadd.xlane.f32.xlu0 %v1303
        %v1305 = vpop.xlane.xlu0 %1304
        %v1306 = vadd.f32 %v1258, %v1260
        %v1307 = vadd.f32 %v1306, %v1262
        %v1308 = vadd.f32 %v1307, %v1264
        %1309 = vadd.xlane.f32.xlu0 %v1308
        %v1310 = vpop.xlane.xlu0 %1309
        %v1311 = vadd.f32 %v1266, %v1268
        %v1312 = vadd.f32 %v1311, %v1270
        %v1313 = vadd.f32 %v1312, %v1272
        %1314 = vadd.xlane.f32.xlu0 %v1313
        %v1315 = vpop.xlane.xlu0 %1314
        %v1316 = vadd.f32 %v1274, %v1276
        %v1317 = vadd.f32 %v1316, %v1278
        %v1318 = vadd.f32 %v1317, %v1280
        %1319 = vadd.xlane.f32.xlu0 %v1318
        %v1320 = vpop.xlane.xlu0 %1319
        %v1321 = vadd.f32 %v1137, %v1285
        %v1322 = vadd.f32 %v1138, %v1290
        %v1323 = vadd.f32 %v1139, %v1295
        %v1324 = vadd.f32 %v1140, %v1300
        %v1325 = vadd.f32 %v1141, %v1305
        %v1326 = vadd.f32 %v1142, %v1310
        %v1327 = vadd.f32 %v1143, %v1315
        %v1328 = vadd.f32 %v1144, %v1320
        %vm1329 = vcmask 7168
        %1330 = vst.msk [vmem:[#allocation4] sm:$0xff] %vm1329, %v1321
        %1331 = vst.msk [vmem:[#allocation4 + $0x8] sm:$0xff] %vm1329, %v1322
        %1332 = vst.msk [vmem:[#allocation4 + $0x10] sm:$0xff] %vm1329, %v1323
        %1333 = vst.msk [vmem:[#allocation4 + $0x18] sm:$0xff] %vm1329, %v1324
        %1334 = vst.msk [vmem:[#allocation4 + $0x20] sm:$0xff] %vm1329, %v1325
        %1335 = vst.msk [vmem:[#allocation4 + $0x28] sm:$0xff] %vm1329, %v1326
        %1336 = vst.msk [vmem:[#allocation4 + $0x30] sm:$0xff] %vm1329, %v1327
        %1337 = vst.msk [vmem:[#allocation4 + $0x38] sm:$0xff] %vm1329, %v1328
        %1338 = vst.msk [vmem:[#allocation3] sm:$0xff] %vm1329, %v1097
        %1339 = vst.msk [vmem:[#allocation3 + $0x8] sm:$0xff] %vm1329, %v1098
        %1340 = vst.msk [vmem:[#allocation3 + $0x10] sm:$0xff] %vm1329, %v1099
        %1341 = vst.msk [vmem:[#allocation3 + $0x18] sm:$0xff] %vm1329, %v1100
        %1342 = vst.msk [vmem:[#allocation3 + $0x20] sm:$0xff] %vm1329, %v1101
        %1343 = vst.msk [vmem:[#allocation3 + $0x28] sm:$0xff] %vm1329, %v1102
        %1344 = vst.msk [vmem:[#allocation3 + $0x30] sm:$0xff] %vm1329, %v1103
        %1345 = vst.msk [vmem:[#allocation3 + $0x38] sm:$0xff] %vm1329, %v1104
        %v1346 = vlaneseq
        %v1347 = vand.u32 %v1346, 127
        %v1348 = vadd.s32 %v1347, 128
        %v1349 = vadd.s32 %v1347, 256
        %v1350 = vadd.s32 %v1347, 384
        %s1351 = smul.u32 %s22, 512
        %v1352 = vstv %s1351
        %v1353 = vadd.s32 %v1347, %v1352
        %v1354 = vadd.s32 %v1348, %v1352
        %v1355 = vadd.s32 %v1349, %v1352
        %v1356 = vadd.s32 %v1350, %v1352
        %v1357 = vld [vmem:[%s403] sm:$0xff]
        %v1358 = vld [vmem:[%s403 + $0x8] sm:$0xff]
        %v1359 = vld [vmem:[%s403 + $0x10] sm:$0xff]
        %v1360 = vld [vmem:[%s403 + $0x18] sm:$0xff]
        %v1361 = vld [vmem:[%s403 + $0x20] sm:$0xff]
        %v1362 = vld [vmem:[%s403 + $0x28] sm:$0xff]
        %v1363 = vld [vmem:[%s403 + $0x30] sm:$0xff]
        %v1364 = vld [vmem:[%s403 + $0x38] sm:$0xff]
        %1365 = vset.pattern.permute.xlu0 0
        %1366 = vperm.xlu0 %1365, %v1357
        %v1367 = vpop.permute.xlu0 %1366
        %1368 = vset.pattern.permute.xlu0 0
        %1369 = vperm.xlu0 %1368, %v1358
        %v1370 = vpop.permute.xlu0 %1369
        %1371 = vset.pattern.permute.xlu0 0
        %1372 = vperm.xlu0 %1371, %v1359
        %v1373 = vpop.permute.xlu0 %1372
        %1374 = vset.pattern.permute.xlu0 0
        %1375 = vperm.xlu0 %1374, %v1360
        %v1376 = vpop.permute.xlu0 %1375
        %1377 = vset.pattern.permute.xlu0 0
        %1378 = vperm.xlu0 %1377, %v1361
        %v1379 = vpop.permute.xlu0 %1378
        %1380 = vset.pattern.permute.xlu0 0
        %1381 = vperm.xlu0 %1380, %v1362
        %v1382 = vpop.permute.xlu0 %1381
        %1383 = vset.pattern.permute.xlu0 0
        %1384 = vperm.xlu0 %1383, %v1363
        %v1385 = vpop.permute.xlu0 %1384
        %1386 = vset.pattern.permute.xlu0 0
        %1387 = vperm.xlu0 %1386, %v1364
        %v1388 = vpop.permute.xlu0 %1387
        %vm1389 = vcmp.eq.s32.totalorder %v1353, %v1367
        %vm1390 = vcmp.eq.s32.totalorder %v1354, %v1367
        %vm1391 = vcmp.eq.s32.totalorder %v1355, %v1367
        %vm1392 = vcmp.eq.s32.totalorder %v1356, %v1367
        %vm1393 = vcmp.eq.s32.totalorder %v1353, %v1370
        %vm1394 = vcmp.eq.s32.totalorder %v1354, %v1370
        %vm1395 = vcmp.eq.s32.totalorder %v1355, %v1370
        %vm1396 = vcmp.eq.s32.totalorder %v1356, %v1370
        %vm1397 = vcmp.eq.s32.totalorder %v1353, %v1373
        %vm1398 = vcmp.eq.s32.totalorder %v1354, %v1373
        %vm1399 = vcmp.eq.s32.totalorder %v1355, %v1373
        %vm1400 = vcmp.eq.s32.totalorder %v1356, %v1373
        %vm1401 = vcmp.eq.s32.totalorder %v1353, %v1376
        %vm1402 = vcmp.eq.s32.totalorder %v1354, %v1376
        %vm1403 = vcmp.eq.s32.totalorder %v1355, %v1376
        %vm1404 = vcmp.eq.s32.totalorder %v1356, %v1376
        %vm1405 = vcmp.eq.s32.totalorder %v1353, %v1379
        %vm1406 = vcmp.eq.s32.totalorder %v1354, %v1379
        %vm1407 = vcmp.eq.s32.totalorder %v1355, %v1379
        %vm1408 = vcmp.eq.s32.totalorder %v1356, %v1379
        %vm1409 = vcmp.eq.s32.totalorder %v1353, %v1382
        %vm1410 = vcmp.eq.s32.totalorder %v1354, %v1382
        %vm1411 = vcmp.eq.s32.totalorder %v1355, %v1382
        %vm1412 = vcmp.eq.s32.totalorder %v1356, %v1382
        %vm1413 = vcmp.eq.s32.totalorder %v1353, %v1385
        %vm1414 = vcmp.eq.s32.totalorder %v1354, %v1385
        %vm1415 = vcmp.eq.s32.totalorder %v1355, %v1385
        %vm1416 = vcmp.eq.s32.totalorder %v1356, %v1385
        %vm1417 = vcmp.eq.s32.totalorder %v1353, %v1388
        %vm1418 = vcmp.eq.s32.totalorder %v1354, %v1388
        %vm1419 = vcmp.eq.s32.totalorder %v1355, %v1388
        %vm1420 = vcmp.eq.s32.totalorder %v1356, %v1388
        %v1421 = vld [vmem:[#allocation5] sm:$0xff]
        %v1422 = vld [vmem:[#allocation5 + $0x8] sm:$0xff]
        %v1423 = vld [vmem:[#allocation5 + $0x10] sm:$0xff]
        %v1424 = vld [vmem:[#allocation5 + $0x18] sm:$0xff]
        %v1425 = vld [vmem:[#allocation5 + $0x20] sm:$0xff]
        %v1426 = vld [vmem:[#allocation5 + $0x28] sm:$0xff]
        %v1427 = vld [vmem:[#allocation5 + $0x30] sm:$0xff]
        %v1428 = vld [vmem:[#allocation5 + $0x38] sm:$0xff]
        %v1429 = vsel %vm1389, %v938, 0.0
        %v1430 = vsel %vm1390, %v940, 0.0
        %v1431 = vsel %vm1391, %v1011, 0.0
        %v1432 = vsel %vm1392, %v1013, 0.0
        %v1433 = vsel %vm1393, %v942, 0.0
        %v1434 = vsel %vm1394, %v944, 0.0
        %v1435 = vsel %vm1395, %v1015, 0.0
        %v1436 = vsel %vm1396, %v1017, 0.0
        %v1437 = vsel %vm1397, %v948, 0.0
        %v1438 = vsel %vm1398, %v950, 0.0
        %v1439 = vsel %vm1399, %v1021, 0.0
        %v1440 = vsel %vm1400, %v1023, 0.0
        %v1441 = vsel %vm1401, %v952, 0.0
        %v1442 = vsel %vm1402, %v954, 0.0
        %v1443 = vsel %vm1403, %v1025, 0.0
        %v1444 = vsel %vm1404, %v1027, 0.0
        %v1445 = vsel %vm1405, %v958, 0.0
        %v1446 = vsel %vm1406, %v960, 0.0
        %v1447 = vsel %vm1407, %v1031, 0.0
        %v1448 = vsel %vm1408, %v1033, 0.0
        %v1449 = vsel %vm1409, %v962, 0.0
        %v1450 = vsel %vm1410, %v964, 0.0
        %v1451 = vsel %vm1411, %v1035, 0.0
        %v1452 = vsel %vm1412, %v1037, 0.0
        %v1453 = vsel %vm1413, %v968, 0.0
        %v1454 = vsel %vm1414, %v970, 0.0
        %v1455 = vsel %vm1415, %v1041, 0.0
        %v1456 = vsel %vm1416, %v1043, 0.0
        %v1457 = vsel %vm1417, %v972, 0.0
        %v1458 = vsel %vm1418, %v974, 0.0
        %v1459 = vsel %vm1419, %v1045, 0.0
        %v1460 = vsel %vm1420, %v1047, 0.0
        %v1461 = vadd.f32 %v1429, %v1430
        %v1462 = vadd.f32 %v1461, %v1431
        %v1463 = vadd.f32 %v1462, %v1432
        %1464 = vadd.xlane.f32.xlu0 %v1463
        %v1465 = vpop.xlane.xlu0 %1464
        %v1466 = vadd.f32 %v1433, %v1434
        %v1467 = vadd.f32 %v1466, %v1435
        %v1468 = vadd.f32 %v1467, %v1436
        %1469 = vadd.xlane.f32.xlu0 %v1468
        %v1470 = vpop.xlane.xlu0 %1469
        %v1471 = vadd.f32 %v1437, %v1438
        %v1472 = vadd.f32 %v1471, %v1439
        %v1473 = vadd.f32 %v1472, %v1440
        %1474 = vadd.xlane.f32.xlu0 %v1473
        %v1475 = vpop.xlane.xlu0 %1474
        %v1476 = vadd.f32 %v1441, %v1442
        %v1477 = vadd.f32 %v1476, %v1443
        %v1478 = vadd.f32 %v1477, %v1444
        %1479 = vadd.xlane.f32.xlu0 %v1478
        %v1480 = vpop.xlane.xlu0 %1479
        %v1481 = vadd.f32 %v1445, %v1446
        %v1482 = vadd.f32 %v1481, %v1447
        %v1483 = vadd.f32 %v1482, %v1448
        %1484 = vadd.xlane.f32.xlu0 %v1483
        %v1485 = vpop.xlane.xlu0 %1484
        %v1486 = vadd.f32 %v1449, %v1450
        %v1487 = vadd.f32 %v1486, %v1451
        %v1488 = vadd.f32 %v1487, %v1452
        %1489 = vadd.xlane.f32.xlu0 %v1488
        %v1490 = vpop.xlane.xlu0 %1489
        %v1491 = vadd.f32 %v1453, %v1454
        %v1492 = vadd.f32 %v1491, %v1455
        %v1493 = vadd.f32 %v1492, %v1456
        %1494 = vadd.xlane.f32.xlu0 %v1493
        %v1495 = vpop.xlane.xlu0 %1494
        %v1496 = vadd.f32 %v1457, %v1458
        %v1497 = vadd.f32 %v1496, %v1459
        %v1498 = vadd.f32 %v1497, %v1460
        %1499 = vadd.xlane.f32.xlu0 %v1498
        %v1500 = vpop.xlane.xlu0 %1499
        %v1501 = vadd.f32 %v1421, %v1465
        %v1502 = vadd.f32 %v1422, %v1470
        %v1503 = vadd.f32 %v1423, %v1475
        %v1504 = vadd.f32 %v1424, %v1480
        %v1505 = vadd.f32 %v1425, %v1485
        %v1506 = vadd.f32 %v1426, %v1490
        %v1507 = vadd.f32 %v1427, %v1495
        %v1508 = vadd.f32 %v1428, %v1500
        %1509 = vst.msk [vmem:[#allocation5] sm:$0xff] %vm1329, %v1501
        %1510 = vst.msk [vmem:[#allocation5 + $0x8] sm:$0xff] %vm1329, %v1502
        %1511 = vst.msk [vmem:[#allocation5 + $0x10] sm:$0xff] %vm1329, %v1503
        %1512 = vst.msk [vmem:[#allocation5 + $0x18] sm:$0xff] %vm1329, %v1504
        %1513 = vst.msk [vmem:[#allocation5 + $0x20] sm:$0xff] %vm1329, %v1505
        %1514 = vst.msk [vmem:[#allocation5 + $0x28] sm:$0xff] %vm1329, %v1506
        %1515 = vst.msk [vmem:[#allocation5 + $0x30] sm:$0xff] %vm1329, %v1507
        %1516 = vst.msk [vmem:[#allocation5 + $0x38] sm:$0xff] %vm1329, %v1508
        %p1517 = scmp.eq.s32.totalorder %s22, 3
        // Predicated region
        $region72: #{lm_forward.3} parent=62 // pred_check
          %p1518 = pneg %p1517
        $region73: #{lm_forward.3} parent=62 // pred_check_branch
          %1520 = sbr.rel (%p1518) target = $region75
        $region74: #{lm_forward.3} parent=62 // pred_region
          %v1521 = vld [vmem:[#allocation3] sm:$0xff]
          %v1522 = vld [vmem:[#allocation3 + $0x8] sm:$0xff]
          %v1523 = vld [vmem:[#allocation3 + $0x10] sm:$0xff]
          %v1524 = vld [vmem:[#allocation3 + $0x18] sm:$0xff]
          %v1525 = vld [vmem:[#allocation3 + $0x20] sm:$0xff]
          %v1526 = vld [vmem:[#allocation3 + $0x28] sm:$0xff]
          %v1527 = vld [vmem:[#allocation3 + $0x30] sm:$0xff]
          %v1528 = vld [vmem:[#allocation3 + $0x38] sm:$0xff]
          %v1529 = vld [vmem:[#allocation4] sm:$0xff]
          %v1530 = vld [vmem:[#allocation4 + $0x8] sm:$0xff]
          %v1531 = vld [vmem:[#allocation4 + $0x10] sm:$0xff]
          %v1532 = vld [vmem:[#allocation4 + $0x18] sm:$0xff]
          %v1533 = vld [vmem:[#allocation4 + $0x20] sm:$0xff]
          %v1534 = vld [vmem:[#allocation4 + $0x28] sm:$0xff]
          %v1535 = vld [vmem:[#allocation4 + $0x30] sm:$0xff]
          %v1536 = vld [vmem:[#allocation4 + $0x38] sm:$0xff]
          %v1537 = vlog2.pop %v1529
          %v1538 = vmul.f32 %v1537, 0.6931472
          %v1539 = vlog2.pop %v1530
          %v1540 = vmul.f32 %v1539, 0.6931472
          %v1541 = vlog2.pop %v1531
          %v1542 = vmul.f32 %v1541, 0.6931472
          %v1543 = vlog2.pop %v1532
          %v1544 = vmul.f32 %v1543, 0.6931472
          %v1545 = vlog2.pop %v1533
          %v1546 = vmul.f32 %v1545, 0.6931472
          %v1547 = vlog2.pop %v1534
          %v1548 = vmul.f32 %v1547, 0.6931472
          %v1549 = vlog2.pop %v1535
          %v1550 = vmul.f32 %v1549, 0.6931472
          %v1551 = vlog2.pop %v1536
          %v1552 = vmul.f32 %v1551, 0.6931472
          %v1553 = vadd.f32 %v1521, %v1538
          %v1554 = vadd.f32 %v1522, %v1540
          %v1555 = vadd.f32 %v1523, %v1542
          %v1556 = vadd.f32 %v1524, %v1544
          %v1557 = vadd.f32 %v1525, %v1546
          %v1558 = vadd.f32 %v1526, %v1548
          %v1559 = vadd.f32 %v1527, %v1550
          %v1560 = vadd.f32 %v1528, %v1552
          %v1561 = vld [vmem:[#allocation5] sm:$0xff]
          %v1562 = vld [vmem:[#allocation5 + $0x8] sm:$0xff]
          %v1563 = vld [vmem:[#allocation5 + $0x10] sm:$0xff]
          %v1564 = vld [vmem:[#allocation5 + $0x18] sm:$0xff]
          %v1565 = vld [vmem:[#allocation5 + $0x20] sm:$0xff]
          %v1566 = vld [vmem:[#allocation5 + $0x28] sm:$0xff]
          %v1567 = vld [vmem:[#allocation5 + $0x30] sm:$0xff]
          %v1568 = vld [vmem:[#allocation5 + $0x38] sm:$0xff]
          %v1569 = vsub.f32 %v1553, %v1561
          %v1570 = vsub.f32 %v1554, %v1562
          %v1571 = vsub.f32 %v1555, %v1563
          %v1572 = vsub.f32 %v1556, %v1564
          %v1573 = vsub.f32 %v1557, %v1565
          %v1574 = vsub.f32 %v1558, %v1566
          %v1575 = vsub.f32 %v1559, %v1567
          %v1576 = vsub.f32 %v1560, %v1568
          %1577 = vst.msk [vmem:[%s409] sm:$0xff] %vm1329, %v1569
          %1578 = vst.msk [vmem:[%s409 + $0x8] sm:$0xff] %vm1329, %v1570
          %1579 = vst.msk [vmem:[%s409 + $0x10] sm:$0xff] %vm1329, %v1571
          %1580 = vst.msk [vmem:[%s409 + $0x18] sm:$0xff] %vm1329, %v1572
          %1581 = vst.msk [vmem:[%s409 + $0x20] sm:$0xff] %vm1329, %v1573
          %1582 = vst.msk [vmem:[%s409 + $0x28] sm:$0xff] %vm1329, %v1574
          %1583 = vst.msk [vmem:[%s409 + $0x30] sm:$0xff] %vm1329, %v1575
          %1584 = vst.msk [vmem:[%s409 + $0x38] sm:$0xff] %vm1329, %v1576
        $region75: #{lm_forward.3} parent=62 // pred_fallthru
          _
        %s1585 = smul.u32 8, %s21
        %p1586 = scmp.lt.s32.totalorder %s1585, 15
        %s1587 = scalar_select %p1586, %s1585, 15
        %s1588 = smul.addr %s1587, 8
        %s1589 = scalar_lea.vmem %s6, %s1588
        // Predicated region
        $region76: #{lm_forward.3} parent=62 // pred_check
          %p1590 = pneg %p193
        $region77: #{lm_forward.3} parent=62 // pred_check_branch
          %1592 = sbr.rel (%p1590) target = $region79
        $region78: #{lm_forward.3} parent=62 // pred_region
          %s1593 = smul.u32 8, %s21
        $region79: #{lm_forward.3} parent=62 // pred_fallthru
          _
      $region63: #{lm_forward.3} parent=5 // pred_fallthru
        _
      %p1594 = scmp.le.s32.totalorder 2, %s12
      // Predicated region
      $region80: #{lm_forward.3} parent=5 // pred_check
        %p1595 = pneg %p1594
      $region81: #{lm_forward.3} parent=5 // pred_check_branch
        %1597 = sbr.rel (%p1595) target = $region83
      $region82: #{lm_forward.3} parent=5 // pred_region
        %s1598 = ssub.s32 %s12, 2
        // Predicated region
        $region84: #{lm_forward.3} parent=82 // pred_check
          %p1599 = pneg %p199
        $region85: #{lm_forward.3} parent=82 // pred_check_branch
          %1601 = sbr.rel (%p1599) target = $region87
        $region86: #{lm_forward.3} parent=82 // pred_region
          %s1602 = smul.u32 8, %s23
          %p1603 = scmp.lt.s32.totalorder %s1602, 15
          %s1604 = scalar_select %p1603, %s1602, 15
          %s1605 = smul.addr %s1604, 8
          %s1606 = scalar_lea.vmem %s6, %s1605
        $region87: #{lm_forward.3} parent=82 // pred_fallthru
          _
      $region83: #{lm_forward.3} parent=5 // pred_fallthru
        _
    $region6: #{lm_forward.3} parent=1 // loop_footer
      %s16 = sadd.s32 1, %s12
    $region7: #{lm_forward.3} parent=1 // loop_footer_branch
      %11 = sbr.rel target = $region3
    $region8: #{lm_forward.3} parent=1 // loop_exit
      _

// kernel: lm_forward.2
$region0: #{lm_forward.2}
  #allocation0 [shape = 'u32[]', space=smem, size = 0x4, offset = 0x4, fixed_abs, tag = 'smem constant byte address 0x4 - core index']
  #allocation1 [shape = 'u32[144,128]{1,0:T(1,128)}', space=vmem, size = 0x12000, scoped, tag = 'internal scratch']
  #allocation2 [shape = 'f32[8,128]{1,0:T(8,128)}', space=vmem, size = 0x1000, scoped, tag = 'scratch operand']
  #allocation3 [shape = 'f32[8,128]{1,0:T(8,128)}', space=vmem, size = 0x1000, scoped, tag = 'scratch operand']
  %s0 = inlined_call_operand.vmem [shape: f32[16,8,512], index: 0, kind: input, shape index: {}]
  %s1 = inlined_call_operand.vmem [shape: bf16[128,512], index: 1, kind: input, shape index: {}]
  %s2 = inlined_call_operand.vmem [shape: bf16[16,8,128], index: 2, kind: output, shape index: {}]
  %s3 = sld [smem:[#allocation0]]
  $region45: #{lm_forward.2} parent=0
    _
  %s5 = ssub.s32 1, %s3
  %s6 = scalar_select 0, %s5, %s3
  loop: start=0, step=1, limit=4
  $region2: #{lm_forward.2} parent=0 // loop_pre_header
    _
  $region3: #{lm_forward.2} parent=0 // loop_header
    %s8 = sphi 0, %s12
    %p9 = scmp.ge.s32.totalorder %s8, 4
    %s18 = sphi 0, %s20
    %s21 = sphi 0, %s18
    %s22 = sphi 0, %s21
    %s38 = sphi 0, %s22
    %s42 = sphi 0, %s42
    %s44 = sphi 0, %s42
    %s45 = sphi 0, %s44
    %s59 = sphi 0, %s45
    %s65 = sphi 0, %s67
    %s68 = sphi 0, %s65
    %s69 = sphi 0, %s68
    %s85 = sphi 0, %s69
  $region4: #{lm_forward.2} parent=0 // loop_header_branch
    %11 = sbr.rel (%p9) target = $region8
  $region5: #{lm_forward.2} parent=0 // loop_body
    %s13 = ssub.s32 %s8, 1
    %s14 = ssub.s32 %s8, 2
    %s15 = sadd.s32 %s8, 1
    %s16 = ssub.s32 %s8, %s15
    %p17 = scmp.eq.s32.totalorder %s16, 0
    %s19 = sadd.s32 %s18, 1
    %s20 = scalar_select %p17, %s18, %s19
    %p23 = pneg %p17
    %p24 = scmp.eq.s32.totalorder %s8, 1
    %p25 = por %p23, %p24
    %p26 = scmp.ne.s32.totalorder %s18, %s21
    %p27 = scmp.eq.s32.totalorder %s8, 0
    %p28 = por %p26, %p27
    %p29 = scmp.ne.s32.totalorder %s18, %s21
    %p30 = scmp.eq.s32.totalorder %s13, 1
    %p31 = por %p29, %p30
    %p32 = scmp.ne.s32.totalorder %s21, %s22
    %p33 = scmp.eq.s32.totalorder %s13, 0
    %p34 = por %p32, %p33
    %p35 = scmp.ne.s32.totalorder %s21, %s22
    %p36 = scmp.eq.s32.totalorder %s14, 1
    %p37 = por %p35, %p36
    %p39 = scmp.ne.s32.totalorder %s22, %s38
    %p40 = scmp.eq.s32.totalorder %s14, 0
    %p41 = por %p39, %p40
    %s43 = sadd.s32 %s42, 1
    %p46 = scmp.eq.s32.totalorder %s8, 1
    %p47 = scmp.ne.s32.totalorder %s42, %s44
    %p48 = scmp.eq.s32.totalorder %s8, 0
    %p49 = por %p47, %p48
    %p50 = scmp.ne.s32.totalorder %s42, %s44
    %p51 = scmp.eq.s32.totalorder %s13, 1
    %p52 = por %p50, %p51
    %p53 = scmp.ne.s32.totalorder %s44, %s45
    %p54 = scmp.eq.s32.totalorder %s13, 0
    %p55 = por %p53, %p54
    %p56 = scmp.ne.s32.totalorder %s44, %s45
    %p57 = scmp.eq.s32.totalorder %s14, 1
    %p58 = por %p56, %p57
    %p60 = scmp.ne.s32.totalorder %s45, %s59
    %p61 = scmp.eq.s32.totalorder %s14, 0
    %p62 = por %p60, %p61
    %s63 = ssub.s32 %s8, %s15
    %p64 = scmp.eq.s32.totalorder %s63, 0
    %s66 = sadd.s32 %s65, 1
    %s67 = scalar_select %p64, %s65, %s66
    %p70 = pneg %p64
    %p71 = scmp.eq.s32.totalorder %s8, 1
    %p72 = por %p70, %p71
    %p73 = scmp.ne.s32.totalorder %s65, %s68
    %p74 = scmp.eq.s32.totalorder %s8, 0
    %p75 = por %p73, %p74
    %p76 = scmp.ne.s32.totalorder %s65, %s68
    %p77 = scmp.eq.s32.totalorder %s13, 1
    %p78 = por %p76, %p77
    %p79 = scmp.ne.s32.totalorder %s68, %s69
    %p80 = scmp.eq.s32.totalorder %s13, 0
    %p81 = por %p79, %p80
    %p82 = scmp.ne.s32.totalorder %s68, %s69
    %p83 = scmp.eq.s32.totalorder %s14, 1
    %p84 = por %p82, %p83
    %p86 = scmp.ne.s32.totalorder %s69, %s85
    %p87 = scmp.eq.s32.totalorder %s14, 0
    %p88 = por %p86, %p87
    %p89 = scmp.le.s32.totalorder 1, %s8
    %p90 = scmp.lt.s32.totalorder %s8, 3
    %p91 = pnand %p89, %p90
    %p92 = pneg %p91
    // Predicated region
    $region9: #{lm_forward.2} parent=5 // pred_check
      _
    $region10: #{lm_forward.2} parent=5 // pred_check_branch
      %94 = sbr.rel (%p91) target = $region12
    $region11: #{lm_forward.2} parent=5 // pred_region
      %s95 = ssub.s32 %s8, 1
      // Predicated region
      $region13: #{lm_forward.2} parent=11 // pred_check
        %p96 = pneg %p55
      $region14: #{lm_forward.2} parent=11 // pred_check_branch
        %98 = sbr.rel (%p96) target = $region16
      $region15: #{lm_forward.2} parent=11 // pred_region
        _
      $region16: #{lm_forward.2} parent=11 // pred_fallthru
        _
    $region12: #{lm_forward.2} parent=5 // pred_fallthru
      _
    %p99 = scmp.lt.s32.totalorder %s8, 2
    // Predicated region
    $region17: #{lm_forward.2} parent=5 // pred_check
      %p100 = pneg %p99
    $region18: #{lm_forward.2} parent=5 // pred_check_branch
      %102 = sbr.rel (%p100) target = $region20
    $region19: #{lm_forward.2} parent=5 // pred_region
      // Predicated region
      $region21: #{lm_forward.2} parent=19 // pred_check
        %p103 = pneg %p28
      $region22: #{lm_forward.2} parent=19 // pred_check_branch
        %105 = sbr.rel (%p103) target = $region24
      $region23: #{lm_forward.2} parent=19 // pred_region
        %s106 = smul.u32 8, %s8
        %p107 = scmp.lt.s32.totalorder %s106, 15
        %s108 = scalar_select %p107, %s106, 15
        %s109 = smul.addr %s108, 4
        %s110 = smul.addr %s109, 8
        %s111 = scalar_lea.vmem %s0, %s110
        %s112 = smul.u32 8, %s8
      $region24: #{lm_forward.2} parent=19 // pred_fallthru
        _
    $region20: #{lm_forward.2} parent=5 // pred_fallthru
      _
    %p113 = scmp.le.s32.totalorder 1, %s8
    %p114 = scmp.lt.s32.totalorder %s8, 3
    %p115 = pnand %p113, %p114
    %p116 = pneg %p115
    // Predicated region
    $region25: #{lm_forward.2} parent=5 // pred_check
      _
    $region26: #{lm_forward.2} parent=5 // pred_check_branch
      %118 = sbr.rel (%p115) target = $region28
    $region27: #{lm_forward.2} parent=5 // pred_region
      %s119 = ssub.s32 %s8, 1
      %s120 = smul.u32 8, %s13
      %p121 = scmp.lt.s32.totalorder %s120, 15
      %s122 = scalar_select %p121, %s120, 15
      %s123 = smul.addr %s122, 4
      %s124 = smul.addr %s123, 8
      %s125 = scalar_lea.vmem %s0, %s124
      %p126 = pneg %p34
      %p127 = pneg %p31
      %p128 = pneg %p55
      %p129 = pneg %p52
      %p130 = pneg %p81
      %p131 = pneg %p78
      %s132 = smul.u32 8, %s13
      %p133 = scmp.lt.s32.totalorder %s132, 15
      %s134 = scalar_select %p133, %s132, 15
      %s135 = smul.addr %s134, 4
      %s136 = scalar_lea.vmem %s2, %s135
      %s137 = smul.u32 8, %s13
      %p138 = scmp.lt.s32.totalorder %s137, 15
      %s139 = scalar_select %p138, %s137, 15
      %s140 = smul.addr %s139, 4
      %s141 = smul.addr %s140, 8
      %s142 = scalar_lea.vmem %s0, %s141
      %s143 = smul.u32 8, %s13
      %s144 = smul.u32 8, %s13
      %p145 = scmp.lt.s32.totalorder %s144, 15
      %s146 = scalar_select %p145, %s144, 15
      %s147 = smul.addr %s146, 4
      %s148 = scalar_lea.vmem %s2, %s147
      %s149 = smul.u32 8, %s13
      %p151 = scmp.eq.s32.totalorder %s13, 0
      // Predicated region
      $region29: #{lm_forward.2} parent=27 // pred_check
        %p152 = pneg %p151
      $region30: #{lm_forward.2} parent=27 // pred_check_branch
        %154 = sbr.rel (%p152) target = $region32
      $region31: #{lm_forward.2} parent=27 // pred_region
        %155 = vst [vmem:[#allocation2] sm:$0xff] 0.0
        %156 = vst [vmem:[#allocation3] sm:$0xff] 0.0
      $region32: #{lm_forward.2} parent=27 // pred_fallthru
        _
      %v157 = vld [vmem:[#allocation2] sm:$0xff]
      %v158 = vld [vmem:[#allocation3] sm:$0xff]
      %v159 = vld [vmem:[%s142] sm:$0xff]
      %v160 = vld [vmem:[%s142 + $0x8] sm:$0xff]
      %v161 = vld [vmem:[%s142 + $0x10] sm:$0xff]
      %v162 = vld [vmem:[%s142 + $0x18] sm:$0xff]
      %v163 = vpack.c.bf16 %v157, %v157
      %v164 = vld [vmem:[%s1] sm:$0xff]
      %v165 = vld [vmem:[%s1 + $0x8] sm:$0xff]
      %v166 = vld [vmem:[%s1 + $0x10] sm:$0xff]
      %v167 = vld [vmem:[%s1 + $0x18] sm:$0xff]
      %v168 = vld [vmem:[%s1 + $0x20] sm:$0xff]
      %v169 = vld [vmem:[%s1 + $0x28] sm:$0xff]
      %v170 = vld [vmem:[%s1 + $0x30] sm:$0xff]
      %v171 = vld [vmem:[%s1 + $0x38] sm:$0xff]
      %v172 = vld [vmem:[%s1 + $0x40] sm:$0xff]
      %v173 = vld [vmem:[%s1 + $0x48] sm:$0xff]
      %v174 = vld [vmem:[%s1 + $0x50] sm:$0xff]
      %v175 = vld [vmem:[%s1 + $0x58] sm:$0xff]
      %v176 = vld [vmem:[%s1 + $0x60] sm:$0xff]
      %v177 = vld [vmem:[%s1 + $0x68] sm:$0xff]
      %v178 = vld [vmem:[%s1 + $0x70] sm:$0xff]
      %v179 = vld [vmem:[%s1 + $0x78] sm:$0xff]
      %v180 = vld [vmem:[%s1 + $0x80] sm:$0xff]
      %v181 = vld [vmem:[%s1 + $0x88] sm:$0xff]
      %v182 = vld [vmem:[%s1 + $0x90] sm:$0xff]
      %v183 = vld [vmem:[%s1 + $0x98] sm:$0xff]
      %v184 = vld [vmem:[%s1 + $0xa0] sm:$0xff]
      %v185 = vld [vmem:[%s1 + $0xa8] sm:$0xff]
      %v186 = vld [vmem:[%s1 + $0xb0] sm:$0xff]
      %v187 = vld [vmem:[%s1 + $0xb8] sm:$0xff]
      %v188 = vld [vmem:[%s1 + $0xc0] sm:$0xff]
      %v189 = vld [vmem:[%s1 + $0xc8] sm:$0xff]
      %v190 = vld [vmem:[%s1 + $0xd0] sm:$0xff]
      %v191 = vld [vmem:[%s1 + $0xd8] sm:$0xff]
      %v192 = vld [vmem:[%s1 + $0xe0] sm:$0xff]
      %v193 = vld [vmem:[%s1 + $0xe8] sm:$0xff]
      %v194 = vld [vmem:[%s1 + $0xf0] sm:$0xff]
      %v195 = vld [vmem:[%s1 + $0xf8] sm:$0xff]
      %v228 = vunpack.c.l.b16 %v164
      %v229 = vunpack.c.h.b16 %v164
      %v230 = vunpack.c.l.b16 %v165
      %v231 = vunpack.c.h.b16 %v165
      %v232 = vunpack.c.l.b16 %v166
      %v233 = vunpack.c.h.b16 %v166
      %v234 = vunpack.c.l.b16 %v167
      %v235 = vunpack.c.h.b16 %v167
      %v236 = vunpack.c.l.b16 %v168
      %v237 = vunpack.c.h.b16 %v168
      %v238 = vunpack.c.l.b16 %v169
      %v239 = vunpack.c.h.b16 %v169
      %v240 = vunpack.c.l.b16 %v170
      %v241 = vunpack.c.h.b16 %v170
      %v242 = vunpack.c.l.b16 %v171
      %v243 = vunpack.c.h.b16 %v171
      %v244 = vunpack.c.l.b16 %v172
      %v245 = vunpack.c.h.b16 %v172
      %v246 = vunpack.c.l.b16 %v173
      %v247 = vunpack.c.h.b16 %v173
      %v248 = vunpack.c.l.b16 %v174
      %v249 = vunpack.c.h.b16 %v174
      %v250 = vunpack.c.l.b16 %v175
      %v251 = vunpack.c.h.b16 %v175
      %v252 = vunpack.c.l.b16 %v176
      %v253 = vunpack.c.h.b16 %v176
      %v254 = vunpack.c.l.b16 %v177
      %v255 = vunpack.c.h.b16 %v177
      %v256 = vunpack.c.l.b16 %v178
      %v257 = vunpack.c.h.b16 %v178
      %v258 = vunpack.c.l.b16 %v179
      %v259 = vunpack.c.h.b16 %v179
      %v260 = vunpack.c.l.b16 %v180
      %v261 = vunpack.c.h.b16 %v180
      %v262 = vunpack.c.l.b16 %v181
      %v263 = vunpack.c.h.b16 %v181
      %v264 = vunpack.c.l.b16 %v182
      %v265 = vunpack.c.h.b16 %v182
      %v266 = vunpack.c.l.b16 %v183
      %v267 = vunpack.c.h.b16 %v183
      %v268 = vunpack.c.l.b16 %v184
      %v269 = vunpack.c.h.b16 %v184
      %v270 = vunpack.c.l.b16 %v185
      %v271 = vunpack.c.h.b16 %v185
      %v272 = vunpack.c.l.b16 %v186
      %v273 = vunpack.c.h.b16 %v186
      %v274 = vunpack.c.l.b16 %v187
      %v275 = vunpack.c.h.b16 %v187
      %v276 = vunpack.c.l.b16 %v188
      %v277 = vunpack.c.h.b16 %v188
      %v278 = vunpack.c.l.b16 %v189
      %v279 = vunpack.c.h.b16 %v189
      %v280 = vunpack.c.l.b16 %v190
      %v281 = vunpack.c.h.b16 %v190
      %v282 = vunpack.c.l.b16 %v191
      %v283 = vunpack.c.h.b16 %v191
      %v284 = vunpack.c.l.b16 %v192
      %v285 = vunpack.c.h.b16 %v192
      %v286 = vunpack.c.l.b16 %v193
      %v287 = vunpack.c.h.b16 %v193
      %v288 = vunpack.c.l.b16 %v194
      %v289 = vunpack.c.h.b16 %v194
      %v290 = vunpack.c.l.b16 %v195
      %v291 = vunpack.c.h.b16 %v195
      %v292 = vpack.c.b16 %v232, %v228
      %v293 = vpack.c.b16 %v233, %v229
      %v294 = vpack.c.b16 %v234, %v230
      %v295 = vpack.c.b16 %v235, %v231
      %v296 = vpack.c.b16 %v240, %v236
      %v297 = vpack.c.b16 %v241, %v237
      %v298 = vpack.c.b16 %v242, %v238
      %v299 = vpack.c.b16 %v243, %v239
      %v300 = vpack.c.b16 %v248, %v244
      %v301 = vpack.c.b16 %v249, %v245
      %v302 = vpack.c.b16 %v250, %v246
      %v303 = vpack.c.b16 %v251, %v247
      %v304 = vpack.c.b16 %v256, %v252
      %v305 = vpack.c.b16 %v257, %v253
      %v306 = vpack.c.b16 %v258, %v254
      %v307 = vpack.c.b16 %v259, %v255
      %v308 = vpack.c.b16 %v264, %v260
      %v309 = vpack.c.b16 %v265, %v261
      %v310 = vpack.c.b16 %v266, %v262
      %v311 = vpack.c.b16 %v267, %v263
      %v312 = vpack.c.b16 %v272, %v268
      %v313 = vpack.c.b16 %v273, %v269
      %v314 = vpack.c.b16 %v274, %v270
      %v315 = vpack.c.b16 %v275, %v271
      %v316 = vpack.c.b16 %v280, %v276
      %v317 = vpack.c.b16 %v281, %v277
      %v318 = vpack.c.b16 %v282, %v278
      %v319 = vpack.c.b16 %v283, %v279
      %v320 = vpack.c.b16 %v288, %v284
      %v321 = vpack.c.b16 %v289, %v285
      %v322 = vpack.c.b16 %v290, %v286
      %v323 = vpack.c.b16 %v291, %v287
      %356 = vmatprep.subr.bf16.mxu0 %v321
      %357 = vmatpush1.bf16.msra.mxu0 %v320
      %358 = vmatprep.subr.bf16.mxu0 %v317
      %359 = vmatpush1.bf16.msra.mxu0 %v316
      %360 = vmatprep.subr.bf16.mxu0 %v313
      %361 = vmatpush1.bf16.msra.mxu0 %v312
      %362 = vmatprep.subr.bf16.mxu0 %v309
      %363 = vmatpush1.bf16.msra.mxu0 %v308
      %364 = vmatprep.subr.bf16.mxu0 %v305
      %365 = vmatpush1.bf16.msra.mxu0 %v304
      %366 = vmatprep.subr.bf16.mxu0 %v301
      %367 = vmatpush1.bf16.msra.mxu0 %v300
      %368 = vmatprep.subr.bf16.mxu0 %v297
      %369 = vmatpush1.bf16.msra.mxu0 %v296
      %370 = vmatprep.subr.bf16.mxu0 %v293
      %371 = vmatpush1.bf16.msra.mxu0 %v292
      %372 = vmatprep.subr.bf16.mxu0 0
      %373 = vmatpush2.bf16.msra.mxu0 0
      %374 = vmatprep.subr.bf16.mxu0 0
      %375 = vmatpush2.bf16.msra.mxu0 0
      %376 = vmatprep.subr.bf16.mxu0 0
      %377 = vmatpush2.bf16.msra.mxu0 0
      %378 = vmatprep.subr.bf16.mxu0 0
      %379 = vmatpush2.bf16.msra.mxu0 0
      %380 = vmatprep.subr.bf16.mxu0 0
      %381 = vmatpush2.bf16.msra.mxu0 0
      %382 = vmatprep.subr.bf16.mxu0 0
      %383 = vmatpush2.bf16.msra.mxu0 0
      %384 = vmatprep.subr.bf16.mxu0 0
      %385 = vmatpush2.bf16.msra.mxu0 0
      %386 = vmatprep.subr.bf16.mxu0 0
      %387 = vmatpush2.bf16.msra.mxu0 0
      %388 = vmatprep.mubr.bf16.mxu0 0
      %389 = vmatmul.mubr.bf16.gmra.mxu0 %v163
      %v390 = vpop.f32.mrf.mxu0
      %v391 = vadd.f32 0.0, %v390
      %v392 = vpop.f32.mrf.mxu0
      %v393 = vadd.f32 0.0, %v392
      %v394 = vpop.f32.mrf.mxu0
      %v395 = vpop.f32.mrf.mxu0
      %396 = vdwg.mxu0
      %397 = vmatprep.subr.bf16.mxu0 %v323
      %398 = vmatpush1.bf16.msra.mxu0 %v322
      %399 = vmatprep.subr.bf16.mxu0 %v319
      %400 = vmatpush1.bf16.msra.mxu0 %v318
      %401 = vmatprep.subr.bf16.mxu0 %v315
      %402 = vmatpush1.bf16.msra.mxu0 %v314
      %403 = vmatprep.subr.bf16.mxu0 %v311
      %404 = vmatpush1.bf16.msra.mxu0 %v310
      %405 = vmatprep.subr.bf16.mxu0 %v307
      %406 = vmatpush1.bf16.msra.mxu0 %v306
      %407 = vmatprep.subr.bf16.mxu0 %v303
      %408 = vmatpush1.bf16.msra.mxu0 %v302
      %409 = vmatprep.subr.bf16.mxu0 %v299
      %410 = vmatpush1.bf16.msra.mxu0 %v298
      %411 = vmatprep.subr.bf16.mxu0 %v295
      %412 = vmatpush1.bf16.msra.mxu0 %v294
      %413 = vmatprep.subr.bf16.mxu0 0
      %414 = vmatpush2.bf16.msra.mxu0 0
      %415 = vmatprep.subr.bf16.mxu0 0
      %416 = vmatpush2.bf16.msra.mxu0 0
      %417 = vmatprep.subr.bf16.mxu0 0
      %418 = vmatpush2.bf16.msra.mxu0 0
      %419 = vmatprep.subr.bf16.mxu0 0
      %420 = vmatpush2.bf16.msra.mxu0 0
      %421 = vmatprep.subr.bf16.mxu0 0
      %422 = vmatpush2.bf16.msra.mxu0 0
      %423 = vmatprep.subr.bf16.mxu0 0
      %424 = vmatpush2.bf16.msra.mxu0 0
      %425 = vmatprep.subr.bf16.mxu0 0
      %426 = vmatpush2.bf16.msra.mxu0 0
      %427 = vmatprep.subr.bf16.mxu0 0
      %428 = vmatpush2.bf16.msra.mxu0 0
      %429 = vmatprep.mubr.bf16.mxu0 0
      %430 = vmatmul.mubr.bf16.gmra.mxu0 %v163
      %v431 = vpop.f32.mrf.mxu0
      %v432 = vadd.f32 0.0, %v431
      %v433 = vpop.f32.mrf.mxu0
      %v434 = vadd.f32 0.0, %v433
      %v435 = vpop.f32.mrf.mxu0
      %v436 = vpop.f32.mrf.mxu0
      %437 = vdwg.mxu0
      %v438 = vadd.f32 %v159, %v391
      %v439 = vadd.f32 %v160, %v393
      %v440 = vadd.f32 %v161, %v432
      %v441 = vadd.f32 %v162, %v434
      %v442 = vxor.u32 %v438, 2147483648
      %v443 = vmul.f32 %v442, 1.442695
      %v444 = vpow.pop %v443
      %v445 = vadd.f32 %v444, 1.0
      %v446 = vrcp.pop %v445
      %v447 = vmul.f32 1.0, %v446
      %v448 = vxor.u32 %v439, 2147483648
      %v449 = vmul.f32 %v448, 1.442695
      %v450 = vpow.pop %v449
      %v451 = vadd.f32 %v450, 1.0
      %v452 = vrcp.pop %v451
      %v453 = vmul.f32 1.0, %v452
      %v454 = vtanh.pop %v440
      %v455 = vxor.u32 %v441, 2147483648
      %v456 = vmul.f32 %v455, 1.442695
      %v457 = vpow.pop %v456
      %v458 = vadd.f32 %v457, 1.0
      %v459 = vrcp.pop %v458
      %v460 = vmul.f32 1.0, %v459
      %v461 = vmul.f32 %v453, %v158
      %v462 = vmul.f32 %v447, %v454
      %v463 = vadd.f32 %v461, %v462
      %v464 = vtanh.pop %v463
      %v465 = vmul.f32 %v460, %v464
      %v466 = vpack.c.bf16 %v465, %v465
      %467 = vst [vmem:[%s148] sm:$0xf] %v466
      %s468 = scalar_lea.vmem %s142, 32
      %v469 = vld [vmem:[%s468] sm:$0xff]
      %v470 = vld [vmem:[%s468 + $0x8] sm:$0xff]
      %v471 = vld [vmem:[%s468 + $0x10] sm:$0xff]
      %v472 = vld [vmem:[%s468 + $0x18] sm:$0xff]
      %v473 = vld [vmem:[%s1] sm:$0xff]
      %v474 = vld [vmem:[%s1 + $0x8] sm:$0xff]
      %v475 = vld [vmem:[%s1 + $0x10] sm:$0xff]
      %v476 = vld [vmem:[%s1 + $0x18] sm:$0xff]
      %v477 = vld [vmem:[%s1 + $0x20] sm:$0xff]
      %v478 = vld [vmem:[%s1 + $0x28] sm:$0xff]
      %v479 = vld [vmem:[%s1 + $0x30] sm:$0xff]
      %v480 = vld [vmem:[%s1 + $0x38] sm:$0xff]
      %v481 = vld [vmem:[%s1 + $0x40] sm:$0xff]
      %v482 = vld [vmem:[%s1 + $0x48] sm:$0xff]
      %v483 = vld [vmem:[%s1 + $0x50] sm:$0xff]
      %v484 = vld [vmem:[%s1 + $0x58] sm:$0xff]
      %v485 = vld [vmem:[%s1 + $0x60] sm:$0xff]
      %v486 = vld [vmem:[%s1 + $0x68] sm:$0xff]
      %v487 = vld [vmem:[%s1 + $0x70] sm:$0xff]
      %v488 = vld [vmem:[%s1 + $0x78] sm:$0xff]
      %v489 = vld [vmem:[%s1 + $0x80] sm:$0xff]
      %v490 = vld [vmem:[%s1 + $0x88] sm:$0xff]
      %v491 = vld [vmem:[%s1 + $0x90] sm:$0xff]
      %v492 = vld [vmem:[%s1 + $0x98] sm:$0xff]
      %v493 = vld [vmem:[%s1 + $0xa0] sm:$0xff]
      %v494 = vld [vmem:[%s1 + $0xa8] sm:$0xff]
      %v495 = vld [vmem:[%s1 + $0xb0] sm:$0xff]
      %v496 = vld [vmem:[%s1 + $0xb8] sm:$0xff]
      %v497 = vld [vmem:[%s1 + $0xc0] sm:$0xff]
      %v498 = vld [vmem:[%s1 + $0xc8] sm:$0xff]
      %v499 = vld [vmem:[%s1 + $0xd0] sm:$0xff]
      %v500 = vld [vmem:[%s1 + $0xd8] sm:$0xff]
      %v501 = vld [vmem:[%s1 + $0xe0] sm:$0xff]
      %v502 = vld [vmem:[%s1 + $0xe8] sm:$0xff]
      %v503 = vld [vmem:[%s1 + $0xf0] sm:$0xff]
      %v504 = vld [vmem:[%s1 + $0xf8] sm:$0xff]
      %v537 = vunpack.c.l.b16 %v473
      %v538 = vunpack.c.h.b16 %v473
      %v539 = vunpack.c.l.b16 %v474
      %v540 = vunpack.c.h.b16 %v474
      %v541 = vunpack.c.l.b16 %v475
      %v542 = vunpack.c.h.b16 %v475
      %v543 = vunpack.c.l.b16 %v476
      %v544 = vunpack.c.h.b16 %v476
      %v545 = vunpack.c.l.b16 %v477
      %v546 = vunpack.c.h.b16 %v477
      %v547 = vunpack.c.l.b16 %v478
      %v548 = vunpack.c.h.b16 %v478
      %v549 = vunpack.c.l.b16 %v479
      %v550 = vunpack.c.h.b16 %v479
      %v551 = vunpack.c.l.b16 %v480
      %v552 = vunpack.c.h.b16 %v480
      %v553 = vunpack.c.l.b16 %v481
      %v554 = vunpack.c.h.b16 %v481
      %v555 = vunpack.c.l.b16 %v482
      %v556 = vunpack.c.h.b16 %v482
      %v557 = vunpack.c.l.b16 %v483
      %v558 = vunpack.c.h.b16 %v483
      %v559 = vunpack.c.l.b16 %v484
      %v560 = vunpack.c.h.b16 %v484
      %v561 = vunpack.c.l.b16 %v485
      %v562 = vunpack.c.h.b16 %v485
      %v563 = vunpack.c.l.b16 %v486
      %v564 = vunpack.c.h.b16 %v486
      %v565 = vunpack.c.l.b16 %v487
      %v566 = vunpack.c.h.b16 %v487
      %v567 = vunpack.c.l.b16 %v488
      %v568 = vunpack.c.h.b16 %v488
      %v569 = vunpack.c.l.b16 %v489
      %v570 = vunpack.c.h.b16 %v489
      %v571 = vunpack.c.l.b16 %v490
      %v572 = vunpack.c.h.b16 %v490
      %v573 = vunpack.c.l.b16 %v491
      %v574 = vunpack.c.h.b16 %v491
      %v575 = vunpack.c.l.b16 %v492
      %v576 = vunpack.c.h.b16 %v492
      %v577 = vunpack.c.l.b16 %v493
      %v578 = vunpack.c.h.b16 %v493
      %v579 = vunpack.c.l.b16 %v494
      %v580 = vunpack.c.h.b16 %v494
      %v581 = vunpack.c.l.b16 %v495
      %v582 = vunpack.c.h.b16 %v495
      %v583 = vunpack.c.l.b16 %v496
      %v584 = vunpack.c.h.b16 %v496
      %v585 = vunpack.c.l.b16 %v497
      %v586 = vunpack.c.h.b16 %v497
      %v587 = vunpack.c.l.b16 %v498
      %v588 = vunpack.c.h.b16 %v498
      %v589 = vunpack.c.l.b16 %v499
      %v590 = vunpack.c.h.b16 %v499
      %v591 = vunpack.c.l.b16 %v500
      %v592 = vunpack.c.h.b16 %v500
      %v593 = vunpack.c.l.b16 %v501
      %v594 = vunpack.c.h.b16 %v501
      %v595 = vunpack.c.l.b16 %v502
      %v596 = vunpack.c.h.b16 %v502
      %v597 = vunpack.c.l.b16 %v503
      %v598 = vunpack.c.h.b16 %v503
      %v599 = vunpack.c.l.b16 %v504
      %v600 = vunpack.c.h.b16 %v504
      %v601 = vpack.c.b16 %v541, %v537
      %v602 = vpack.c.b16 %v542, %v538
      %v603 = vpack.c.b16 %v543, %v539
      %v604 = vpack.c.b16 %v544, %v540
      %v605 = vpack.c.b16 %v549, %v545
      %v606 = vpack.c.b16 %v550, %v546
      %v607 = vpack.c.b16 %v551, %v547
      %v608 = vpack.c.b16 %v552, %v548
      %v609 = vpack.c.b16 %v557, %v553
      %v610 = vpack.c.b16 %v558, %v554
      %v611 = vpack.c.b16 %v559, %v555
      %v612 = vpack.c.b16 %v560, %v556
      %v613 = vpack.c.b16 %v565, %v561
      %v614 = vpack.c.b16 %v566, %v562
      %v615 = vpack.c.b16 %v567, %v563
      %v616 = vpack.c.b16 %v568, %v564
      %v617 = vpack.c.b16 %v573, %v569
      %v618 = vpack.c.b16 %v574, %v570
      %v619 = vpack.c.b16 %v575, %v571
      %v620 = vpack.c.b16 %v576, %v572
      %v621 = vpack.c.b16 %v581, %v577
      %v622 = vpack.c.b16 %v582, %v578
      %v623 = vpack.c.b16 %v583, %v579
      %v624 = vpack.c.b16 %v584, %v580
      %v625 = vpack.c.b16 %v589, %v585
      %v626 = vpack.c.b16 %v590, %v586
      %v627 = vpack.c.b16 %v591, %v587
      %v628 = vpack.c.b16 %v592, %v588
      %v629 = vpack.c.b16 %v597, %v593
      %v630 = vpack.c.b16 %v598, %v594
      %v631 = vpack.c.b16 %v599, %v595
      %v632 = vpack.c.b16 %v600, %v596
      %665 = vmatprep.subr.bf16.mxu0 %v630
      %666 = vmatpush1.bf16.msra.mxu0 %v629
      %667 = vmatprep.subr.bf16.mxu0 %v626
      %668 = vmatpush1.bf16.msra.mxu0 %v625
      %669 = vmatprep.subr.bf16.mxu0 %v622
      %670 = vmatpush1.bf16.msra.mxu0 %v621
      %671 = vmatprep.subr.bf16.mxu0 %v618
      %672 = vmatpush1.bf16.msra.mxu0 %v617
      %673 = vmatprep.subr.bf16.mxu0 %v614
      %674 = vmatpush1.bf16.msra.mxu0 %v613
      %675 = vmatprep.subr.bf16.mxu0 %v610
      %676 = vmatpush1.bf16.msra.mxu0 %v609
      %677 = vmatprep.subr.bf16.mxu0 %v606
      %678 = vmatpush1.bf16.msra.mxu0 %v605
      %679 = vmatprep.subr.bf16.mxu0 %v602
      %680 = vmatpush1.bf16.msra.mxu0 %v601
      %681 = vmatprep.subr.bf16.mxu0 0
      %682 = vmatpush2.bf16.msra.mxu0 0
      %683 = vmatprep.subr.bf16.mxu0 0
      %684 = vmatpush2.bf16.msra.mxu0 0
      %685 = vmatprep.subr.bf16.mxu0 0
      %686 = vmatpush2.bf16.msra.mxu0 0
      %687 = vmatprep.subr.bf16.mxu0 0
      %688 = vmatpush2.bf16.msra.mxu0 0
      %689 = vmatprep.subr.bf16.mxu0 0
      %690 = vmatpush2.bf16.msra.mxu0 0
      %691 = vmatprep.subr.bf16.mxu0 0
      %692 = vmatpush2.bf16.msra.mxu0 0
      %693 = vmatprep.subr.bf16.mxu0 0
      %694 = vmatpush2.bf16.msra.mxu0 0
      %695 = vmatprep.subr.bf16.mxu0 0
      %696 = vmatpush2.bf16.msra.mxu0 0
      %697 = vmatprep.mubr.bf16.mxu0 0
      %698 = vmatmul.mubr.bf16.gmra.mxu0 %v466
      %v699 = vpop.f32.mrf.mxu0
      %v700 = vadd.f32 0.0, %v699
      %v701 = vpop.f32.mrf.mxu0
      %v702 = vadd.f32 0.0, %v701
      %v703 = vpop.f32.mrf.mxu0
      %v704 = vpop.f32.mrf.mxu0
      %705 = vdwg.mxu0
      %706 = vmatprep.subr.bf16.mxu0 %v632
      %707 = vmatpush1.bf16.msra.mxu0 %v631
      %708 = vmatprep.subr.bf16.mxu0 %v628
      %709 = vmatpush1.bf16.msra.mxu0 %v627
      %710 = vmatprep.subr.bf16.mxu0 %v624
      %711 = vmatpush1.bf16.msra.mxu0 %v623
      %712 = vmatprep.subr.bf16.mxu0 %v620
      %713 = vmatpush1.bf16.msra.mxu0 %v619
      %714 = vmatprep.subr.bf16.mxu0 %v616
      %715 = vmatpush1.bf16.msra.mxu0 %v615
      %716 = vmatprep.subr.bf16.mxu0 %v612
      %717 = vmatpush1.bf16.msra.mxu0 %v611
      %718 = vmatprep.subr.bf16.mxu0 %v608
      %719 = vmatpush1.bf16.msra.mxu0 %v607
      %720 = vmatprep.subr.bf16.mxu0 %v604
      %721 = vmatpush1.bf16.msra.mxu0 %v603
      %722 = vmatprep.subr.bf16.mxu0 0
      %723 = vmatpush2.bf16.msra.mxu0 0
      %724 = vmatprep.subr.bf16.mxu0 0
      %725 = vmatpush2.bf16.msra.mxu0 0
      %726 = vmatprep.subr.bf16.mxu0 0
      %727 = vmatpush2.bf16.msra.mxu0 0
      %728 = vmatprep.subr.bf16.mxu0 0
      %729 = vmatpush2.bf16.msra.mxu0 0
      %730 = vmatprep.subr.bf16.mxu0 0
      %731 = vmatpush2.bf16.msra.mxu0 0
      %732 = vmatprep.subr.bf16.mxu0 0
      %733 = vmatpush2.bf16.msra.mxu0 0
      %734 = vmatprep.subr.bf16.mxu0 0
      %735 = vmatpush2.bf16.msra.mxu0 0
      %736 = vmatprep.subr.bf16.mxu0 0
      %737 = vmatpush2.bf16.msra.mxu0 0
      %738 = vmatprep.mubr.bf16.mxu0 0
      %739 = vmatmul.mubr.bf16.gmra.mxu0 %v466
      %v740 = vpop.f32.mrf.mxu0
      %v741 = vadd.f32 0.0, %v740
      %v742 = vpop.f32.mrf.mxu0
      %v743 = vadd.f32 0.0, %v742
      %v744 = vpop.f32.mrf.mxu0
      %v745 = vpop.f32.mrf.mxu0
      %746 = vdwg.mxu0
      %v747 = vadd.f32 %v469, %v700
      %v748 = vadd.f32 %v470, %v702
      %v749 = vadd.f32 %v471, %v741
      %v750 = vadd.f32 %v472, %v743
      %v751 = vxor.u32 %v747, 2147483648
      %v752 = vmul.f32 %v751, 1.442695
      %v753 = vpow.pop %v752
      %v754 = vadd.f32 %v753, 1.0
      %v755 = vrcp.pop %v754
      %v756 = vmul.f32 1.0, %v755
      %v757 = vxor.u32 %v748, 2147483648
      %v758 = vmul.f32 %v757, 1.442695
      %v759 = vpow.pop %v758
      %v760 = vadd.f32 %v759, 1.0
      %v761 = vrcp.pop %v760
      %v762 = vmul.f32 1.0, %v761
      %v763 = vtanh.pop %v749
      %v764 = vxor.u32 %v750, 2147483648
      %v765 = vmul.f32 %v764, 1.442695
      %v766 = vpow.pop %v765
      %v767 = vadd.f32 %v766, 1.0
      %v768 = vrcp.pop %v767
      %v769 = vmul.f32 1.0, %v768
      %v770 = vmul.f32 %v762, %v463
      %v771 = vmul.f32 %v756, %v763
      %v772 = vadd.f32 %v770, %v771
      %v773 = vtanh.pop %v772
      %v774 = vmul.f32 %v769, %v773
      %v775 = vpack.c.bf16 %v774, %v774
      %s776 = scalar_lea.vmem %s148, 4
      %777 = vst [vmem:[%s776] sm:$0xf] %v775
      %s778 = scalar_lea.vmem %s142, 64
      %v779 = vld [vmem:[%s778] sm:$0xff]
      %v780 = vld [vmem:[%s778 + $0x8] sm:$0xff]
      %v781 = vld [vmem:[%s778 + $0x10] sm:$0xff]
      %v782 = vld [vmem:[%s778 + $0x18] sm:$0xff]
      %v783 = vld [vmem:[%s1] sm:$0xff]
      %v784 = vld [vmem:[%s1 + $0x8] sm:$0xff]
      %v785 = vld [vmem:[%s1 + $0x10] sm:$0xff]
      %v786 = vld [vmem:[%s1 + $0x18] sm:$0xff]
      %v787 = vld [vmem:[%s1 + $0x20] sm:$0xff]
      %v788 = vld [vmem:[%s1 + $0x28] sm:$0xff]
      %v789 = vld [vmem:[%s1 + $0x30] sm:$0xff]
      %v790 = vld [vmem:[%s1 + $0x38] sm:$0xff]
      %v791 = vld [vmem:[%s1 + $0x40] sm:$0xff]
      %v792 = vld [vmem:[%s1 + $0x48] sm:$0xff]
      %v793 = vld [vmem:[%s1 + $0x50] sm:$0xff]
      %v794 = vld [vmem:[%s1 + $0x58] sm:$0xff]
      %v795 = vld [vmem:[%s1 + $0x60] sm:$0xff]
      %v796 = vld [vmem:[%s1 + $0x68] sm:$0xff]
      %v797 = vld [vmem:[%s1 + $0x70] sm:$0xff]
      %v798 = vld [vmem:[%s1 + $0x78] sm:$0xff]
      %v799 = vld [vmem:[%s1 + $0x80] sm:$0xff]
      %v800 = vld [vmem:[%s1 + $0x88] sm:$0xff]
      %v801 = vld [vmem:[%s1 + $0x90] sm:$0xff]
      %v802 = vld [vmem:[%s1 + $0x98] sm:$0xff]
      %v803 = vld [vmem:[%s1 + $0xa0] sm:$0xff]
      %v804 = vld [vmem:[%s1 + $0xa8] sm:$0xff]
      %v805 = vld [vmem:[%s1 + $0xb0] sm:$0xff]
      %v806 = vld [vmem:[%s1 + $0xb8] sm:$0xff]
      %v807 = vld [vmem:[%s1 + $0xc0] sm:$0xff]
      %v808 = vld [vmem:[%s1 + $0xc8] sm:$0xff]
      %v809 = vld [vmem:[%s1 + $0xd0] sm:$0xff]
      %v810 = vld [vmem:[%s1 + $0xd8] sm:$0xff]
      %v811 = vld [vmem:[%s1 + $0xe0] sm:$0xff]
      %v812 = vld [vmem:[%s1 + $0xe8] sm:$0xff]
      %v813 = vld [vmem:[%s1 + $0xf0] sm:$0xff]
      %v814 = vld [vmem:[%s1 + $0xf8] sm:$0xff]
      %v847 = vunpack.c.l.b16 %v783
      %v848 = vunpack.c.h.b16 %v783
      %v849 = vunpack.c.l.b16 %v784
      %v850 = vunpack.c.h.b16 %v784
      %v851 = vunpack.c.l.b16 %v785
      %v852 = vunpack.c.h.b16 %v785
      %v853 = vunpack.c.l.b16 %v786
      %v854 = vunpack.c.h.b16 %v786
      %v855 = vunpack.c.l.b16 %v787
      %v856 = vunpack.c.h.b16 %v787
      %v857 = vunpack.c.l.b16 %v788
      %v858 = vunpack.c.h.b16 %v788
      %v859 = vunpack.c.l.b16 %v789
      %v860 = vunpack.c.h.b16 %v789
      %v861 = vunpack.c.l.b16 %v790
      %v862 = vunpack.c.h.b16 %v790
      %v863 = vunpack.c.l.b16 %v791
      %v864 = vunpack.c.h.b16 %v791
      %v865 = vunpack.c.l.b16 %v792
      %v866 = vunpack.c.h.b16 %v792
      %v867 = vunpack.c.l.b16 %v793
      %v868 = vunpack.c.h.b16 %v793
      %v869 = vunpack.c.l.b16 %v794
      %v870 = vunpack.c.h.b16 %v794
      %v871 = vunpack.c.l.b16 %v795
      %v872 = vunpack.c.h.b16 %v795
      %v873 = vunpack.c.l.b16 %v796
      %v874 = vunpack.c.h.b16 %v796
      %v875 = vunpack.c.l.b16 %v797
      %v876 = vunpack.c.h.b16 %v797
      %v877 = vunpack.c.l.b16 %v798
      %v878 = vunpack.c.h.b16 %v798
      %v879 = vunpack.c.l.b16 %v799
      %v880 = vunpack.c.h.b16 %v799
      %v881 = vunpack.c.l.b16 %v800
      %v882 = vunpack.c.h.b16 %v800
      %v883 = vunpack.c.l.b16 %v801
      %v884 = vunpack.c.h.b16 %v801
      %v885 = vunpack.c.l.b16 %v802
      %v886 = vunpack.c.h.b16 %v802
      %v887 = vunpack.c.l.b16 %v803
      %v888 = vunpack.c.h.b16 %v803
      %v889 = vunpack.c.l.b16 %v804
      %v890 = vunpack.c.h.b16 %v804
      %v891 = vunpack.c.l.b16 %v805
      %v892 = vunpack.c.h.b16 %v805
      %v893 = vunpack.c.l.b16 %v806
      %v894 = vunpack.c.h.b16 %v806
      %v895 = vunpack.c.l.b16 %v807
      %v896 = vunpack.c.h.b16 %v807
      %v897 = vunpack.c.l.b16 %v808
      %v898 = vunpack.c.h.b16 %v808
      %v899 = vunpack.c.l.b16 %v809
      %v900 = vunpack.c.h.b16 %v809
      %v901 = vunpack.c.l.b16 %v810
      %v902 = vunpack.c.h.b16 %v810
      %v903 = vunpack.c.l.b16 %v811
      %v904 = vunpack.c.h.b16 %v811
      %v905 = vunpack.c.l.b16 %v812
      %v906 = vunpack.c.h.b16 %v812
      %v907 = vunpack.c.l.b16 %v813
      %v908 = vunpack.c.h.b16 %v813
      %v909 = vunpack.c.l.b16 %v814
      %v910 = vunpack.c.h.b16 %v814
      %v911 = vpack.c.b16 %v851, %v847
      %v912 = vpack.c.b16 %v852, %v848
      %v913 = vpack.c.b16 %v853, %v849
      %v914 = vpack.c.b16 %v854, %v850
      %v915 = vpack.c.b16 %v859, %v855
      %v916 = vpack.c.b16 %v860, %v856
      %v917 = vpack.c.b16 %v861, %v857
      %v918 = vpack.c.b16 %v862, %v858
      %v919 = vpack.c.b16 %v867, %v863
      %v920 = vpack.c.b16 %v868, %v864
      %v921 = vpack.c.b16 %v869, %v865
      %v922 = vpack.c.b16 %v870, %v866
      %v923 = vpack.c.b16 %v875, %v871
      %v924 = vpack.c.b16 %v876, %v872
      %v925 = vpack.c.b16 %v877, %v873
      %v926 = vpack.c.b16 %v878, %v874
      %v927 = vpack.c.b16 %v883, %v879
      %v928 = vpack.c.b16 %v884, %v880
      %v929 = vpack.c.b16 %v885, %v881
      %v930 = vpack.c.b16 %v886, %v882
      %v931 = vpack.c.b16 %v891, %v887
      %v932 = vpack.c.b16 %v892, %v888
      %v933 = vpack.c.b16 %v893, %v889
      %v934 = vpack.c.b16 %v894, %v890
      %v935 = vpack.c.b16 %v899, %v895
      %v936 = vpack.c.b16 %v900, %v896
      %v937 = vpack.c.b16 %v901, %v897
      %v938 = vpack.c.b16 %v902, %v898
      %v939 = vpack.c.b16 %v907, %v903
      %v940 = vpack.c.b16 %v908, %v904
      %v941 = vpack.c.b16 %v909, %v905
      %v942 = vpack.c.b16 %v910, %v906
      %975 = vmatprep.subr.bf16.mxu0 %v940
      %976 = vmatpush1.bf16.msra.mxu0 %v939
      %977 = vmatprep.subr.bf16.mxu0 %v936
      %978 = vmatpush1.bf16.msra.mxu0 %v935
      %979 = vmatprep.subr.bf16.mxu0 %v932
      %980 = vmatpush1.bf16.msra.mxu0 %v931
      %981 = vmatprep.subr.bf16.mxu0 %v928
      %982 = vmatpush1.bf16.msra.mxu0 %v927
      %983 = vmatprep.subr.bf16.mxu0 %v924
      %984 = vmatpush1.bf16.msra.mxu0 %v923
      %985 = vmatprep.subr.bf16.mxu0 %v920
      %986 = vmatpush1.bf16.msra.mxu0 %v919
      %987 = vmatprep.subr.bf16.mxu0 %v916
      %988 = vmatpush1.bf16.msra.mxu0 %v915
      %989 = vmatprep.subr.bf16.mxu0 %v912
      %990 = vmatpush1.bf16.msra.mxu0 %v911
      %991 = vmatprep.subr.bf16.mxu0 0
      %992 = vmatpush2.bf16.msra.mxu0 0
      %993 = vmatprep.subr.bf16.mxu0 0
      %994 = vmatpush2.bf16.msra.mxu0 0
      %995 = vmatprep.subr.bf16.mxu0 0
      %996 = vmatpush2.bf16.msra.mxu0 0
      %997 = vmatprep.subr.bf16.mxu0 0
      %998 = vmatpush2.bf16.msra.mxu0 0
      %999 = vmatprep.subr.bf16.mxu0 0
      %1000 = vmatpush2.bf16.msra.mxu0 0
      %1001 = vmatprep.subr.bf16.mxu0 0
      %1002 = vmatpush2.bf16.msra.mxu0 0
      %1003 = vmatprep.subr.bf16.mxu0 0
      %1004 = vmatpush2.bf16.msra.mxu0 0
      %1005 = vmatprep.subr.bf16.mxu0 0
      %1006 = vmatpush2.bf16.msra.mxu0 0
      %1007 = vmatprep.mubr.bf16.mxu0 0
      %1008 = vmatmul.mubr.bf16.gmra.mxu0 %v775
      %v1009 = vpop.f32.mrf.mxu0
      %v1010 = vadd.f32 0.0, %v1009
      %v1011 = vpop.f32.mrf.mxu0
      %v1012 = vadd.f32 0.0, %v1011
      %v1013 = vpop.f32.mrf.mxu0
      %v1014 = vpop.f32.mrf.mxu0
      %1015 = vdwg.mxu0
      %1016 = vmatprep.subr.bf16.mxu0 %v942
      %1017 = vmatpush1.bf16.msra.mxu0 %v941
      %1018 = vmatprep.subr.bf16.mxu0 %v938
      %1019 = vmatpush1.bf16.msra.mxu0 %v937
      %1020 = vmatprep.subr.bf16.mxu0 %v934
      %1021 = vmatpush1.bf16.msra.mxu0 %v933
      %1022 = vmatprep.subr.bf16.mxu0 %v930
      %1023 = vmatpush1.bf16.msra.mxu0 %v929
      %1024 = vmatprep.subr.bf16.mxu0 %v926
      %1025 = vmatpush1.bf16.msra.mxu0 %v925
      %1026 = vmatprep.subr.bf16.mxu0 %v922
      %1027 = vmatpush1.bf16.msra.mxu0 %v921
      %1028 = vmatprep.subr.bf16.mxu0 %v918
      %1029 = vmatpush1.bf16.msra.mxu0 %v917
      %1030 = vmatprep.subr.bf16.mxu0 %v914
      %1031 = vmatpush1.bf16.msra.mxu0 %v913
      %1032 = vmatprep.subr.bf16.mxu0 0
      %1033 = vmatpush2.bf16.msra.mxu0 0
      %1034 = vmatprep.subr.bf16.mxu0 0
      %1035 = vmatpush2.bf16.msra.mxu0 0
      %1036 = vmatprep.subr.bf16.mxu0 0
      %1037 = vmatpush2.bf16.msra.mxu0 0
      %1038 = vmatprep.subr.bf16.mxu0 0
      %1039 = vmatpush2.bf16.msra.mxu0 0
      %1040 = vmatprep.subr.bf16.mxu0 0
      %1041 = vmatpush2.bf16.msra.mxu0 0
      %1042 = vmatprep.subr.bf16.mxu0 0
      %1043 = vmatpush2.bf16.msra.mxu0 0
      %1044 = vmatprep.subr.bf16.mxu0 0
      %1045 = vmatpush2.bf16.msra.mxu0 0
      %1046 = vmatprep.subr.bf16.mxu0 0
      %1047 = vmatpush2.bf16.msra.mxu0 0
      %1048 = vmatprep.mubr.bf16.mxu0 0
      %1049 = vmatmul.mubr.bf16.gmra.mxu0 %v775
      %v1050 = vpop.f32.mrf.mxu0
      %v1051 = vadd.f32 0.0, %v1050
      %v1052 = vpop.f32.mrf.mxu0
      %v1053 = vadd.f32 0.0, %v1052
      %v1054 = vpop.f32.mrf.mxu0
      %v1055 = vpop.f32.mrf.mxu0
      %1056 = vdwg.mxu0
      %v1057 = vadd.f32 %v779, %v1010
      %v1058 = vadd.f32 %v780, %v1012
      %v1059 = vadd.f32 %v781, %v1051
      %v1060 = vadd.f32 %v782, %v1053
      %v1061 = vxor.u32 %v1057, 2147483648
      %v1062 = vmul.f32 %v1061, 1.442695
      %v1063 = vpow.pop %v1062
      %v1064 = vadd.f32 %v1063, 1.0
      %v1065 = vrcp.pop %v1064
      %v1066 = vmul.f32 1.0, %v1065
      %v1067 = vxor.u32 %v1058, 2147483648
      %v1068 = vmul.f32 %v1067, 1.442695
      %v1069 = vpow.pop %v1068
      %v1070 = vadd.f32 %v1069, 1.0
      %v1071 = vrcp.pop %v1070
      %v1072 = vmul.f32 1.0, %v1071
      %v1073 = vtanh.pop %v1059
      %v1074 = vxor.u32 %v1060, 2147483648
      %v1075 = vmul.f32 %v1074, 1.442695
      %v1076 = vpow.pop %v1075
      %v1077 = vadd.f32 %v1076, 1.0
      %v1078 = vrcp.pop %v1077
      %v1079 = vmul.f32 1.0, %v1078
      %v1080 = vmul.f32 %v1072, %v772
      %v1081 = vmul.f32 %v1066, %v1073
      %v1082 = vadd.f32 %v1080, %v1081
      %v1083 = vtanh.pop %v1082
      %v1084 = vmul.f32 %v1079, %v1083
      %v1085 = vpack.c.bf16 %v1084, %v1084
      %s1086 = scalar_lea.vmem %s148, 8
      %1087 = vst [vmem:[%s1086] sm:$0xf] %v1085
      %s1088 = scalar_lea.vmem %s142, 96
      %v1089 = vld [vmem:[%s1088] sm:$0xff]
      %v1090 = vld [vmem:[%s1088 + $0x8] sm:$0xff]
      %v1091 = vld [vmem:[%s1088 + $0x10] sm:$0xff]
      %v1092 = vld [vmem:[%s1088 + $0x18] sm:$0xff]
      %v1093 = vld [vmem:[%s1] sm:$0xff]
      %v1094 = vld [vmem:[%s1 + $0x8] sm:$0xff]
      %v1095 = vld [vmem:[%s1 + $0x10] sm:$0xff]
      %v1096 = vld [vmem:[%s1 + $0x18] sm:$0xff]
      %v1097 = vld [vmem:[%s1 + $0x20] sm:$0xff]
      %v1098 = vld [vmem:[%s1 + $0x28] sm:$0xff]
      %v1099 = vld [vmem:[%s1 + $0x30] sm:$0xff]
      %v1100 = vld [vmem:[%s1 + $0x38] sm:$0xff]
      %v1101 = vld [vmem:[%s1 + $0x40] sm:$0xff]
      %v1102 = vld [vmem:[%s1 + $0x48] sm:$0xff]
      %v1103 = vld [vmem:[%s1 + $0x50] sm:$0xff]
      %v1104 = vld [vmem:[%s1 + $0x58] sm:$0xff]
      %v1105 = vld [vmem:[%s1 + $0x60] sm:$0xff]
      %v1106 = vld [vmem:[%s1 + $0x68] sm:$0xff]
      %v1107 = vld [vmem:[%s1 + $0x70] sm:$0xff]
      %v1108 = vld [vmem:[%s1 + $0x78] sm:$0xff]
      %v1109 = vld [vmem:[%s1 + $0x80] sm:$0xff]
      %v1110 = vld [vmem:[%s1 + $0x88] sm:$0xff]
      %v1111 = vld [vmem:[%s1 + $0x90] sm:$0xff]
      %v1112 = vld [vmem:[%s1 + $0x98] sm:$0xff]
      %v1113 = vld [vmem:[%s1 + $0xa0] sm:$0xff]
      %v1114 = vld [vmem:[%s1 + $0xa8] sm:$0xff]
      %v1115 = vld [vmem:[%s1 + $0xb0] sm:$0xff]
      %v1116 = vld [vmem:[%s1 + $0xb8] sm:$0xff]
      %v1117 = vld [vmem:[%s1 + $0xc0] sm:$0xff]
      %v1118 = vld [vmem:[%s1 + $0xc8] sm:$0xff]
      %v1119 = vld [vmem:[%s1 + $0xd0] sm:$0xff]
      %v1120 = vld [vmem:[%s1 + $0xd8] sm:$0xff]
      %v1121 = vld [vmem:[%s1 + $0xe0] sm:$0xff]
      %v1122 = vld [vmem:[%s1 + $0xe8] sm:$0xff]
      %v1123 = vld [vmem:[%s1 + $0xf0] sm:$0xff]
      %v1124 = vld [vmem:[%s1 + $0xf8] sm:$0xff]
      %v1157 = vunpack.c.l.b16 %v1093
      %v1158 = vunpack.c.h.b16 %v1093
      %v1159 = vunpack.c.l.b16 %v1094
      %v1160 = vunpack.c.h.b16 %v1094
      %v1161 = vunpack.c.l.b16 %v1095
      %v1162 = vunpack.c.h.b16 %v1095
      %v1163 = vunpack.c.l.b16 %v1096
      %v1164 = vunpack.c.h.b16 %v1096
      %v1165 = vunpack.c.l.b16 %v1097
      %v1166 = vunpack.c.h.b16 %v1097
      %v1167 = vunpack.c.l.b16 %v1098
      %v1168 = vunpack.c.h.b16 %v1098
      %v1169 = vunpack.c.l.b16 %v1099
      %v1170 = vunpack.c.h.b16 %v1099
      %v1171 = vunpack.c.l.b16 %v1100
      %v1172 = vunpack.c.h.b16 %v1100
      %v1173 = vunpack.c.l.b16 %v1101
      %v1174 = vunpack.c.h.b16 %v1101
      %v1175 = vunpack.c.l.b16 %v1102
      %v1176 = vunpack.c.h.b16 %v1102
      %v1177 = vunpack.c.l.b16 %v1103
      %v1178 = vunpack.c.h.b16 %v1103
      %v1179 = vunpack.c.l.b16 %v1104
      %v1180 = vunpack.c.h.b16 %v1104
      %v1181 = vunpack.c.l.b16 %v1105
      %v1182 = vunpack.c.h.b16 %v1105
      %v1183 = vunpack.c.l.b16 %v1106
      %v1184 = vunpack.c.h.b16 %v1106
      %v1185 = vunpack.c.l.b16 %v1107
      %v1186 = vunpack.c.h.b16 %v1107
      %v1187 = vunpack.c.l.b16 %v1108
      %v1188 = vunpack.c.h.b16 %v1108
      %v1189 = vunpack.c.l.b16 %v1109
      %v1190 = vunpack.c.h.b16 %v1109
      %v1191 = vunpack.c.l.b16 %v1110
      %v1192 = vunpack.c.h.b16 %v1110
      %v1193 = vunpack.c.l.b16 %v1111
      %v1194 = vunpack.c.h.b16 %v1111
      %v1195 = vunpack.c.l.b16 %v1112
      %v1196 = vunpack.c.h.b16 %v1112
      %v1197 = vunpack.c.l.b16 %v1113
      %v1198 = vunpack.c.h.b16 %v1113
      %v1199 = vunpack.c.l.b16 %v1114
      %v1200 = vunpack.c.h.b16 %v1114
      %v1201 = vunpack.c.l.b16 %v1115
      %v1202 = vunpack.c.h.b16 %v1115
      %v1203 = vunpack.c.l.b16 %v1116
      %v1204 = vunpack.c.h.b16 %v1116
      %v1205 = vunpack.c.l.b16 %v1117
      %v1206 = vunpack.c.h.b16 %v1117
      %v1207 = vunpack.c.l.b16 %v1118
      %v1208 = vunpack.c.h.b16 %v1118
      %v1209 = vunpack.c.l.b16 %v1119
      %v1210 = vunpack.c.h.b16 %v1119
      %v1211 = vunpack.c.l.b16 %v1120
      %v1212 = vunpack.c.h.b16 %v1120
      %v1213 = vunpack.c.l.b16 %v1121
      %v1214 = vunpack.c.h.b16 %v1121
      %v1215 = vunpack.c.l.b16 %v1122
      %v1216 = vunpack.c.h.b16 %v1122
      %v1217 = vunpack.c.l.b16 %v1123
      %v1218 = vunpack.c.h.b16 %v1123
      %v1219 = vunpack.c.l.b16 %v1124
      %v1220 = vunpack.c.h.b16 %v1124
      %v1221 = vpack.c.b16 %v1161, %v1157
      %v1222 = vpack.c.b16 %v1162, %v1158
      %v1223 = vpack.c.b16 %v1163, %v1159
      %v1224 = vpack.c.b16 %v1164, %v1160
      %v1225 = vpack.c.b16 %v1169, %v1165
      %v1226 = vpack.c.b16 %v1170, %v1166
      %v1227 = vpack.c.b16 %v1171, %v1167
      %v1228 = vpack.c.b16 %v1172, %v1168
      %v1229 = vpack.c.b16 %v1177, %v1173
      %v1230 = vpack.c.b16 %v1178, %v1174
      %v1231 = vpack.c.b16 %v1179, %v1175
      %v1232 = vpack.c.b16 %v1180, %v1176
      %v1233 = vpack.c.b16 %v1185, %v1181
      %v1234 = vpack.c.b16 %v1186, %v1182
      %v1235 = vpack.c.b16 %v1187, %v1183
      %v1236 = vpack.c.b16 %v1188, %v1184
      %v1237 = vpack.c.b16 %v1193, %v1189
      %v1238 = vpack.c.b16 %v1194, %v1190
      %v1239 = vpack.c.b16 %v1195, %v1191
      %v1240 = vpack.c.b16 %v1196, %v1192
      %v1241 = vpack.c.b16 %v1201, %v1197
      %v1242 = vpack.c.b16 %v1202, %v1198
      %v1243 = vpack.c.b16 %v1203, %v1199
      %v1244 = vpack.c.b16 %v1204, %v1200
      %v1245 = vpack.c.b16 %v1209, %v1205
      %v1246 = vpack.c.b16 %v1210, %v1206
      %v1247 = vpack.c.b16 %v1211, %v1207
      %v1248 = vpack.c.b16 %v1212, %v1208
      %v1249 = vpack.c.b16 %v1217, %v1213
      %v1250 = vpack.c.b16 %v1218, %v1214
      %v1251 = vpack.c.b16 %v1219, %v1215
      %v1252 = vpack.c.b16 %v1220, %v1216
      %1285 = vmatprep.subr.bf16.mxu0 %v1250
      %1286 = vmatpush1.bf16.msra.mxu0 %v1249
      %1287 = vmatprep.subr.bf16.mxu0 %v1246
      %1288 = vmatpush1.bf16.msra.mxu0 %v1245
      %1289 = vmatprep.subr.bf16.mxu0 %v1242
      %1290 = vmatpush1.bf16.msra.mxu0 %v1241
      %1291 = vmatprep.subr.bf16.mxu0 %v1238
      %1292 = vmatpush1.bf16.msra.mxu0 %v1237
      %1293 = vmatprep.subr.bf16.mxu0 %v1234
      %1294 = vmatpush1.bf16.msra.mxu0 %v1233
      %1295 = vmatprep.subr.bf16.mxu0 %v1230
      %1296 = vmatpush1.bf16.msra.mxu0 %v1229
      %1297 = vmatprep.subr.bf16.mxu0 %v1226
      %1298 = vmatpush1.bf16.msra.mxu0 %v1225
      %1299 = vmatprep.subr.bf16.mxu0 %v1222
      %1300 = vmatpush1.bf16.msra.mxu0 %v1221
      %1301 = vmatprep.subr.bf16.mxu0 0
      %1302 = vmatpush2.bf16.msra.mxu0 0
      %1303 = vmatprep.subr.bf16.mxu0 0
      %1304 = vmatpush2.bf16.msra.mxu0 0
      %1305 = vmatprep.subr.bf16.mxu0 0
      %1306 = vmatpush2.bf16.msra.mxu0 0
      %1307 = vmatprep.subr.bf16.mxu0 0
      %1308 = vmatpush2.bf16.msra.mxu0 0
      %1309 = vmatprep.subr.bf16.mxu0 0
      %1310 = vmatpush2.bf16.msra.mxu0 0
      %1311 = vmatprep.subr.bf16.mxu0 0
      %1312 = vmatpush2.bf16.msra.mxu0 0
      %1313 = vmatprep.subr.bf16.mxu0 0
      %1314 = vmatpush2.bf16.msra.mxu0 0
      %1315 = vmatprep.subr.bf16.mxu0 0
      %1316 = vmatpush2.bf16.msra.mxu0 0
      %1317 = vmatprep.mubr.bf16.mxu0 0
      %1318 = vmatmul.mubr.bf16.gmra.mxu0 %v1085
      %v1319 = vpop.f32.mrf.mxu0
      %v1320 = vadd.f32 0.0, %v1319
      %v1321 = vpop.f32.mrf.mxu0
      %v1322 = vadd.f32 0.0, %v1321
      %v1323 = vpop.f32.mrf.mxu0
      %v1324 = vpop.f32.mrf.mxu0
      %1325 = vdwg.mxu0
      %1326 = vmatprep.subr.bf16.mxu0 %v1252
      %1327 = vmatpush1.bf16.msra.mxu0 %v1251
      %1328 = vmatprep.subr.bf16.mxu0 %v1248
      %1329 = vmatpush1.bf16.msra.mxu0 %v1247
      %1330 = vmatprep.subr.bf16.mxu0 %v1244
      %1331 = vmatpush1.bf16.msra.mxu0 %v1243
      %1332 = vmatprep.subr.bf16.mxu0 %v1240
      %1333 = vmatpush1.bf16.msra.mxu0 %v1239
      %1334 = vmatprep.subr.bf16.mxu0 %v1236
      %1335 = vmatpush1.bf16.msra.mxu0 %v1235
      %1336 = vmatprep.subr.bf16.mxu0 %v1232
      %1337 = vmatpush1.bf16.msra.mxu0 %v1231
      %1338 = vmatprep.subr.bf16.mxu0 %v1228
      %1339 = vmatpush1.bf16.msra.mxu0 %v1227
      %1340 = vmatprep.subr.bf16.mxu0 %v1224
      %1341 = vmatpush1.bf16.msra.mxu0 %v1223
      %1342 = vmatprep.subr.bf16.mxu0 0
      %1343 = vmatpush2.bf16.msra.mxu0 0
      %1344 = vmatprep.subr.bf16.mxu0 0
      %1345 = vmatpush2.bf16.msra.mxu0 0
      %1346 = vmatprep.subr.bf16.mxu0 0
      %1347 = vmatpush2.bf16.msra.mxu0 0
      %1348 = vmatprep.subr.bf16.mxu0 0
      %1349 = vmatpush2.bf16.msra.mxu0 0
      %1350 = vmatprep.subr.bf16.mxu0 0
      %1351 = vmatpush2.bf16.msra.mxu0 0
      %1352 = vmatprep.subr.bf16.mxu0 0
      %1353 = vmatpush2.bf16.msra.mxu0 0
      %1354 = vmatprep.subr.bf16.mxu0 0
      %1355 = vmatpush2.bf16.msra.mxu0 0
      %1356 = vmatprep.subr.bf16.mxu0 0
      %1357 = vmatpush2.bf16.msra.mxu0 0
      %1358 = vmatprep.mubr.bf16.mxu0 0
      %1359 = vmatmul.mubr.bf16.gmra.mxu0 %v1085
      %v1360 = vpop.f32.mrf.mxu0
      %v1361 = vadd.f32 0.0, %v1360
      %v1362 = vpop.f32.mrf.mxu0
      %v1363 = vadd.f32 0.0, %v1362
      %v1364 = vpop.f32.mrf.mxu0
      %v1365 = vpop.f32.mrf.mxu0
      %1366 = vdwg.mxu0
      %v1367 = vadd.f32 %v1089, %v1320
      %v1368 = vadd.f32 %v1090, %v1322
      %v1369 = vadd.f32 %v1091, %v1361
      %v1370 = vadd.f32 %v1092, %v1363
      %v1371 = vxor.u32 %v1367, 2147483648
      %v1372 = vmul.f32 %v1371, 1.442695
      %v1373 = vpow.pop %v1372
      %v1374 = vadd.f32 %v1373, 1.0
      %v1375 = vrcp.pop %v1374
      %v1376 = vmul.f32 1.0, %v1375
      %v1377 = vxor.u32 %v1368, 2147483648
      %v1378 = vmul.f32 %v1377, 1.442695
      %v1379 = vpow.pop %v1378
      %v1380 = vadd.f32 %v1379, 1.0
      %v1381 = vrcp.pop %v1380
      %v1382 = vmul.f32 1.0, %v1381
      %v1383 = vtanh.pop %v1369
      %v1384 = vxor.u32 %v1370, 2147483648
      %v1385 = vmul.f32 %v1384, 1.442695
      %v1386 = vpow.pop %v1385
      %v1387 = vadd.f32 %v1386, 1.0
      %v1388 = vrcp.pop %v1387
      %v1389 = vmul.f32 1.0, %v1388
      %v1390 = vmul.f32 %v1382, %v1082
      %v1391 = vmul.f32 %v1376, %v1383
      %v1392 = vadd.f32 %v1390, %v1391
      %v1393 = vtanh.pop %v1392
      %v1394 = vmul.f32 %v1389, %v1393
      %v1395 = vpack.c.bf16 %v1394, %v1394
      %s1396 = scalar_lea.vmem %s148, 12
      %1397 = vst [vmem:[%s1396] sm:$0xf] %v1395
      %s1398 = scalar_lea.vmem %s142, 128
      %v1399 = vld [vmem:[%s1398] sm:$0xff]
      %v1400 = vld [vmem:[%s1398 + $0x8] sm:$0xff]
      %v1401 = vld [vmem:[%s1398 + $0x10] sm:$0xff]
      %v1402 = vld [vmem:[%s1398 + $0x18] sm:$0xff]
      %v1403 = vld [vmem:[%s1] sm:$0xff]
      %v1404 = vld [vmem:[%s1 + $0x8] sm:$0xff]
      %v1405 = vld [vmem:[%s1 + $0x10] sm:$0xff]
      %v1406 = vld [vmem:[%s1 + $0x18] sm:$0xff]
      %v1407 = vld [vmem:[%s1 + $0x20] sm:$0xff]
      %v1408 = vld [vmem:[%s1 + $0x28] sm:$0xff]
      %v1409 = vld [vmem:[%s1 + $0x30] sm:$0xff]
      %v1410 = vld [vmem:[%s1 + $0x38] sm:$0xff]
      %v1411 = vld [vmem:[%s1 + $0x40] sm:$0xff]
      %v1412 = vld [vmem:[%s1 + $0x48] sm:$0xff]
      %v1413 = vld [vmem:[%s1 + $0x50] sm:$0xff]
      %v1414 = vld [vmem:[%s1 + $0x58] sm:$0xff]
      %v1415 = vld [vmem:[%s1 + $0x60] sm:$0xff]
      %v1416 = vld [vmem:[%s1 + $0x68] sm:$0xff]
      %v1417 = vld [vmem:[%s1 + $0x70] sm:$0xff]
      %v1418 = vld [vmem:[%s1 + $0x78] sm:$0xff]
      %v1419 = vld [vmem:[%s1 + $0x80] sm:$0xff]
      %v1420 = vld [vmem:[%s1 + $0x88] sm:$0xff]
      %v1421 = vld [vmem:[%s1 + $0x90] sm:$0xff]
      %v1422 = vld [vmem:[%s1 + $0x98] sm:$0xff]
      %v1423 = vld [vmem:[%s1 + $0xa0] sm:$0xff]
      %v1424 = vld [vmem:[%s1 + $0xa8] sm:$0xff]
      %v1425 = vld [vmem:[%s1 + $0xb0] sm:$0xff]
      %v1426 = vld [vmem:[%s1 + $0xb8] sm:$0xff]
      %v1427 = vld [vmem:[%s1 + $0xc0] sm:$0xff]
      %v1428 = vld [vmem:[%s1 + $0xc8] sm:$0xff]
      %v1429 = vld [vmem:[%s1 + $0xd0] sm:$0xff]
      %v1430 = vld [vmem:[%s1 + $0xd8] sm:$0xff]
      %v1431 = vld [vmem:[%s1 + $0xe0] sm:$0xff]
      %v1432 = vld [vmem:[%s1 + $0xe8] sm:$0xff]
      %v1433 = vld [vmem:[%s1 + $0xf0] sm:$0xff]
      %v1434 = vld [vmem:[%s1 + $0xf8] sm:$0xff]
      %v1467 = vunpack.c.l.b16 %v1403
      %v1468 = vunpack.c.h.b16 %v1403
      %v1469 = vunpack.c.l.b16 %v1404
      %v1470 = vunpack.c.h.b16 %v1404
      %v1471 = vunpack.c.l.b16 %v1405
      %v1472 = vunpack.c.h.b16 %v1405
      %v1473 = vunpack.c.l.b16 %v1406
      %v1474 = vunpack.c.h.b16 %v1406
      %v1475 = vunpack.c.l.b16 %v1407
      %v1476 = vunpack.c.h.b16 %v1407
      %v1477 = vunpack.c.l.b16 %v1408
      %v1478 = vunpack.c.h.b16 %v1408
      %v1479 = vunpack.c.l.b16 %v1409
      %v1480 = vunpack.c.h.b16 %v1409
      %v1481 = vunpack.c.l.b16 %v1410
      %v1482 = vunpack.c.h.b16 %v1410
      %v1483 = vunpack.c.l.b16 %v1411
      %v1484 = vunpack.c.h.b16 %v1411
      %v1485 = vunpack.c.l.b16 %v1412
      %v1486 = vunpack.c.h.b16 %v1412
      %v1487 = vunpack.c.l.b16 %v1413
      %v1488 = vunpack.c.h.b16 %v1413
      %v1489 = vunpack.c.l.b16 %v1414
      %v1490 = vunpack.c.h.b16 %v1414
      %v1491 = vunpack.c.l.b16 %v1415
      %v1492 = vunpack.c.h.b16 %v1415
      %v1493 = vunpack.c.l.b16 %v1416
      %v1494 = vunpack.c.h.b16 %v1416
      %v1495 = vunpack.c.l.b16 %v1417
      %v1496 = vunpack.c.h.b16 %v1417
      %v1497 = vunpack.c.l.b16 %v1418
      %v1498 = vunpack.c.h.b16 %v1418
      %v1499 = vunpack.c.l.b16 %v1419
      %v1500 = vunpack.c.h.b16 %v1419
      %v1501 = vunpack.c.l.b16 %v1420
      %v1502 = vunpack.c.h.b16 %v1420
      %v1503 = vunpack.c.l.b16 %v1421
      %v1504 = vunpack.c.h.b16 %v1421
      %v1505 = vunpack.c.l.b16 %v1422
      %v1506 = vunpack.c.h.b16 %v1422
      %v1507 = vunpack.c.l.b16 %v1423
      %v1508 = vunpack.c.h.b16 %v1423
      %v1509 = vunpack.c.l.b16 %v1424
      %v1510 = vunpack.c.h.b16 %v1424
      %v1511 = vunpack.c.l.b16 %v1425
      %v1512 = vunpack.c.h.b16 %v1425
      %v1513 = vunpack.c.l.b16 %v1426
      %v1514 = vunpack.c.h.b16 %v1426
      %v1515 = vunpack.c.l.b16 %v1427
      %v1516 = vunpack.c.h.b16 %v1427
      %v1517 = vunpack.c.l.b16 %v1428
      %v1518 = vunpack.c.h.b16 %v1428
      %v1519 = vunpack.c.l.b16 %v1429
      %v1520 = vunpack.c.h.b16 %v1429
      %v1521 = vunpack.c.l.b16 %v1430
      %v1522 = vunpack.c.h.b16 %v1430
      %v1523 = vunpack.c.l.b16 %v1431
      %v1524 = vunpack.c.h.b16 %v1431
      %v1525 = vunpack.c.l.b16 %v1432
      %v1526 = vunpack.c.h.b16 %v1432
      %v1527 = vunpack.c.l.b16 %v1433
      %v1528 = vunpack.c.h.b16 %v1433
      %v1529 = vunpack.c.l.b16 %v1434
      %v1530 = vunpack.c.h.b16 %v1434
      %v1531 = vpack.c.b16 %v1471, %v1467
      %v1532 = vpack.c.b16 %v1472, %v1468
      %v1533 = vpack.c.b16 %v1473, %v1469
      %v1534 = vpack.c.b16 %v1474, %v1470
      %v1535 = vpack.c.b16 %v1479, %v1475
      %v1536 = vpack.c.b16 %v1480, %v1476
      %v1537 = vpack.c.b16 %v1481, %v1477
      %v1538 = vpack.c.b16 %v1482, %v1478
      %v1539 = vpack.c.b16 %v1487, %v1483
      %v1540 = vpack.c.b16 %v1488, %v1484
      %v1541 = vpack.c.b16 %v1489, %v1485
      %v1542 = vpack.c.b16 %v1490, %v1486
      %v1543 = vpack.c.b16 %v1495, %v1491
      %v1544 = vpack.c.b16 %v1496, %v1492
      %v1545 = vpack.c.b16 %v1497, %v1493
      %v1546 = vpack.c.b16 %v1498, %v1494
      %v1547 = vpack.c.b16 %v1503, %v1499
      %v1548 = vpack.c.b16 %v1504, %v1500
      %v1549 = vpack.c.b16 %v1505, %v1501
      %v1550 = vpack.c.b16 %v1506, %v1502
      %v1551 = vpack.c.b16 %v1511, %v1507
      %v1552 = vpack.c.b16 %v1512, %v1508
      %v1553 = vpack.c.b16 %v1513, %v1509
      %v1554 = vpack.c.b16 %v1514, %v1510
      %v1555 = vpack.c.b16 %v1519, %v1515
      %v1556 = vpack.c.b16 %v1520, %v1516
      %v1557 = vpack.c.b16 %v1521, %v1517
      %v1558 = vpack.c.b16 %v1522, %v1518
      %v1559 = vpack.c.b16 %v1527, %v1523
      %v1560 = vpack.c.b16 %v1528, %v1524
      %v1561 = vpack.c.b16 %v1529, %v1525
      %v1562 = vpack.c.b16 %v1530, %v1526
      %1595 = vmatprep.subr.bf16.mxu0 %v1560
      %1596 = vmatpush1.bf16.msra.mxu0 %v1559
      %1597 = vmatprep.subr.bf16.mxu0 %v1556
      %1598 = vmatpush1.bf16.msra.mxu0 %v1555
      %1599 = vmatprep.subr.bf16.mxu0 %v1552
      %1600 = vmatpush1.bf16.msra.mxu0 %v1551
      %1601 = vmatprep.subr.bf16.mxu0 %v1548
      %1602 = vmatpush1.bf16.msra.mxu0 %v1547
      %1603 = vmatprep.subr.bf16.mxu0 %v1544
      %1604 = vmatpush1.bf16.msra.mxu0 %v1543
      %1605 = vmatprep.subr.bf16.mxu0 %v1540
      %1606 = vmatpush1.bf16.msra.mxu0 %v1539
      %1607 = vmatprep.subr.bf16.mxu0 %v1536
      %1608 = vmatpush1.bf16.msra.mxu0 %v1535
      %1609 = vmatprep.subr.bf16.mxu0 %v1532
      %1610 = vmatpush1.bf16.msra.mxu0 %v1531
      %1611 = vmatprep.subr.bf16.mxu0 0
      %1612 = vmatpush2.bf16.msra.mxu0 0
      %1613 = vmatprep.subr.bf16.mxu0 0
      %1614 = vmatpush2.bf16.msra.mxu0 0
      %1615 = vmatprep.subr.bf16.mxu0 0
      %1616 = vmatpush2.bf16.msra.mxu0 0
      %1617 = vmatprep.subr.bf16.mxu0 0
      %1618 = vmatpush2.bf16.msra.mxu0 0
      %1619 = vmatprep.subr.bf16.mxu0 0
      %1620 = vmatpush2.bf16.msra.mxu0 0
      %1621 = vmatprep.subr.bf16.mxu0 0
      %1622 = vmatpush2.bf16.msra.mxu0 0
      %1623 = vmatprep.subr.bf16.mxu0 0
      %1624 = vmatpush2.bf16.msra.mxu0 0
      %1625 = vmatprep.subr.bf16.mxu0 0
      %1626 = vmatpush2.bf16.msra.mxu0 0
      %1627 = vmatprep.mubr.bf16.mxu0 0
      %1628 = vmatmul.mubr.bf16.gmra.mxu0 %v1395
      %v1629 = vpop.f32.mrf.mxu0
      %v1630 = vadd.f32 0.0, %v1629
      %v1631 = vpop.f32.mrf.mxu0
      %v1632 = vadd.f32 0.0, %v1631
      %v1633 = vpop.f32.mrf.mxu0
      %v1634 = vpop.f32.mrf.mxu0
      %1635 = vdwg.mxu0
      %1636 = vmatprep.subr.bf16.mxu0 %v1562
      %1637 = vmatpush1.bf16.msra.mxu0 %v1561
      %1638 = vmatprep.subr.bf16.mxu0 %v1558
      %1639 = vmatpush1.bf16.msra.mxu0 %v1557
      %1640 = vmatprep.subr.bf16.mxu0 %v1554
      %1641 = vmatpush1.bf16.msra.mxu0 %v1553
      %1642 = vmatprep.subr.bf16.mxu0 %v1550
      %1643 = vmatpush1.bf16.msra.mxu0 %v1549
      %1644 = vmatprep.subr.bf16.mxu0 %v1546
      %1645 = vmatpush1.bf16.msra.mxu0 %v1545
      %1646 = vmatprep.subr.bf16.mxu0 %v1542
      %1647 = vmatpush1.bf16.msra.mxu0 %v1541
      %1648 = vmatprep.subr.bf16.mxu0 %v1538
      %1649 = vmatpush1.bf16.msra.mxu0 %v1537
      %1650 = vmatprep.subr.bf16.mxu0 %v1534
      %1651 = vmatpush1.bf16.msra.mxu0 %v1533
      %1652 = vmatprep.subr.bf16.mxu0 0
      %1653 = vmatpush2.bf16.msra.mxu0 0
      %1654 = vmatprep.subr.bf16.mxu0 0
      %1655 = vmatpush2.bf16.msra.mxu0 0
      %1656 = vmatprep.subr.bf16.mxu0 0
      %1657 = vmatpush2.bf16.msra.mxu0 0
      %1658 = vmatprep.subr.bf16.mxu0 0
      %1659 = vmatpush2.bf16.msra.mxu0 0
      %1660 = vmatprep.subr.bf16.mxu0 0
      %1661 = vmatpush2.bf16.msra.mxu0 0
      %1662 = vmatprep.subr.bf16.mxu0 0
      %1663 = vmatpush2.bf16.msra.mxu0 0
      %1664 = vmatprep.subr.bf16.mxu0 0
      %1665 = vmatpush2.bf16.msra.mxu0 0
      %1666 = vmatprep.subr.bf16.mxu0 0
      %1667 = vmatpush2.bf16.msra.mxu0 0
      %1668 = vmatprep.mubr.bf16.mxu0 0
      %1669 = vmatmul.mubr.bf16.gmra.mxu0 %v1395
      %v1670 = vpop.f32.mrf.mxu0
      %v1671 = vadd.f32 0.0, %v1670
      %v1672 = vpop.f32.mrf.mxu0
      %v1673 = vadd.f32 0.0, %v1672
      %v1674 = vpop.f32.mrf.mxu0
      %v1675 = vpop.f32.mrf.mxu0
      %1676 = vdwg.mxu0
      %v1677 = vadd.f32 %v1399, %v1630
      %v1678 = vadd.f32 %v1400, %v1632
      %v1679 = vadd.f32 %v1401, %v1671
      %v1680 = vadd.f32 %v1402, %v1673
      %v1681 = vxor.u32 %v1677, 2147483648
      %v1682 = vmul.f32 %v1681, 1.442695
      %v1683 = vpow.pop %v1682
      %v1684 = vadd.f32 %v1683, 1.0
      %v1685 = vrcp.pop %v1684
      %v1686 = vmul.f32 1.0, %v1685
      %v1687 = vxor.u32 %v1678, 2147483648
      %v1688 = vmul.f32 %v1687, 1.442695
      %v1689 = vpow.pop %v1688
      %v1690 = vadd.f32 %v1689, 1.0
      %v1691 = vrcp.pop %v1690
      %v1692 = vmul.f32 1.0, %v1691
      %v1693 = vtanh.pop %v1679
      %v1694 = vxor.u32 %v1680, 2147483648
      %v1695 = vmul.f32 %v1694, 1.442695
      %v1696 = vpow.pop %v1695
      %v1697 = vadd.f32 %v1696, 1.0
      %v1698 = vrcp.pop %v1697
      %v1699 = vmul.f32 1.0, %v1698
      %v1700 = vmul.f32 %v1692, %v1392
      %v1701 = vmul.f32 %v1686, %v1693
      %v1702 = vadd.f32 %v1700, %v1701
      %v1703 = vtanh.pop %v1702
      %v1704 = vmul.f32 %v1699, %v1703
      %v1705 = vpack.c.bf16 %v1704, %v1704
      %s1706 = scalar_lea.vmem %s148, 16
      %1707 = vst [vmem:[%s1706] sm:$0xf] %v1705
      %s1708 = scalar_lea.vmem %s142, 160
      %v1709 = vld [vmem:[%s1708] sm:$0xff]
      %v1710 = vld [vmem:[%s1708 + $0x8] sm:$0xff]
      %v1711 = vld [vmem:[%s1708 + $0x10] sm:$0xff]
      %v1712 = vld [vmem:[%s1708 + $0x18] sm:$0xff]
      %v1713 = vld [vmem:[%s1] sm:$0xff]
      %v1714 = vld [vmem:[%s1 + $0x8] sm:$0xff]
      %v1715 = vld [vmem:[%s1 + $0x10] sm:$0xff]
      %v1716 = vld [vmem:[%s1 + $0x18] sm:$0xff]
      %v1717 = vld [vmem:[%s1 + $0x20] sm:$0xff]
      %v1718 = vld [vmem:[%s1 + $0x28] sm:$0xff]
      %v1719 = vld [vmem:[%s1 + $0x30] sm:$0xff]
      %v1720 = vld [vmem:[%s1 + $0x38] sm:$0xff]
      %v1721 = vld [vmem:[%s1 + $0x40] sm:$0xff]
      %v1722 = vld [vmem:[%s1 + $0x48] sm:$0xff]
      %v1723 = vld [vmem:[%s1 + $0x50] sm:$0xff]
      %v1724 = vld [vmem:[%s1 + $0x58] sm:$0xff]
      %v1725 = vld [vmem:[%s1 + $0x60] sm:$0xff]
      %v1726 = vld [vmem:[%s1 + $0x68] sm:$0xff]
      %v1727 = vld [vmem:[%s1 + $0x70] sm:$0xff]
      %v1728 = vld [vmem:[%s1 + $0x78] sm:$0xff]
      %v1729 = vld [vmem:[%s1 + $0x80] sm:$0xff]
      %v1730 = vld [vmem:[%s1 + $0x88] sm:$0xff]
      %v1731 = vld [vmem:[%s1 + $0x90] sm:$0xff]
      %v1732 = vld [vmem:[%s1 + $0x98] sm:$0xff]
      %v1733 = vld [vmem:[%s1 + $0xa0] sm:$0xff]
      %v1734 = vld [vmem:[%s1 + $0xa8] sm:$0xff]
      %v1735 = vld [vmem:[%s1 + $0xb0] sm:$0xff]
      %v1736 = vld [vmem:[%s1 + $0xb8] sm:$0xff]
      %v1737 = vld [vmem:[%s1 + $0xc0] sm:$0xff]
      %v1738 = vld [vmem:[%s1 + $0xc8] sm:$0xff]
      %v1739 = vld [vmem:[%s1 + $0xd0] sm:$0xff]
      %v1740 = vld [vmem:[%s1 + $0xd8] sm:$0xff]
      %v1741 = vld [vmem:[%s1 + $0xe0] sm:$0xff]
      %v1742 = vld [vmem:[%s1 + $0xe8] sm:$0xff]
      %v1743 = vld [vmem:[%s1 + $0xf0] sm:$0xff]
      %v1744 = vld [vmem:[%s1 + $0xf8] sm:$0xff]
      %v1777 = vunpack.c.l.b16 %v1713
      %v1778 = vunpack.c.h.b16 %v1713
      %v1779 = vunpack.c.l.b16 %v1714
      %v1780 = vunpack.c.h.b16 %v1714
      %v1781 = vunpack.c.l.b16 %v1715
      %v1782 = vunpack.c.h.b16 %v1715
      %v1783 = vunpack.c.l.b16 %v1716
      %v1784 = vunpack.c.h.b16 %v1716
      %v1785 = vunpack.c.l.b16 %v1717
      %v1786 = vunpack.c.h.b16 %v1717
      %v1787 = vunpack.c.l.b16 %v1718
      %v1788 = vunpack.c.h.b16 %v1718
      %v1789 = vunpack.c.l.b16 %v1719
      %v1790 = vunpack.c.h.b16 %v1719
      %v1791 = vunpack.c.l.b16 %v1720
      %v1792 = vunpack.c.h.b16 %v1720
      %v1793 = vunpack.c.l.b16 %v1721
      %v1794 = vunpack.c.h.b16 %v1721
      %v1795 = vunpack.c.l.b16 %v1722
      %v1796 = vunpack.c.h.b16 %v1722
      %v1797 = vunpack.c.l.b16 %v1723
      %v1798 = vunpack.c.h.b16 %v1723
      %v1799 = vunpack.c.l.b16 %v1724
      %v1800 = vunpack.c.h.b16 %v1724
      %v1801 = vunpack.c.l.b16 %v1725
      %v1802 = vunpack.c.h.b16 %v1725
      %v1803 = vunpack.c.l.b16 %v1726
      %v1804 = vunpack.c.h.b16 %v1726
      %v1805 = vunpack.c.l.b16 %v1727
      %v1806 = vunpack.c.h.b16 %v1727
      %v1807 = vunpack.c.l.b16 %v1728
      %v1808 = vunpack.c.h.b16 %v1728
      %v1809 = vunpack.c.l.b16 %v1729
      %v1810 = vunpack.c.h.b16 %v1729
      %v1811 = vunpack.c.l.b16 %v1730
      %v1812 = vunpack.c.h.b16 %v1730
      %v1813 = vunpack.c.l.b16 %v1731
      %v1814 = vunpack.c.h.b16 %v1731
      %v1815 = vunpack.c.l.b16 %v1732
      %v1816 = vunpack.c.h.b16 %v1732
      %v1817 = vunpack.c.l.b16 %v1733
      %v1818 = vunpack.c.h.b16 %v1733
      %v1819 = vunpack.c.l.b16 %v1734
      %v1820 = vunpack.c.h.b16 %v1734
      %v1821 = vunpack.c.l.b16 %v1735
      %v1822 = vunpack.c.h.b16 %v1735
      %v1823 = vunpack.c.l.b16 %v1736
      %v1824 = vunpack.c.h.b16 %v1736
      %v1825 = vunpack.c.l.b16 %v1737
      %v1826 = vunpack.c.h.b16 %v1737
      %v1827 = vunpack.c.l.b16 %v1738
      %v1828 = vunpack.c.h.b16 %v1738
      %v1829 = vunpack.c.l.b16 %v1739
      %v1830 = vunpack.c.h.b16 %v1739
      %v1831 = vunpack.c.l.b16 %v1740
      %v1832 = vunpack.c.h.b16 %v1740
      %v1833 = vunpack.c.l.b16 %v1741
      %v1834 = vunpack.c.h.b16 %v1741
      %v1835 = vunpack.c.l.b16 %v1742
      %v1836 = vunpack.c.h.b16 %v1742
      %v1837 = vunpack.c.l.b16 %v1743
      %v1838 = vunpack.c.h.b16 %v1743
      %v1839 = vunpack.c.l.b16 %v1744
      %v1840 = vunpack.c.h.b16 %v1744
      %v1841 = vpack.c.b16 %v1781, %v1777
      %v1842 = vpack.c.b16 %v1782, %v1778
      %v1843 = vpack.c.b16 %v1783, %v1779
      %v1844 = vpack.c.b16 %v1784, %v1780
      %v1845 = vpack.c.b16 %v1789, %v1785
      %v1846 = vpack.c.b16 %v1790, %v1786
      %v1847 = vpack.c.b16 %v1791, %v1787
      %v1848 = vpack.c.b16 %v1792, %v1788
      %v1849 = vpack.c.b16 %v1797, %v1793
      %v1850 = vpack.c.b16 %v1798, %v1794
      %v1851 = vpack.c.b16 %v1799, %v1795
      %v1852 = vpack.c.b16 %v1800, %v1796
      %v1853 = vpack.c.b16 %v1805, %v1801
      %v1854 = vpack.c.b16 %v1806, %v1802
      %v1855 = vpack.c.b16 %v1807, %v1803
      %v1856 = vpack.c.b16 %v1808, %v1804
      %v1857 = vpack.c.b16 %v1813, %v1809
      %v1858 = vpack.c.b16 %v1814, %v1810
      %v1859 = vpack.c.b16 %v1815, %v1811
      %v1860 = vpack.c.b16 %v1816, %v1812
      %v1861 = vpack.c.b16 %v1821, %v1817
      %v1862 = vpack.c.b16 %v1822, %v1818
      %v1863 = vpack.c.b16 %v1823, %v1819
      %v1864 = vpack.c.b16 %v1824, %v1820
      %v1865 = vpack.c.b16 %v1829, %v1825
      %v1866 = vpack.c.b16 %v1830, %v1826
      %v1867 = vpack.c.b16 %v1831, %v1827
      %v1868 = vpack.c.b16 %v1832, %v1828
      %v1869 = vpack.c.b16 %v1837, %v1833
      %v1870 = vpack.c.b16 %v1838, %v1834
      %v1871 = vpack.c.b16 %v1839, %v1835
      %v1872 = vpack.c.b16 %v1840, %v1836
      %1905 = vmatprep.subr.bf16.mxu0 %v1870
      %1906 = vmatpush1.bf16.msra.mxu0 %v1869
      %1907 = vmatprep.subr.bf16.mxu0 %v1866
      %1908 = vmatpush1.bf16.msra.mxu0 %v1865
      %1909 = vmatprep.subr.bf16.mxu0 %v1862
      %1910 = vmatpush1.bf16.msra.mxu0 %v1861
      %1911 = vmatprep.subr.bf16.mxu0 %v1858
      %1912 = vmatpush1.bf16.msra.mxu0 %v1857
      %1913 = vmatprep.subr.bf16.mxu0 %v1854
      %1914 = vmatpush1.bf16.msra.mxu0 %v1853
      %1915 = vmatprep.subr.bf16.mxu0 %v1850
      %1916 = vmatpush1.bf16.msra.mxu0 %v1849
      %1917 = vmatprep.subr.bf16.mxu0 %v1846
      %1918 = vmatpush1.bf16.msra.mxu0 %v1845
      %1919 = vmatprep.subr.bf16.mxu0 %v1842
      %1920 = vmatpush1.bf16.msra.mxu0 %v1841
      %1921 = vmatprep.subr.bf16.mxu0 0
      %1922 = vmatpush2.bf16.msra.mxu0 0
      %1923 = vmatprep.subr.bf16.mxu0 0
      %1924 = vmatpush2.bf16.msra.mxu0 0
      %1925 = vmatprep.subr.bf16.mxu0 0
      %1926 = vmatpush2.bf16.msra.mxu0 0
      %1927 = vmatprep.subr.bf16.mxu0 0
      %1928 = vmatpush2.bf16.msra.mxu0 0
      %1929 = vmatprep.subr.bf16.mxu0 0
      %1930 = vmatpush2.bf16.msra.mxu0 0
      %1931 = vmatprep.subr.bf16.mxu0 0
      %1932 = vmatpush2.bf16.msra.mxu0 0
      %1933 = vmatprep.subr.bf16.mxu0 0
      %1934 = vmatpush2.bf16.msra.mxu0 0
      %1935 = vmatprep.subr.bf16.mxu0 0
      %1936 = vmatpush2.bf16.msra.mxu0 0
      %1937 = vmatprep.mubr.bf16.mxu0 0
      %1938 = vmatmul.mubr.bf16.gmra.mxu0 %v1705
      %v1939 = vpop.f32.mrf.mxu0
      %v1940 = vadd.f32 0.0, %v1939
      %v1941 = vpop.f32.mrf.mxu0
      %v1942 = vadd.f32 0.0, %v1941
      %v1943 = vpop.f32.mrf.mxu0
      %v1944 = vpop.f32.mrf.mxu0
      %1945 = vdwg.mxu0
      %1946 = vmatprep.subr.bf16.mxu0 %v1872
      %1947 = vmatpush1.bf16.msra.mxu0 %v1871
      %1948 = vmatprep.subr.bf16.mxu0 %v1868
      %1949 = vmatpush1.bf16.msra.mxu0 %v1867
      %1950 = vmatprep.subr.bf16.mxu0 %v1864
      %1951 = vmatpush1.bf16.msra.mxu0 %v1863
      %1952 = vmatprep.subr.bf16.mxu0 %v1860
      %1953 = vmatpush1.bf16.msra.mxu0 %v1859
      %1954 = vmatprep.subr.bf16.mxu0 %v1856
      %1955 = vmatpush1.bf16.msra.mxu0 %v1855
      %1956 = vmatprep.subr.bf16.mxu0 %v1852
      %1957 = vmatpush1.bf16.msra.mxu0 %v1851
      %1958 = vmatprep.subr.bf16.mxu0 %v1848
      %1959 = vmatpush1.bf16.msra.mxu0 %v1847
      %1960 = vmatprep.subr.bf16.mxu0 %v1844
      %1961 = vmatpush1.bf16.msra.mxu0 %v1843
      %1962 = vmatprep.subr.bf16.mxu0 0
      %1963 = vmatpush2.bf16.msra.mxu0 0
      %1964 = vmatprep.subr.bf16.mxu0 0
      %1965 = vmatpush2.bf16.msra.mxu0 0
      %1966 = vmatprep.subr.bf16.mxu0 0
      %1967 = vmatpush2.bf16.msra.mxu0 0
      %1968 = vmatprep.subr.bf16.mxu0 0
      %1969 = vmatpush2.bf16.msra.mxu0 0
      %1970 = vmatprep.subr.bf16.mxu0 0
      %1971 = vmatpush2.bf16.msra.mxu0 0
      %1972 = vmatprep.subr.bf16.mxu0 0
      %1973 = vmatpush2.bf16.msra.mxu0 0
      %1974 = vmatprep.subr.bf16.mxu0 0
      %1975 = vmatpush2.bf16.msra.mxu0 0
      %1976 = vmatprep.subr.bf16.mxu0 0
      %1977 = vmatpush2.bf16.msra.mxu0 0
      %1978 = vmatprep.mubr.bf16.mxu0 0
      %1979 = vmatmul.mubr.bf16.gmra.mxu0 %v1705
      %v1980 = vpop.f32.mrf.mxu0
      %v1981 = vadd.f32 0.0, %v1980
      %v1982 = vpop.f32.mrf.mxu0
      %v1983 = vadd.f32 0.0, %v1982
      %v1984 = vpop.f32.mrf.mxu0
      %v1985 = vpop.f32.mrf.mxu0
      %1986 = vdwg.mxu0
      %v1987 = vadd.f32 %v1709, %v1940
      %v1988 = vadd.f32 %v1710, %v1942
      %v1989 = vadd.f32 %v1711, %v1981
      %v1990 = vadd.f32 %v1712, %v1983
      %v1991 = vxor.u32 %v1987, 2147483648
      %v1992 = vmul.f32 %v1991, 1.442695
      %v1993 = vpow.pop %v1992
      %v1994 = vadd.f32 %v1993, 1.0
      %v1995 = vrcp.pop %v1994
      %v1996 = vmul.f32 1.0, %v1995
      %v1997 = vxor.u32 %v1988, 2147483648
      %v1998 = vmul.f32 %v1997, 1.442695
      %v1999 = vpow.pop %v1998
      %v2000 = vadd.f32 %v1999, 1.0
      %v2001 = vrcp.pop %v2000
      %v2002 = vmul.f32 1.0, %v2001
      %v2003 = vtanh.pop %v1989
      %v2004 = vxor.u32 %v1990, 2147483648
      %v2005 = vmul.f32 %v2004, 1.442695
      %v2006 = vpow.pop %v2005
      %v2007 = vadd.f32 %v2006, 1.0
      %v2008 = vrcp.pop %v2007
      %v2009 = vmul.f32 1.0, %v2008
      %v2010 = vmul.f32 %v2002, %v1702
      %v2011 = vmul.f32 %v1996, %v2003
      %v2012 = vadd.f32 %v2010, %v2011
      %v2013 = vtanh.pop %v2012
      %v2014 = vmul.f32 %v2009, %v2013
      %v2015 = vpack.c.bf16 %v2014, %v2014
      %s2016 = scalar_lea.vmem %s148, 20
      %2017 = vst [vmem:[%s2016] sm:$0xf] %v2015
      %s2018 = scalar_lea.vmem %s142, 192
      %v2019 = vld [vmem:[%s2018] sm:$0xff]
      %v2020 = vld [vmem:[%s2018 + $0x8] sm:$0xff]
      %v2021 = vld [vmem:[%s2018 + $0x10] sm:$0xff]
      %v2022 = vld [vmem:[%s2018 + $0x18] sm:$0xff]
      %v2023 = vld [vmem:[%s1] sm:$0xff]
      %v2024 = vld [vmem:[%s1 + $0x8] sm:$0xff]
      %v2025 = vld [vmem:[%s1 + $0x10] sm:$0xff]
      %v2026 = vld [vmem:[%s1 + $0x18] sm:$0xff]
      %v2027 = vld [vmem:[%s1 + $0x20] sm:$0xff]
      %v2028 = vld [vmem:[%s1 + $0x28] sm:$0xff]
      %v2029 = vld [vmem:[%s1 + $0x30] sm:$0xff]
      %v2030 = vld [vmem:[%s1 + $0x38] sm:$0xff]
      %v2031 = vld [vmem:[%s1 + $0x40] sm:$0xff]
      %v2032 = vld [vmem:[%s1 + $0x48] sm:$0xff]
      %v2033 = vld [vmem:[%s1 + $0x50] sm:$0xff]
      %v2034 = vld [vmem:[%s1 + $0x58] sm:$0xff]
      %v2035 = vld [vmem:[%s1 + $0x60] sm:$0xff]
      %v2036 = vld [vmem:[%s1 + $0x68] sm:$0xff]
      %v2037 = vld [vmem:[%s1 + $0x70] sm:$0xff]
      %v2038 = vld [vmem:[%s1 + $0x78] sm:$0xff]
      %v2039 = vld [vmem:[%s1 + $0x80] sm:$0xff]
      %v2040 = vld [vmem:[%s1 + $0x88] sm:$0xff]
      %v2041 = vld [vmem:[%s1 + $0x90] sm:$0xff]
      %v2042 = vld [vmem:[%s1 + $0x98] sm:$0xff]
      %v2043 = vld [vmem:[%s1 + $0xa0] sm:$0xff]
      %v2044 = vld [vmem:[%s1 + $0xa8] sm:$0xff]
      %v2045 = vld [vmem:[%s1 + $0xb0] sm:$0xff]
      %v2046 = vld [vmem:[%s1 + $0xb8] sm:$0xff]
      %v2047 = vld [vmem:[%s1 + $0xc0] sm:$0xff]
      %v2048 = vld [vmem:[%s1 + $0xc8] sm:$0xff]
      %v2049 = vld [vmem:[%s1 + $0xd0] sm:$0xff]
      %v2050 = vld [vmem:[%s1 + $0xd8] sm:$0xff]
      %v2051 = vld [vmem:[%s1 + $0xe0] sm:$0xff]
      %v2052 = vld [vmem:[%s1 + $0xe8] sm:$0xff]
      %v2053 = vld [vmem:[%s1 + $0xf0] sm:$0xff]
      %v2054 = vld [vmem:[%s1 + $0xf8] sm:$0xff]
      %v2087 = vunpack.c.l.b16 %v2023
      %v2088 = vunpack.c.h.b16 %v2023
      %v2089 = vunpack.c.l.b16 %v2024
      %v2090 = vunpack.c.h.b16 %v2024
      %v2091 = vunpack.c.l.b16 %v2025
      %v2092 = vunpack.c.h.b16 %v2025
      %v2093 = vunpack.c.l.b16 %v2026
      %v2094 = vunpack.c.h.b16 %v2026
      %v2095 = vunpack.c.l.b16 %v2027
      %v2096 = vunpack.c.h.b16 %v2027
      %v2097 = vunpack.c.l.b16 %v2028
      %v2098 = vunpack.c.h.b16 %v2028
      %v2099 = vunpack.c.l.b16 %v2029
      %v2100 = vunpack.c.h.b16 %v2029
      %v2101 = vunpack.c.l.b16 %v2030
      %v2102 = vunpack.c.h.b16 %v2030
      %v2103 = vunpack.c.l.b16 %v2031
      %v2104 = vunpack.c.h.b16 %v2031
      %v2105 = vunpack.c.l.b16 %v2032
      %v2106 = vunpack.c.h.b16 %v2032
      %v2107 = vunpack.c.l.b16 %v2033
      %v2108 = vunpack.c.h.b16 %v2033
      %v2109 = vunpack.c.l.b16 %v2034
      %v2110 = vunpack.c.h.b16 %v2034
      %v2111 = vunpack.c.l.b16 %v2035
      %v2112 = vunpack.c.h.b16 %v2035
      %v2113 = vunpack.c.l.b16 %v2036
      %v2114 = vunpack.c.h.b16 %v2036
      %v2115 = vunpack.c.l.b16 %v2037
      %v2116 = vunpack.c.h.b16 %v2037
      %v2117 = vunpack.c.l.b16 %v2038
      %v2118 = vunpack.c.h.b16 %v2038
      %v2119 = vunpack.c.l.b16 %v2039
      %v2120 = vunpack.c.h.b16 %v2039
      %v2121 = vunpack.c.l.b16 %v2040
      %v2122 = vunpack.c.h.b16 %v2040
      %v2123 = vunpack.c.l.b16 %v2041
      %v2124 = vunpack.c.h.b16 %v2041
      %v2125 = vunpack.c.l.b16 %v2042
      %v2126 = vunpack.c.h.b16 %v2042
      %v2127 = vunpack.c.l.b16 %v2043
      %v2128 = vunpack.c.h.b16 %v2043
      %v2129 = vunpack.c.l.b16 %v2044
      %v2130 = vunpack.c.h.b16 %v2044
      %v2131 = vunpack.c.l.b16 %v2045
      %v2132 = vunpack.c.h.b16 %v2045
      %v2133 = vunpack.c.l.b16 %v2046
      %v2134 = vunpack.c.h.b16 %v2046
      %v2135 = vunpack.c.l.b16 %v2047
      %v2136 = vunpack.c.h.b16 %v2047
      %v2137 = vunpack.c.l.b16 %v2048
      %v2138 = vunpack.c.h.b16 %v2048
      %v2139 = vunpack.c.l.b16 %v2049
      %v2140 = vunpack.c.h.b16 %v2049
      %v2141 = vunpack.c.l.b16 %v2050
      %v2142 = vunpack.c.h.b16 %v2050
      %v2143 = vunpack.c.l.b16 %v2051
      %v2144 = vunpack.c.h.b16 %v2051
      %v2145 = vunpack.c.l.b16 %v2052
      %v2146 = vunpack.c.h.b16 %v2052
      %v2147 = vunpack.c.l.b16 %v2053
      %v2148 = vunpack.c.h.b16 %v2053
      %v2149 = vunpack.c.l.b16 %v2054
      %v2150 = vunpack.c.h.b16 %v2054
      %v2151 = vpack.c.b16 %v2091, %v2087
      %v2152 = vpack.c.b16 %v2092, %v2088
      %v2153 = vpack.c.b16 %v2093, %v2089
      %v2154 = vpack.c.b16 %v2094, %v2090
      %v2155 = vpack.c.b16 %v2099, %v2095
      %v2156 = vpack.c.b16 %v2100, %v2096
      %v2157 = vpack.c.b16 %v2101, %v2097
      %v2158 = vpack.c.b16 %v2102, %v2098
      %v2159 = vpack.c.b16 %v2107, %v2103
      %v2160 = vpack.c.b16 %v2108, %v2104
      %v2161 = vpack.c.b16 %v2109, %v2105
      %v2162 = vpack.c.b16 %v2110, %v2106
      %v2163 = vpack.c.b16 %v2115, %v2111
      %v2164 = vpack.c.b16 %v2116, %v2112
      %v2165 = vpack.c.b16 %v2117, %v2113
      %v2166 = vpack.c.b16 %v2118, %v2114
      %v2167 = vpack.c.b16 %v2123, %v2119
      %v2168 = vpack.c.b16 %v2124, %v2120
      %v2169 = vpack.c.b16 %v2125, %v2121
      %v2170 = vpack.c.b16 %v2126, %v2122
      %v2171 = vpack.c.b16 %v2131, %v2127
      %v2172 = vpack.c.b16 %v2132, %v2128
      %v2173 = vpack.c.b16 %v2133, %v2129
      %v2174 = vpack.c.b16 %v2134, %v2130
      %v2175 = vpack.c.b16 %v2139, %v2135
      %v2176 = vpack.c.b16 %v2140, %v2136
      %v2177 = vpack.c.b16 %v2141, %v2137
      %v2178 = vpack.c.b16 %v2142, %v2138
      %v2179 = vpack.c.b16 %v2147, %v2143
      %v2180 = vpack.c.b16 %v2148, %v2144
      %v2181 = vpack.c.b16 %v2149, %v2145
      %v2182 = vpack.c.b16 %v2150, %v2146
      %2215 = vmatprep.subr.bf16.mxu0 %v2180
      %2216 = vmatpush1.bf16.msra.mxu0 %v2179
      %2217 = vmatprep.subr.bf16.mxu0 %v2176
      %2218 = vmatpush1.bf16.msra.mxu0 %v2175
      %2219 = vmatprep.subr.bf16.mxu0 %v2172
      %2220 = vmatpush1.bf16.msra.mxu0 %v2171
      %2221 = vmatprep.subr.bf16.mxu0 %v2168
      %2222 = vmatpush1.bf16.msra.mxu0 %v2167
      %2223 = vmatprep.subr.bf16.mxu0 %v2164
      %2224 = vmatpush1.bf16.msra.mxu0 %v2163
      %2225 = vmatprep.subr.bf16.mxu0 %v2160
      %2226 = vmatpush1.bf16.msra.mxu0 %v2159
      %2227 = vmatprep.subr.bf16.mxu0 %v2156
      %2228 = vmatpush1.bf16.msra.mxu0 %v2155
      %2229 = vmatprep.subr.bf16.mxu0 %v2152
      %2230 = vmatpush1.bf16.msra.mxu0 %v2151
      %2231 = vmatprep.subr.bf16.mxu0 0
      %2232 = vmatpush2.bf16.msra.mxu0 0
      %2233 = vmatprep.subr.bf16.mxu0 0
      %2234 = vmatpush2.bf16.msra.mxu0 0
      %2235 = vmatprep.subr.bf16.mxu0 0
      %2236 = vmatpush2.bf16.msra.mxu0 0
      %2237 = vmatprep.subr.bf16.mxu0 0
      %2238 = vmatpush2.bf16.msra.mxu0 0
      %2239 = vmatprep.subr.bf16.mxu0 0
      %2240 = vmatpush2.bf16.msra.mxu0 0
      %2241 = vmatprep.subr.bf16.mxu0 0
      %2242 = vmatpush2.bf16.msra.mxu0 0
      %2243 = vmatprep.subr.bf16.mxu0 0
      %2244 = vmatpush2.bf16.msra.mxu0 0
      %2245 = vmatprep.subr.bf16.mxu0 0
      %2246 = vmatpush2.bf16.msra.mxu0 0
      %2247 = vmatprep.mubr.bf16.mxu0 0
      %2248 = vmatmul.mubr.bf16.gmra.mxu0 %v2015
      %v2249 = vpop.f32.mrf.mxu0
      %v2250 = vadd.f32 0.0, %v2249
      %v2251 = vpop.f32.mrf.mxu0
      %v2252 = vadd.f32 0.0, %v2251
      %v2253 = vpop.f32.mrf.mxu0
      %v2254 = vpop.f32.mrf.mxu0
      %2255 = vdwg.mxu0
      %2256 = vmatprep.subr.bf16.mxu0 %v2182
      %2257 = vmatpush1.bf16.msra.mxu0 %v2181
      %2258 = vmatprep.subr.bf16.mxu0 %v2178
      %2259 = vmatpush1.bf16.msra.mxu0 %v2177
      %2260 = vmatprep.subr.bf16.mxu0 %v2174
      %2261 = vmatpush1.bf16.msra.mxu0 %v2173
      %2262 = vmatprep.subr.bf16.mxu0 %v2170
      %2263 = vmatpush1.bf16.msra.mxu0 %v2169
      %2264 = vmatprep.subr.bf16.mxu0 %v2166
      %2265 = vmatpush1.bf16.msra.mxu0 %v2165
      %2266 = vmatprep.subr.bf16.mxu0 %v2162
      %2267 = vmatpush1.bf16.msra.mxu0 %v2161
      %2268 = vmatprep.subr.bf16.mxu0 %v2158
      %2269 = vmatpush1.bf16.msra.mxu0 %v2157
      %2270 = vmatprep.subr.bf16.mxu0 %v2154
      %2271 = vmatpush1.bf16.msra.mxu0 %v2153
      %2272 = vmatprep.subr.bf16.mxu0 0
      %2273 = vmatpush2.bf16.msra.mxu0 0
      %2274 = vmatprep.subr.bf16.mxu0 0
      %2275 = vmatpush2.bf16.msra.mxu0 0
      %2276 = vmatprep.subr.bf16.mxu0 0
      %2277 = vmatpush2.bf16.msra.mxu0 0
      %2278 = vmatprep.subr.bf16.mxu0 0
      %2279 = vmatpush2.bf16.msra.mxu0 0
      %2280 = vmatprep.subr.bf16.mxu0 0
      %2281 = vmatpush2.bf16.msra.mxu0 0
      %2282 = vmatprep.subr.bf16.mxu0 0
      %2283 = vmatpush2.bf16.msra.mxu0 0
      %2284 = vmatprep.subr.bf16.mxu0 0
      %2285 = vmatpush2.bf16.msra.mxu0 0
      %2286 = vmatprep.subr.bf16.mxu0 0
      %2287 = vmatpush2.bf16.msra.mxu0 0
      %2288 = vmatprep.mubr.bf16.mxu0 0
      %2289 = vmatmul.mubr.bf16.gmra.mxu0 %v2015
      %v2290 = vpop.f32.mrf.mxu0
      %v2291 = vadd.f32 0.0, %v2290
      %v2292 = vpop.f32.mrf.mxu0
      %v2293 = vadd.f32 0.0, %v2292
      %v2294 = vpop.f32.mrf.mxu0
      %v2295 = vpop.f32.mrf.mxu0
      %2296 = vdwg.mxu0
      %v2297 = vadd.f32 %v2019, %v2250
      %v2298 = vadd.f32 %v2020, %v2252
      %v2299 = vadd.f32 %v2021, %v2291
      %v2300 = vadd.f32 %v2022, %v2293
      %v2301 = vxor.u32 %v2297, 2147483648
      %v2302 = vmul.f32 %v2301, 1.442695
      %v2303 = vpow.pop %v2302
      %v2304 = vadd.f32 %v2303, 1.0
      %v2305 = vrcp.pop %v2304
      %v2306 = vmul.f32 1.0, %v2305
      %v2307 = vxor.u32 %v2298, 2147483648
      %v2308 = vmul.f32 %v2307, 1.442695
      %v2309 = vpow.pop %v2308
      %v2310 = vadd.f32 %v2309, 1.0
      %v2311 = vrcp.pop %v2310
      %v2312 = vmul.f32 1.0, %v2311
      %v2313 = vtanh.pop %v2299
      %v2314 = vxor.u32 %v2300, 2147483648
      %v2315 = vmul.f32 %v2314, 1.442695
      %v2316 = vpow.pop %v2315
      %v2317 = vadd.f32 %v2316, 1.0
      %v2318 = vrcp.pop %v2317
      %v2319 = vmul.f32 1.0, %v2318
      %v2320 = vmul.f32 %v2312, %v2012
      %v2321 = vmul.f32 %v2306, %v2313
      %v2322 = vadd.f32 %v2320, %v2321
      %v2323 = vtanh.pop %v2322
      %v2324 = vmul.f32 %v2319, %v2323
      %v2325 = vpack.c.bf16 %v2324, %v2324
      %s2326 = scalar_lea.vmem %s148, 24
      %2327 = vst [vmem:[%s2326] sm:$0xf] %v2325
      %s2328 = scalar_lea.vmem %s142, 224
      %v2329 = vld [vmem:[%s2328] sm:$0xff]
      %v2330 = vld [vmem:[%s2328 + $0x8] sm:$0xff]
      %v2331 = vld [vmem:[%s2328 + $0x10] sm:$0xff]
      %v2332 = vld [vmem:[%s2328 + $0x18] sm:$0xff]
      %v2333 = vld [vmem:[%s1] sm:$0xff]
      %v2334 = vld [vmem:[%s1 + $0x8] sm:$0xff]
      %v2335 = vld [vmem:[%s1 + $0x10] sm:$0xff]
      %v2336 = vld [vmem:[%s1 + $0x18] sm:$0xff]
      %v2337 = vld [vmem:[%s1 + $0x20] sm:$0xff]
      %v2338 = vld [vmem:[%s1 + $0x28] sm:$0xff]
      %v2339 = vld [vmem:[%s1 + $0x30] sm:$0xff]
      %v2340 = vld [vmem:[%s1 + $0x38] sm:$0xff]
      %v2341 = vld [vmem:[%s1 + $0x40] sm:$0xff]
      %v2342 = vld [vmem:[%s1 + $0x48] sm:$0xff]
      %v2343 = vld [vmem:[%s1 + $0x50] sm:$0xff]
      %v2344 = vld [vmem:[%s1 + $0x58] sm:$0xff]
      %v2345 = vld [vmem:[%s1 + $0x60] sm:$0xff]
      %v2346 = vld [vmem:[%s1 + $0x68] sm:$0xff]
      %v2347 = vld [vmem:[%s1 + $0x70] sm:$0xff]
      %v2348 = vld [vmem:[%s1 + $0x78] sm:$0xff]
      %v2349 = vld [vmem:[%s1 + $0x80] sm:$0xff]
      %v2350 = vld [vmem:[%s1 + $0x88] sm:$0xff]
      %v2351 = vld [vmem:[%s1 + $0x90] sm:$0xff]
      %v2352 = vld [vmem:[%s1 + $0x98] sm:$0xff]
      %v2353 = vld [vmem:[%s1 + $0xa0] sm:$0xff]
      %v2354 = vld [vmem:[%s1 + $0xa8] sm:$0xff]
      %v2355 = vld [vmem:[%s1 + $0xb0] sm:$0xff]
      %v2356 = vld [vmem:[%s1 + $0xb8] sm:$0xff]
      %v2357 = vld [vmem:[%s1 + $0xc0] sm:$0xff]
      %v2358 = vld [vmem:[%s1 + $0xc8] sm:$0xff]
      %v2359 = vld [vmem:[%s1 + $0xd0] sm:$0xff]
      %v2360 = vld [vmem:[%s1 + $0xd8] sm:$0xff]
      %v2361 = vld [vmem:[%s1 + $0xe0] sm:$0xff]
      %v2362 = vld [vmem:[%s1 + $0xe8] sm:$0xff]
      %v2363 = vld [vmem:[%s1 + $0xf0] sm:$0xff]
      %v2364 = vld [vmem:[%s1 + $0xf8] sm:$0xff]
      %v2397 = vunpack.c.l.b16 %v2333
      %v2398 = vunpack.c.h.b16 %v2333
      %v2399 = vunpack.c.l.b16 %v2334
      %v2400 = vunpack.c.h.b16 %v2334
      %v2401 = vunpack.c.l.b16 %v2335
      %v2402 = vunpack.c.h.b16 %v2335
      %v2403 = vunpack.c.l.b16 %v2336
      %v2404 = vunpack.c.h.b16 %v2336
      %v2405 = vunpack.c.l.b16 %v2337
      %v2406 = vunpack.c.h.b16 %v2337
      %v2407 = vunpack.c.l.b16 %v2338
      %v2408 = vunpack.c.h.b16 %v2338
      %v2409 = vunpack.c.l.b16 %v2339
      %v2410 = vunpack.c.h.b16 %v2339
      %v2411 = vunpack.c.l.b16 %v2340
      %v2412 = vunpack.c.h.b16 %v2340
      %v2413 = vunpack.c.l.b16 %v2341
      %v2414 = vunpack.c.h.b16 %v2341
      %v2415 = vunpack.c.l.b16 %v2342
      %v2416 = vunpack.c.h.b16 %v2342
      %v2417 = vunpack.c.l.b16 %v2343
      %v2418 = vunpack.c.h.b16 %v2343
      %v2419 = vunpack.c.l.b16 %v2344
      %v2420 = vunpack.c.h.b16 %v2344
      %v2421 = vunpack.c.l.b16 %v2345
      %v2422 = vunpack.c.h.b16 %v2345
      %v2423 = vunpack.c.l.b16 %v2346
      %v2424 = vunpack.c.h.b16 %v2346
      %v2425 = vunpack.c.l.b16 %v2347
      %v2426 = vunpack.c.h.b16 %v2347
      %v2427 = vunpack.c.l.b16 %v2348
      %v2428 = vunpack.c.h.b16 %v2348
      %v2429 = vunpack.c.l.b16 %v2349
      %v2430 = vunpack.c.h.b16 %v2349
      %v2431 = vunpack.c.l.b16 %v2350
      %v2432 = vunpack.c.h.b16 %v2350
      %v2433 = vunpack.c.l.b16 %v2351
      %v2434 = vunpack.c.h.b16 %v2351
      %v2435 = vunpack.c.l.b16 %v2352
      %v2436 = vunpack.c.h.b16 %v2352
      %v2437 = vunpack.c.l.b16 %v2353
      %v2438 = vunpack.c.h.b16 %v2353
      %v2439 = vunpack.c.l.b16 %v2354
      %v2440 = vunpack.c.h.b16 %v2354
      %v2441 = vunpack.c.l.b16 %v2355
      %v2442 = vunpack.c.h.b16 %v2355
      %v2443 = vunpack.c.l.b16 %v2356
      %v2444 = vunpack.c.h.b16 %v2356
      %v2445 = vunpack.c.l.b16 %v2357
      %v2446 = vunpack.c.h.b16 %v2357
      %v2447 = vunpack.c.l.b16 %v2358
      %v2448 = vunpack.c.h.b16 %v2358
      %v2449 = vunpack.c.l.b16 %v2359
      %v2450 = vunpack.c.h.b16 %v2359
      %v2451 = vunpack.c.l.b16 %v2360
      %v2452 = vunpack.c.h.b16 %v2360
      %v2453 = vunpack.c.l.b16 %v2361
      %v2454 = vunpack.c.h.b16 %v2361
      %v2455 = vunpack.c.l.b16 %v2362
      %v2456 = vunpack.c.h.b16 %v2362
      %v2457 = vunpack.c.l.b16 %v2363
      %v2458 = vunpack.c.h.b16 %v2363
      %v2459 = vunpack.c.l.b16 %v2364
      %v2460 = vunpack.c.h.b16 %v2364
      %v2461 = vpack.c.b16 %v2401, %v2397
      %v2462 = vpack.c.b16 %v2402, %v2398
      %v2463 = vpack.c.b16 %v2403, %v2399
      %v2464 = vpack.c.b16 %v2404, %v2400
      %v2465 = vpack.c.b16 %v2409, %v2405
      %v2466 = vpack.c.b16 %v2410, %v2406
      %v2467 = vpack.c.b16 %v2411, %v2407
      %v2468 = vpack.c.b16 %v2412, %v2408
      %v2469 = vpack.c.b16 %v2417, %v2413
      %v2470 = vpack.c.b16 %v2418, %v2414
      %v2471 = vpack.c.b16 %v2419, %v2415
      %v2472 = vpack.c.b16 %v2420, %v2416
      %v2473 = vpack.c.b16 %v2425, %v2421
      %v2474 = vpack.c.b16 %v2426, %v2422
      %v2475 = vpack.c.b16 %v2427, %v2423
      %v2476 = vpack.c.b16 %v2428, %v2424
      %v2477 = vpack.c.b16 %v2433, %v2429
      %v2478 = vpack.c.b16 %v2434, %v2430
      %v2479 = vpack.c.b16 %v2435, %v2431
      %v2480 = vpack.c.b16 %v2436, %v2432
      %v2481 = vpack.c.b16 %v2441, %v2437
      %v2482 = vpack.c.b16 %v2442, %v2438
      %v2483 = vpack.c.b16 %v2443, %v2439
      %v2484 = vpack.c.b16 %v2444, %v2440
      %v2485 = vpack.c.b16 %v2449, %v2445
      %v2486 = vpack.c.b16 %v2450, %v2446
      %v2487 = vpack.c.b16 %v2451, %v2447
      %v2488 = vpack.c.b16 %v2452, %v2448
      %v2489 = vpack.c.b16 %v2457, %v2453
      %v2490 = vpack.c.b16 %v2458, %v2454
      %v2491 = vpack.c.b16 %v2459, %v2455
      %v2492 = vpack.c.b16 %v2460, %v2456
      %2525 = vmatprep.subr.bf16.mxu0 %v2490
      %2526 = vmatpush1.bf16.msra.mxu0 %v2489
      %2527 = vmatprep.subr.bf16.mxu0 %v2486
      %2528 = vmatpush1.bf16.msra.mxu0 %v2485
      %2529 = vmatprep.subr.bf16.mxu0 %v2482
      %2530 = vmatpush1.bf16.msra.mxu0 %v2481
      %2531 = vmatprep.subr.bf16.mxu0 %v2478
      %2532 = vmatpush1.bf16.msra.mxu0 %v2477
      %2533 = vmatprep.subr.bf16.mxu0 %v2474
      %2534 = vmatpush1.bf16.msra.mxu0 %v2473
      %2535 = vmatprep.subr.bf16.mxu0 %v2470
      %2536 = vmatpush1.bf16.msra.mxu0 %v2469
      %2537 = vmatprep.subr.bf16.mxu0 %v2466
      %2538 = vmatpush1.bf16.msra.mxu0 %v2465
      %2539 = vmatprep.subr.bf16.mxu0 %v2462
      %2540 = vmatpush1.bf16.msra.mxu0 %v2461
      %2541 = vmatprep.subr.bf16.mxu0 0
      %2542 = vmatpush2.bf16.msra.mxu0 0
      %2543 = vmatprep.subr.bf16.mxu0 0
      %2544 = vmatpush2.bf16.msra.mxu0 0
      %2545 = vmatprep.subr.bf16.mxu0 0
      %2546 = vmatpush2.bf16.msra.mxu0 0
      %2547 = vmatprep.subr.bf16.mxu0 0
      %2548 = vmatpush2.bf16.msra.mxu0 0
      %2549 = vmatprep.subr.bf16.mxu0 0
      %2550 = vmatpush2.bf16.msra.mxu0 0
      %2551 = vmatprep.subr.bf16.mxu0 0
      %2552 = vmatpush2.bf16.msra.mxu0 0
      %2553 = vmatprep.subr.bf16.mxu0 0
      %2554 = vmatpush2.bf16.msra.mxu0 0
      %2555 = vmatprep.subr.bf16.mxu0 0
      %2556 = vmatpush2.bf16.msra.mxu0 0
      %2557 = vmatprep.mubr.bf16.mxu0 0
      %2558 = vmatmul.mubr.bf16.gmra.mxu0 %v2325
      %v2559 = vpop.f32.mrf.mxu0
      %v2560 = vadd.f32 0.0, %v2559
      %v2561 = vpop.f32.mrf.mxu0
      %v2562 = vadd.f32 0.0, %v2561
      %v2563 = vpop.f32.mrf.mxu0
      %v2564 = vpop.f32.mrf.mxu0
      %2565 = vdwg.mxu0
      %2566 = vmatprep.subr.bf16.mxu0 %v2492
      %2567 = vmatpush1.bf16.msra.mxu0 %v2491
      %2568 = vmatprep.subr.bf16.mxu0 %v2488
      %2569 = vmatpush1.bf16.msra.mxu0 %v2487
      %2570 = vmatprep.subr.bf16.mxu0 %v2484
      %2571 = vmatpush1.bf16.msra.mxu0 %v2483
      %2572 = vmatprep.subr.bf16.mxu0 %v2480
      %2573 = vmatpush1.bf16.msra.mxu0 %v2479
      %2574 = vmatprep.subr.bf16.mxu0 %v2476
      %2575 = vmatpush1.bf16.msra.mxu0 %v2475
      %2576 = vmatprep.subr.bf16.mxu0 %v2472
      %2577 = vmatpush1.bf16.msra.mxu0 %v2471
      %2578 = vmatprep.subr.bf16.mxu0 %v2468
      %2579 = vmatpush1.bf16.msra.mxu0 %v2467
      %2580 = vmatprep.subr.bf16.mxu0 %v2464
      %2581 = vmatpush1.bf16.msra.mxu0 %v2463
      %2582 = vmatprep.subr.bf16.mxu0 0
      %2583 = vmatpush2.bf16.msra.mxu0 0
      %2584 = vmatprep.subr.bf16.mxu0 0
      %2585 = vmatpush2.bf16.msra.mxu0 0
      %2586 = vmatprep.subr.bf16.mxu0 0
      %2587 = vmatpush2.bf16.msra.mxu0 0
      %2588 = vmatprep.subr.bf16.mxu0 0
      %2589 = vmatpush2.bf16.msra.mxu0 0
      %2590 = vmatprep.subr.bf16.mxu0 0
      %2591 = vmatpush2.bf16.msra.mxu0 0
      %2592 = vmatprep.subr.bf16.mxu0 0
      %2593 = vmatpush2.bf16.msra.mxu0 0
      %2594 = vmatprep.subr.bf16.mxu0 0
      %2595 = vmatpush2.bf16.msra.mxu0 0
      %2596 = vmatprep.subr.bf16.mxu0 0
      %2597 = vmatpush2.bf16.msra.mxu0 0
      %2598 = vmatprep.mubr.bf16.mxu0 0
      %2599 = vmatmul.mubr.bf16.gmra.mxu0 %v2325
      %v2600 = vpop.f32.mrf.mxu0
      %v2601 = vadd.f32 0.0, %v2600
      %v2602 = vpop.f32.mrf.mxu0
      %v2603 = vadd.f32 0.0, %v2602
      %v2604 = vpop.f32.mrf.mxu0
      %v2605 = vpop.f32.mrf.mxu0
      %2606 = vdwg.mxu0
      %v2607 = vadd.f32 %v2329, %v2560
      %v2608 = vadd.f32 %v2330, %v2562
      %v2609 = vadd.f32 %v2331, %v2601
      %v2610 = vadd.f32 %v2332, %v2603
      %v2611 = vxor.u32 %v2607, 2147483648
      %v2612 = vmul.f32 %v2611, 1.442695
      %v2613 = vpow.pop %v2612
      %v2614 = vadd.f32 %v2613, 1.0
      %v2615 = vrcp.pop %v2614
      %v2616 = vmul.f32 1.0, %v2615
      %v2617 = vxor.u32 %v2608, 2147483648
      %v2618 = vmul.f32 %v2617, 1.442695
      %v2619 = vpow.pop %v2618
      %v2620 = vadd.f32 %v2619, 1.0
      %v2621 = vrcp.pop %v2620
      %v2622 = vmul.f32 1.0, %v2621
      %v2623 = vtanh.pop %v2609
      %v2624 = vxor.u32 %v2610, 2147483648
      %v2625 = vmul.f32 %v2624, 1.442695
      %v2626 = vpow.pop %v2625
      %v2627 = vadd.f32 %v2626, 1.0
      %v2628 = vrcp.pop %v2627
      %v2629 = vmul.f32 1.0, %v2628
      %v2630 = vmul.f32 %v2622, %v2322
      %v2631 = vmul.f32 %v2616, %v2623
      %v2632 = vadd.f32 %v2630, %v2631
      %v2633 = vtanh.pop %v2632
      %v2634 = vmul.f32 %v2629, %v2633
      %v2635 = vpack.c.bf16 %v2634, %v2634
      %s2636 = scalar_lea.vmem %s148, 28
      %2637 = vst [vmem:[%s2636] sm:$0xf] %v2635
      %2638 = vst [vmem:[#allocation2] sm:$0xff] %v2634
      %2639 = vst [vmem:[#allocation3] sm:$0xff] %v2632
      %s2640 = smul.u32 8, %s13
      %p2641 = scmp.lt.s32.totalorder %s2640, 15
      %s2642 = scalar_select %p2641, %s2640, 15
      %s2643 = smul.addr %s2642, 4
      %s2644 = scalar_lea.vmem %s2, %s2643
      // Predicated region
      $region33: #{lm_forward.2} parent=27 // pred_check
        %p2645 = pneg %p78
      $region34: #{lm_forward.2} parent=27 // pred_check_branch
        %2647 = sbr.rel (%p2645) target = $region36
      $region35: #{lm_forward.2} parent=27 // pred_region
        %s2648 = smul.u32 8, %s13
      $region36: #{lm_forward.2} parent=27 // pred_fallthru
        _
    $region28: #{lm_forward.2} parent=5 // pred_fallthru
      _
    %p2649 = scmp.le.s32.totalorder 2, %s8
    // Predicated region
    $region37: #{lm_forward.2} parent=5 // pred_check
      %p2650 = pneg %p2649
    $region38: #{lm_forward.2} parent=5 // pred_check_branch
      %2652 = sbr.rel (%p2650) target = $region40
    $region39: #{lm_forward.2} parent=5 // pred_region
      %s2653 = ssub.s32 %s8, 2
      // Predicated region
      $region41: #{lm_forward.2} parent=39 // pred_check
        %p2654 = pneg %p84
      $region42: #{lm_forward.2} parent=39 // pred_check_branch
        %2656 = sbr.rel (%p2654) target = $region44
      $region43: #{lm_forward.2} parent=39 // pred_region
        %s2657 = smul.u32 8, %s14
        %p2658 = scmp.lt.s32.totalorder %s2657, 15
        %s2659 = scalar_select %p2658, %s2657, 15
        %s2660 = smul.addr %s2659, 4
        %s2661 = scalar_lea.vmem %s2, %s2660
      $region44: #{lm_forward.2} parent=39 // pred_fallthru
        _
    $region40: #{lm_forward.2} parent=5 // pred_fallthru
      _
  $region6: #{lm_forward.2} parent=0 // loop_footer
    %s12 = sadd.s32 1, %s8
  $region7: #{lm_forward.2} parent=0 // loop_footer_branch
    %7 = sbr.rel target = $region3
  $region8: #{lm_forward.2} parent=0 // loop_exit
    _

</llo_original>
